<compile_context>
chip_gen: v5e
topology: v5e:2x2
jax: 0.10.0
libtpu: 0.0.40
codegen_flags: <defaults>
</compile_context>

<pallas_src>
import jax
import jax.numpy as jnp
from jax.experimental import pallas as pl
from jax.experimental.pallas import tpu as pltpu


NEG_SLOPE = 0.01  # F.leaky_relu default


def _leaky_relu(x):
    return jnp.where(x >= 0, x, NEG_SLOPE * x)


def _round_up(n, m):
    return ((n + m - 1) // m) * m


def _largest_divisor(n, candidates):
    for c in candidates:
        if n % c == 0:
            return c
    return n


# ----------------------------------------------------------------------------
# Kernel 1: hidden_1 + hoisted GRU input projection (per-gate outputs)
#   a1 = leaky_relu(x @ W1 + b1)
#   gi_r = a1 @ Wih_r + (b_ih_r + b_hh_r)
#   gi_z = a1 @ Wih_z + (b_ih_z + b_hh_z)
#   gi_n = a1 @ Wih_n +  b_ih_n
# ----------------------------------------------------------------------------
def _precompute_kernel(x_ref, w1_ref, b1_ref,
                       wir_ref, wiz_ref, win_ref,
                       br_ref, bz_ref, bgn_ref,
                       gr_ref, gz_ref, gn_ref):
    a1 = _leaky_relu(
        jnp.dot(x_ref[...], w1_ref[...], preferred_element_type=jnp.float32)
        + b1_ref[...])
    gr_ref[...] = jnp.dot(a1, wir_ref[...], preferred_element_type=jnp.float32) + br_ref[...]
    gz_ref[...] = jnp.dot(a1, wiz_ref[...], preferred_element_type=jnp.float32) + bz_ref[...]
    gn_ref[...] = jnp.dot(a1, win_ref[...], preferred_element_type=jnp.float32) + bgn_ref[...]


def precompute_gates(x2d, p):
    N, O = x2d.shape
    H = p["w1"].shape[1]
    bn = _largest_divisor(N, (512, 256, 128, 64, 32, 16, 8))  # rows per grid step

    def row_spec(shape):
        return pl.BlockSpec(shape, lambda i: (i, 0))

    def full_spec(shape):
        return pl.BlockSpec(shape, lambda i: (0, 0))

    return pl.pallas_call(
        _precompute_kernel,
        out_shape=tuple(jax.ShapeDtypeStruct((N, H), jnp.float32) for _ in range(3)),
        grid=(N // bn,),
        in_specs=[
            row_spec((bn, O)),
            full_spec((O, H)), full_spec((1, H)),
            full_spec((H, H)), full_spec((H, H)), full_spec((H, H)),
            full_spec((1, H)), full_spec((1, H)), full_spec((1, H)),
        ],
        out_specs=tuple(row_spec((bn, H)) for _ in range(3)),
        compiler_params=pltpu.CompilerParams(dimension_semantics=("parallel",)),
    )(x2d, p["w1"], p["b1"], p["wih_r"], p["wih_z"], p["wih_n"],
      p["bi_r"], p["bi_z"], p["bi_n"])


# ----------------------------------------------------------------------------
# Kernel 2: GRU recurrence (time-chunked) + fused hidden_2/output head.
# Grid = (batch tiles, time chunks).  Hidden state carried in VMEM scratch.
# ----------------------------------------------------------------------------
def _gru_head_kernel(gr_ref, gz_ref, gn_ref, h0_ref,
                     whr_ref, whz_ref, whn_ref, bhn_ref,
                     w2_ref, b2_ref, wo_ref, bo_ref,
                     val_ref, hlast_ref,
                     h_scr, y_scr):
    t = pl.program_id(1)
    Bb, Tc, H = y_scr.shape

    @pl.when(t == 0)
    def _():
        h_scr[...] = h0_ref[...]

    # Hoist chunk-invariant loads out of the unrolled loop.
    Wr = whr_ref[...]
    Wz = whz_ref[...]
    Wn = whn_ref[...]
    bhn = bhn_ref[...]

    h = h_scr[...]
    # Unrolled recurrence over the chunk: only hidden-to-hidden matmuls remain
    # on the serial chain (input projections were precomputed in kernel 1).
    for k in range(Tc):
        r = jax.nn.sigmoid(gr_ref[:, k, :]
                           + jnp.dot(h, Wr, preferred_element_type=jnp.float32))
        z = jax.nn.sigmoid(gz_ref[:, k, :]
                           + jnp.dot(h, Wz, preferred_element_type=jnp.float32))
        n = jnp.tanh(gn_ref[:, k, :]
                     + r * (jnp.dot(h, Wn, preferred_element_type=jnp.float32) + bhn))
        h = (1.0 - z) * n + z * h
        y_scr[:, k, :] = h

    h_scr[...] = h
    hlast_ref[...] = h  # same block across the time axis -> final value = h_T

    # Fused head on the whole chunk: leaky_relu(y @ W2 + b2) @ Wo + bo.
    y2 = y_scr[...].reshape(Bb * Tc, H)
    h2 = _leaky_relu(
        jnp.dot(y2, w2_ref[...], preferred_element_type=jnp.float32) + b2_ref[...])
    v = jnp.dot(h2, wo_ref[...], preferred_element_type=jnp.float32) + bo_ref[...]
    val_ref[...] = v.reshape(Bb, Tc, 1)


def gru_with_head(gi_r, gi_z, gi_n, h0, p, Bb, Tc):
    Bp, Tp, H = gi_r.shape
    grid = (Bp // Bb, Tp // Tc)

    gi_spec = pl.BlockSpec((Bb, Tc, H), lambda b, t: (b, t, 0))

    def w_spec(shape):
        return pl.BlockSpec(shape, lambda b, t: (0, 0))

    value, h_last = pl.pallas_call(
        _gru_head_kernel,
        out_shape=(jax.ShapeDtypeStruct((Bp, Tp, 1), jnp.float32),
                   jax.ShapeDtypeStruct((Bp, H), jnp.float32)),
        grid=grid,
        in_specs=[
            gi_spec, gi_spec, gi_spec,
            pl.BlockSpec((Bb, H), lambda b, t: (b, 0)),
            w_spec((H, H)), w_spec((H, H)), w_spec((H, H)), w_spec((1, H)),
            w_spec((H, H)), w_spec((1, H)), w_spec((H, 1)), w_spec((1, 1)),
        ],
        out_specs=(
            pl.BlockSpec((Bb, Tc, 1), lambda b, t: (b, t, 0)),
            pl.BlockSpec((Bb, H), lambda b, t: (b, 0)),
        ),
        scratch_shapes=[pltpu.VMEM((Bb, H), jnp.float32),
                        pltpu.VMEM((Bb, Tc, H), jnp.float32)],
        compiler_params=pltpu.CompilerParams(
            dimension_semantics=("parallel", "arbitrary")),
    )(gi_r, gi_z, gi_n, h0,
      p["whh_r"], p["whh_z"], p["whh_n"], p["bh_n"],
      p["w2"], p["b2"], p["wo"], p["bo"])
    return value, h_last


# ----------------------------------------------------------------------------
# Parameter init (matches the PyTorch module's init scheme), stored in the
# kernel-friendly gate-aligned / transposed layout.
# ----------------------------------------------------------------------------
def _xavier_uniform(key, shape, gain):
    fan_in, fan_out = shape[1], shape[0]   # PyTorch (out, in) layout
    limit = gain * (6.0 / (fan_in + fan_out)) ** 0.5
    return jax.random.uniform(key, shape, jnp.float32, -limit, limit)


def init_params(key, o_size, h_size):
    ks = jax.random.split(key, 8)
    gain_lrelu = (2.0 / (1.0 + NEG_SLOPE ** 2)) ** 0.5   # calculate_gain('leaky_relu')
    kg = 1.0 / (h_size ** 0.5)                           # PyTorch GRU default init
    H = h_size

    w1 = _xavier_uniform(ks[0], (h_size, o_size), gain_lrelu).T   # (O, H)
    w2 = _xavier_uniform(ks[1], (h_size, h_size), gain_lrelu).T   # (H, H)
    wo = _xavier_uniform(ks[2], (1, h_size), 1.0).T               # (H, 1)

    wih = jax.random.uniform(ks[3], (3 * H, H), jnp.float32, -kg, kg)
    whh = jax.random.uniform(ks[4], (3 * H, H), jnp.float32, -kg, kg)
    bih = jax.random.uniform(ks[5], (3 * H,), jnp.float32, -kg, kg)
    bhh = jax.random.uniform(ks[6], (3 * H,), jnp.float32, -kg, kg)

    def gate(a, g):
        return a[g * H:(g + 1) * H]

    return {
        "w1": w1, "b1": jnp.zeros((1, H), jnp.float32),
        "w2": w2, "b2": jnp.zeros((1, H), jnp.float32),
        "wo": wo, "bo": jnp.zeros((1, 1), jnp.float32),
        # Gate-aligned GRU weights (PyTorch gate order [r, z, n]), transposed.
        "wih_r": gate(wih, 0).T, "wih_z": gate(wih, 1).T, "wih_n": gate(wih, 2).T,
        "whh_r": gate(whh, 0).T, "whh_z": gate(whh, 1).T, "whh_n": gate(whh, 2).T,
        # b_ih_r + b_hh_r and b_ih_z + b_hh_z fold into the precomputed gates;
        # b_hh_n must stay inside the r * (.) term.
        "bi_r": (gate(bih, 0) + gate(bhh, 0)).reshape(1, H),
        "bi_z": (gate(bih, 1) + gate(bhh, 1)).reshape(1, H),
        "bi_n": gate(bih, 2).reshape(1, H),
        "bh_n": gate(bhh, 2).reshape(1, H),
    }


# ----------------------------------------------------------------------------
# Full RecCritic forward
# ----------------------------------------------------------------------------
def rec_critic_forward(params, x, h=None):
    """x: (B, T, o_size) f32.  h: optional (1, B, h_size).
    Returns (value (B, T, 1), h_ (1, B, h_size)) like the PyTorch module."""
    B, T, O = x.shape
    H = params["w1"].shape[1]

    # Pad batch to the 8-row sublane granularity (padded rows sliced off later).
    Bp = _round_up(max(B, 8), 8)
    if Bp != B:
        x = jnp.pad(x, ((0, Bp - B), (0, 0), (0, 0)))
    if h is None:
        h0 = jnp.zeros((Bp, H), jnp.float32)
    else:
        h0 = jnp.pad(h[0].astype(jnp.float32), ((0, Bp - B), (0, 0)))

    # Kernel 1: hidden_1 + hoisted GRU input projections over all B*T rows.
    gi_r, gi_z, gi_n = precompute_gates(x.reshape(Bp * T, O), params)
    gi_r = gi_r.reshape(Bp, T, H)
    gi_z = gi_z.reshape(Bp, T, H)
    gi_n = gi_n.reshape(Bp, T, H)

    # Pad time to a multiple of 8 so chunks are sublane-aligned.  Padded steps
    # use gi_z = +inf  =>  update gate z = 1  =>  h carries through unchanged,
    # so h_last is exact; padded value rows are sliced away.
    Tp = _round_up(T, 8)
    if Tp != T:
        pad_t = ((0, 0), (0, Tp - T), (0, 0))
        gi_r = jnp.pad(gi_r, pad_t)
        gi_z = jnp.pad(gi_z, pad_t, constant_values=1e9)
        gi_n = jnp.pad(gi_n, pad_t)

    Bb = 8                                      # batch rows per grid step
    Tc = _largest_divisor(Tp, (32, 16, 8))      # timesteps per grid step (unrolled)

    value, h_last = gru_with_head(gi_r, gi_z, gi_n, h0, params, Bb, Tc)
    return value[:B, :T], h_last[:B][None]


# ----------------------------------------------------------------------------
# Pure-JAX reference (same math / parameter layout) for a correctness check.
# ----------------------------------------------------------------------------
def reference_forward(params, x, h=None):
    B, T, O = x.shape
    H = params["w1"].shape[1]
    P = jax.lax.Precision.HIGHEST
    a1 = _leaky_relu(jnp.dot(x, params["w1"], precision=P) + params["b1"][0])
    h_t = jnp.zeros((B, H), jnp.float32) if h is None else h[0]
    ys = []
    for t in range(T):
        xt = a1[:, t]
        r = jax.nn.sigmoid(jnp.dot(xt, params["wih_r"], precision=P) + params["bi_r"][0]
                           + jnp.dot(h_t, params["whh_r"], precision=P))
        z = jax.nn.sigmoid(jnp.dot(xt, params["wih_z"], precision=P) + params["bi_z"][0]
                           + jnp.dot(h_t, params["whh_z"], precision=P))
        n = jnp.tanh(jnp.dot(xt, params["wih_n"], precision=P) + params["bi_n"][0]
                     + r * (jnp.dot(h_t, params["whh_n"], precision=P) + params["bh_n"][0]))
        h_t = (1.0 - z) * n + z * h_t
        ys.append(h_t)
    y = jnp.stack(ys, axis=1)                                     # (B, T, H)
    h2 = _leaky_relu(jnp.dot(y, params["w2"], precision=P) + params["b2"][0])
    v = jnp.dot(h2, params["wo"], precision=P) + params["bo"][0]  # (B, T, 1)
    return v, h_t[None]


if __name__ == "__main__":
    B, T, O_SIZE, H_SIZE = 2, 8, 16, 32

    key = jax.random.PRNGKey(0)
    k_param, k_x = jax.random.split(key)
    params = init_params(k_param, O_SIZE, H_SIZE)
    x = jax.random.normal(k_x, (B, T, O_SIZE), jnp.float32)

    value, h_out = jax.jit(rec_critic_forward)(params, x)
    jax.block_until_ready((value, h_out))

    assert value.shape == (B, T, 1), value.shape
    assert h_out.shape == (1, B, H_SIZE), h_out.shape

    v_ref, h_ref = reference_forward(params, x)
    assert jnp.allclose(value, v_ref, atol=2e-2, rtol=2e-2), \
        float(jnp.max(jnp.abs(value - v_ref)))
    assert jnp.allclose(h_out, h_ref, atol=2e-2, rtol=2e-2), \
        float(jnp.max(jnp.abs(h_out - h_ref)))

    print("KERNEL_OK")
</pallas_src>

<mosaic_0001>
module attributes {stable_mosaic.version = 11 : i64} {
  func.func @_precompute_kernel(%arg0: i32, %arg1: memref<64x16xf32, #tpu.memory_space<vmem>>, %arg2: memref<16x32xf32, #tpu.memory_space<vmem>>, %arg3: memref<1x32xf32, #tpu.memory_space<vmem>>, %arg4: memref<32x32xf32, #tpu.memory_space<vmem>>, %arg5: memref<32x32xf32, #tpu.memory_space<vmem>>, %arg6: memref<32x32xf32, #tpu.memory_space<vmem>>, %arg7: memref<1x32xf32, #tpu.memory_space<vmem>>, %arg8: memref<1x32xf32, #tpu.memory_space<vmem>>, %arg9: memref<1x32xf32, #tpu.memory_space<vmem>>, %arg10: memref<64x32xf32, #tpu.memory_space<vmem>>, %arg11: memref<64x32xf32, #tpu.memory_space<vmem>>, %arg12: memref<64x32xf32, #tpu.memory_space<vmem>>) attributes {dimension_semantics = [#tpu.dimension_semantics<parallel>], iteration_bounds = array<i64: 1>, scalar_prefetch = 0 : i64, scratch_operands = 0 : i64, tpu.core_type = #tpu.core_type<tc>, window_params = [{transform_indices = @transform_0, window_bounds = array<i64: 64, 16>}, {pipeline_mode = #tpu.pipeline_mode<synchronous>, transform_indices = @transform_1, window_bounds = array<i64: 16, 32>}, {pipeline_mode = #tpu.pipeline_mode<synchronous>, transform_indices = @transform_2, window_bounds = array<i64: 1, 32>}, {pipeline_mode = #tpu.pipeline_mode<synchronous>, transform_indices = @transform_3, window_bounds = array<i64: 32, 32>}, {pipeline_mode = #tpu.pipeline_mode<synchronous>, transform_indices = @transform_4, window_bounds = array<i64: 32, 32>}, {pipeline_mode = #tpu.pipeline_mode<synchronous>, transform_indices = @transform_5, window_bounds = array<i64: 32, 32>}, {pipeline_mode = #tpu.pipeline_mode<synchronous>, transform_indices = @transform_6, window_bounds = array<i64: 1, 32>}, {pipeline_mode = #tpu.pipeline_mode<synchronous>, transform_indices = @transform_7, window_bounds = array<i64: 1, 32>}, {pipeline_mode = #tpu.pipeline_mode<synchronous>, transform_indices = @transform_8, window_bounds = array<i64: 1, 32>}, {transform_indices = @transform_9, window_bounds = array<i64: 64, 32>}, {transform_indices = @transform_10, window_bounds = array<i64: 64, 32>}, {transform_indices = @transform_11, window_bounds = array<i64: 64, 32>}]} {
    %c0 = arith.constant 0 : index
    %c0_0 = arith.constant 0 : index
    %0 = vector.load %arg1[%c0, %c0_0] : memref<64x16xf32, #tpu.memory_space<vmem>>, vector<64x16xf32>
    %c0_1 = arith.constant 0 : index
    %c0_2 = arith.constant 0 : index
    %1 = vector.load %arg2[%c0_1, %c0_2] : memref<16x32xf32, #tpu.memory_space<vmem>>, vector<16x32xf32>
    %cst = arith.constant dense<0.000000e+00> : vector<64x32xf32>
    %2 = tpu.matmul %0, %1, %cst {dimension_numbers = #tpu.dot_dimension_numbers<[1], [0], [0], [1], [0, 0, 1, 1], [], []>} : vector<64x16xf32>, vector<16x32xf32>, vector<64x32xf32> -> vector<64x32xf32>
    %c0_3 = arith.constant 0 : index
    %c0_4 = arith.constant 0 : index
    %3 = vector.load %arg3[%c0_3, %c0_4] : memref<1x32xf32, #tpu.memory_space<vmem>>, vector<1x32xf32>
    %4 = vector.broadcast %3 : vector<1x32xf32> to vector<64x32xf32>
    %5 = arith.addf %2, %4 : vector<64x32xf32>
    %cst_5 = arith.constant 0.000000e+00 : f32
    %6 = vector.broadcast %cst_5 : f32 to vector<64x32xf32>
    %7 = arith.cmpf oge, %5, %6 : vector<64x32xf32>
    %cst_6 = arith.constant 0.00999999977 : f32
    %8 = vector.broadcast %cst_6 : f32 to vector<64x32xf32>
    %9 = arith.mulf %8, %5 : vector<64x32xf32>
    %10 = arith.select %7, %5, %9 : vector<64x32xi1>, vector<64x32xf32>
    %c0_7 = arith.constant 0 : index
    %c0_8 = arith.constant 0 : index
    %11 = vector.load %arg4[%c0_7, %c0_8] : memref<32x32xf32, #tpu.memory_space<vmem>>, vector<32x32xf32>
    %cst_9 = arith.constant dense<0.000000e+00> : vector<64x32xf32>
    %12 = tpu.matmul %10, %11, %cst_9 {dimension_numbers = #tpu.dot_dimension_numbers<[1], [0], [0], [1], [0, 0, 1, 1], [], []>} : vector<64x32xf32>, vector<32x32xf32>, vector<64x32xf32> -> vector<64x32xf32>
    %c0_10 = arith.constant 0 : index
    %c0_11 = arith.constant 0 : index
    %13 = vector.load %arg7[%c0_10, %c0_11] : memref<1x32xf32, #tpu.memory_space<vmem>>, vector<1x32xf32>
    %14 = vector.broadcast %13 : vector<1x32xf32> to vector<64x32xf32>
    %15 = arith.addf %12, %14 : vector<64x32xf32>
    %c0_12 = arith.constant 0 : index
    %c0_13 = arith.constant 0 : index
    %16 = vector.load %arg10[%c0_12, %c0_13] : memref<64x32xf32, #tpu.memory_space<vmem>>, vector<64x32xf32>
    tpu.vector_store %arg10[%c0_12, %c0_13], %15 {strides = array<i32>} : memref<64x32xf32, #tpu.memory_space<vmem>>, vector<64x32xf32>,
    %c0_14 = arith.constant 0 : index
    %c0_15 = arith.constant 0 : index
    %17 = vector.load %arg5[%c0_14, %c0_15] : memref<32x32xf32, #tpu.memory_space<vmem>>, vector<32x32xf32>
    %cst_16 = arith.constant dense<0.000000e+00> : vector<64x32xf32>
    %18 = tpu.matmul %10, %17, %cst_16 {dimension_numbers = #tpu.dot_dimension_numbers<[1], [0], [0], [1], [0, 0, 1, 1], [], []>} : vector<64x32xf32>, vector<32x32xf32>, vector<64x32xf32> -> vector<64x32xf32>
    %c0_17 = arith.constant 0 : index
    %c0_18 = arith.constant 0 : index
    %19 = vector.load %arg8[%c0_17, %c0_18] : memref<1x32xf32, #tpu.memory_space<vmem>>, vector<1x32xf32>
    %20 = vector.broadcast %19 : vector<1x32xf32> to vector<64x32xf32>
    %21 = arith.addf %18, %20 : vector<64x32xf32>
    %c0_19 = arith.constant 0 : index
    %c0_20 = arith.constant 0 : index
    %22 = vector.load %arg11[%c0_19, %c0_20] : memref<64x32xf32, #tpu.memory_space<vmem>>, vector<64x32xf32>
    tpu.vector_store %arg11[%c0_19, %c0_20], %21 {strides = array<i32>} : memref<64x32xf32, #tpu.memory_space<vmem>>, vector<64x32xf32>,
    %c0_21 = arith.constant 0 : index
    %c0_22 = arith.constant 0 : index
    %23 = vector.load %arg6[%c0_21, %c0_22] : memref<32x32xf32, #tpu.memory_space<vmem>>, vector<32x32xf32>
    %cst_23 = arith.constant dense<0.000000e+00> : vector<64x32xf32>
    %24 = tpu.matmul %10, %23, %cst_23 {dimension_numbers = #tpu.dot_dimension_numbers<[1], [0], [0], [1], [0, 0, 1, 1], [], []>} : vector<64x32xf32>, vector<32x32xf32>, vector<64x32xf32> -> vector<64x32xf32>
    %c0_24 = arith.constant 0 : index
    %c0_25 = arith.constant 0 : index
    %25 = vector.load %arg9[%c0_24, %c0_25] : memref<1x32xf32, #tpu.memory_space<vmem>>, vector<1x32xf32>
    %26 = vector.broadcast %25 : vector<1x32xf32> to vector<64x32xf32>
    %27 = arith.addf %24, %26 : vector<64x32xf32>
    %c0_26 = arith.constant 0 : index
    %c0_27 = arith.constant 0 : index
    %28 = vector.load %arg12[%c0_26, %c0_27] : memref<64x32xf32, #tpu.memory_space<vmem>>, vector<64x32xf32>
    tpu.vector_store %arg12[%c0_26, %c0_27], %27 {strides = array<i32>} : memref<64x32xf32, #tpu.memory_space<vmem>>, vector<64x32xf32>,
    return
  }
  func.func @transform_0(%arg0: i32) -> (i32, i32) {
    %c0_i32 = arith.constant 0 : i32
    %c0_i32_0 = arith.constant 0 : i32
    return %arg0, %c0_i32 : i32, i32
  }
  func.func @transform_1(%arg0: i32) -> (i32, i32) {
    %c0_i32 = arith.constant 0 : i32
    %c0_i32_0 = arith.constant 0 : i32
    %c0_i32_1 = arith.constant 0 : i32
    return %c0_i32, %c0_i32_0 : i32, i32
  }
  func.func @transform_2(%arg0: i32) -> (i32, i32) {
    %c0_i32 = arith.constant 0 : i32
    %c0_i32_0 = arith.constant 0 : i32
    %c0_i32_1 = arith.constant 0 : i32
    return %c0_i32, %c0_i32_0 : i32, i32
  }
  func.func @transform_3(%arg0: i32) -> (i32, i32) {
    %c0_i32 = arith.constant 0 : i32
    %c0_i32_0 = arith.constant 0 : i32
    %c0_i32_1 = arith.constant 0 : i32
    return %c0_i32, %c0_i32_0 : i32, i32
  }
  func.func @transform_4(%arg0: i32) -> (i32, i32) {
    %c0_i32 = arith.constant 0 : i32
    %c0_i32_0 = arith.constant 0 : i32
    %c0_i32_1 = arith.constant 0 : i32
    return %c0_i32, %c0_i32_0 : i32, i32
  }
  func.func @transform_5(%arg0: i32) -> (i32, i32) {
    %c0_i32 = arith.constant 0 : i32
    %c0_i32_0 = arith.constant 0 : i32
    %c0_i32_1 = arith.constant 0 : i32
    return %c0_i32, %c0_i32_0 : i32, i32
  }
  func.func @transform_6(%arg0: i32) -> (i32, i32) {
    %c0_i32 = arith.constant 0 : i32
    %c0_i32_0 = arith.constant 0 : i32
    %c0_i32_1 = arith.constant 0 : i32
    return %c0_i32, %c0_i32_0 : i32, i32
  }
  func.func @transform_7(%arg0: i32) -> (i32, i32) {
    %c0_i32 = arith.constant 0 : i32
    %c0_i32_0 = arith.constant 0 : i32
    %c0_i32_1 = arith.constant 0 : i32
    return %c0_i32, %c0_i32_0 : i32, i32
  }
  func.func @transform_8(%arg0: i32) -> (i32, i32) {
    %c0_i32 = arith.constant 0 : i32
    %c0_i32_0 = arith.constant 0 : i32
    %c0_i32_1 = arith.constant 0 : i32
    return %c0_i32, %c0_i32_0 : i32, i32
  }
  func.func @transform_9(%arg0: i32) -> (i32, i32) {
    %c0_i32 = arith.constant 0 : i32
    %c0_i32_0 = arith.constant 0 : i32
    return %arg0, %c0_i32 : i32, i32
  }
  func.func @transform_10(%arg0: i32) -> (i32, i32) {
    %c0_i32 = arith.constant 0 : i32
    %c0_i32_0 = arith.constant 0 : i32
    return %arg0, %c0_i32 : i32, i32
  }
  func.func @transform_11(%arg0: i32) -> (i32, i32) {
    %c0_i32 = arith.constant 0 : i32
    %c0_i32_0 = arith.constant 0 : i32
    return %arg0, %c0_i32 : i32, i32
  }
}

module attributes {stable_mosaic.version = 11 : i64} {
  func.func @_gru_head_kernel(%arg0: i32, %arg1: i32, %arg2: memref<8x8x32xf32, #tpu.memory_space<vmem>>, %arg3: memref<8x8x32xf32, #tpu.memory_space<vmem>>, %arg4: memref<8x8x32xf32, #tpu.memory_space<vmem>>, %arg5: memref<8x32xf32, #tpu.memory_space<vmem>>, %arg6: memref<32x32xf32, #tpu.memory_space<vmem>>, %arg7: memref<32x32xf32, #tpu.memory_space<vmem>>, %arg8: memref<32x32xf32, #tpu.memory_space<vmem>>, %arg9: memref<1x32xf32, #tpu.memory_space<vmem>>, %arg10: memref<32x32xf32, #tpu.memory_space<vmem>>, %arg11: memref<1x32xf32, #tpu.memory_space<vmem>>, %arg12: memref<32x1xf32, #tpu.memory_space<vmem>>, %arg13: memref<1x1xf32, #tpu.memory_space<vmem>>, %arg14: memref<8x8x1xf32, #tpu.memory_space<vmem>>, %arg15: memref<8x32xf32, #tpu.memory_space<vmem>>, %arg16: memref<8x32xf32, #tpu.memory_space<vmem>>, %arg17: memref<8x8x32xf32, #tpu.memory_space<vmem>>) attributes {dimension_semantics = [#tpu.dimension_semantics<parallel>, #tpu.dimension_semantics<arbitrary>], iteration_bounds = array<i64: 1, 1>, scalar_prefetch = 0 : i64, scratch_operands = 2 : i64, tpu.core_type = #tpu.core_type<tc>, window_params = [{transform_indices = @transform_0, window_bounds = array<i64: 8, 8, 32>}, {transform_indices = @transform_1, window_bounds = array<i64: 8, 8, 32>}, {transform_indices = @transform_2, window_bounds = array<i64: 8, 8, 32>}, {transform_indices = @transform_3, window_bounds = array<i64: 8, 32>}, {pipeline_mode = #tpu.pipeline_mode<synchronous>, transform_indices = @transform_4, window_bounds = array<i64: 32, 32>}, {pipeline_mode = #tpu.pipeline_mode<synchronous>, transform_indices = @transform_5, window_bounds = array<i64: 32, 32>}, {pipeline_mode = #tpu.pipeline_mode<synchronous>, transform_indices = @transform_6, window_bounds = array<i64: 32, 32>}, {pipeline_mode = #tpu.pipeline_mode<synchronous>, transform_indices = @transform_7, window_bounds = array<i64: 1, 32>}, {pipeline_mode = #tpu.pipeline_mode<synchronous>, transform_indices = @transform_8, window_bounds = array<i64: 32, 32>}, {pipeline_mode = #tpu.pipeline_mode<synchronous>, transform_indices = @transform_9, window_bounds = array<i64: 1, 32>}, {pipeline_mode = #tpu.pipeline_mode<synchronous>, transform_indices = @transform_10, window_bounds = array<i64: 32, 1>}, {pipeline_mode = #tpu.pipeline_mode<synchronous>, transform_indices = @transform_11, window_bounds = array<i64: 1, 1>}, {transform_indices = @transform_12, window_bounds = array<i64: 8, 8, 1>}, {transform_indices = @transform_13, window_bounds = array<i64: 8, 32>}]} {
    %c0_i32 = arith.constant 0 : i32
    %0 = arith.cmpi eq, %arg1, %c0_i32 : i32
    %1 = arith.extui %0 : i1 to i32
    %c0_i32_0 = arith.constant 0 : i32
    %2 = arith.cmpi ne, %1, %c0_i32_0 : i32
    scf.if %2 {
      %c0_168 = arith.constant 0 : index
      %c0_169 = arith.constant 0 : index
      %301 = vector.load %arg5[%c0_168, %c0_169] : memref<8x32xf32, #tpu.memory_space<vmem>>, vector<8x32xf32>
      %c0_170 = arith.constant 0 : index
      %c0_171 = arith.constant 0 : index
      %302 = vector.load %arg16[%c0_170, %c0_171] : memref<8x32xf32, #tpu.memory_space<vmem>>, vector<8x32xf32>
      tpu.vector_store %arg16[%c0_170, %c0_171], %301 {strides = array<i32>} : memref<8x32xf32, #tpu.memory_space<vmem>>, vector<8x32xf32>,
    } else {
    }
    %c0 = arith.constant 0 : index
    %c0_1 = arith.constant 0 : index
    %3 = vector.load %arg6[%c0, %c0_1] : memref<32x32xf32, #tpu.memory_space<vmem>>, vector<32x32xf32>
    %c0_2 = arith.constant 0 : index
    %c0_3 = arith.constant 0 : index
    %4 = vector.load %arg7[%c0_2, %c0_3] : memref<32x32xf32, #tpu.memory_space<vmem>>, vector<32x32xf32>
    %c0_4 = arith.constant 0 : index
    %c0_5 = arith.constant 0 : index
    %5 = vector.load %arg8[%c0_4, %c0_5] : memref<32x32xf32, #tpu.memory_space<vmem>>, vector<32x32xf32>
    %c0_6 = arith.constant 0 : index
    %c0_7 = arith.constant 0 : index
    %6 = vector.load %arg9[%c0_6, %c0_7] : memref<1x32xf32, #tpu.memory_space<vmem>>, vector<1x32xf32>
    %c0_8 = arith.constant 0 : index
    %c0_9 = arith.constant 0 : index
    %7 = vector.load %arg16[%c0_8, %c0_9] : memref<8x32xf32, #tpu.memory_space<vmem>>, vector<8x32xf32>
    %c0_10 = arith.constant 0 : index
    %c0_11 = arith.constant 0 : index
    %c0_12 = arith.constant 0 : index
    %8 = vector.load %arg2[%c0_10, %c0_11, %c0_12] : memref<8x8x32xf32, #tpu.memory_space<vmem>>, vector<8x1x32xf32>
    %9 = vector.shape_cast %8 : vector<8x1x32xf32> to vector<8x32xf32>
    %cst = arith.constant dense<0.000000e+00> : vector<8x32xf32>
    %10 = tpu.matmul %7, %3, %cst {dimension_numbers = #tpu.dot_dimension_numbers<[1], [0], [0], [1], [0, 0, 1, 1], [], []>} : vector<8x32xf32>, vector<32x32xf32>, vector<8x32xf32> -> vector<8x32xf32>
    %11 = arith.addf %9, %10 : vector<8x32xf32>
    %12 = arith.negf %11 : vector<8x32xf32>
    %13 = math.exp %12 : vector<8x32xf32>
    %cst_13 = arith.constant 1.000000e+00 : f32
    %14 = vector.broadcast %cst_13 : f32 to vector<8x32xf32>
    %15 = arith.addf %14, %13 : vector<8x32xf32>
    %16 = arith.divf %14, %15 : vector<8x32xf32>
    %c0_14 = arith.constant 0 : index
    %c0_15 = arith.constant 0 : index
    %c0_16 = arith.constant 0 : index
    %17 = vector.load %arg3[%c0_14, %c0_15, %c0_16] : memref<8x8x32xf32, #tpu.memory_space<vmem>>, vector<8x1x32xf32>
    %18 = vector.shape_cast %17 : vector<8x1x32xf32> to vector<8x32xf32>
    %cst_17 = arith.constant dense<0.000000e+00> : vector<8x32xf32>
    %19 = tpu.matmul %7, %4, %cst_17 {dimension_numbers = #tpu.dot_dimension_numbers<[1], [0], [0], [1], [0, 0, 1, 1], [], []>} : vector<8x32xf32>, vector<32x32xf32>, vector<8x32xf32> -> vector<8x32xf32>
    %20 = arith.addf %18, %19 : vector<8x32xf32>
    %21 = arith.negf %20 : vector<8x32xf32>
    %22 = math.exp %21 : vector<8x32xf32>
    %cst_18 = arith.constant 1.000000e+00 : f32
    %23 = vector.broadcast %cst_18 : f32 to vector<8x32xf32>
    %24 = arith.addf %23, %22 : vector<8x32xf32>
    %25 = arith.divf %23, %24 : vector<8x32xf32>
    %c0_19 = arith.constant 0 : index
    %c0_20 = arith.constant 0 : index
    %c0_21 = arith.constant 0 : index
    %26 = vector.load %arg4[%c0_19, %c0_20, %c0_21] : memref<8x8x32xf32, #tpu.memory_space<vmem>>, vector<8x1x32xf32>
    %27 = vector.shape_cast %26 : vector<8x1x32xf32> to vector<8x32xf32>
    %cst_22 = arith.constant dense<0.000000e+00> : vector<8x32xf32>
    %28 = tpu.matmul %7, %5, %cst_22 {dimension_numbers = #tpu.dot_dimension_numbers<[1], [0], [0], [1], [0, 0, 1, 1], [], []>} : vector<8x32xf32>, vector<32x32xf32>, vector<8x32xf32> -> vector<8x32xf32>
    %29 = vector.broadcast %6 : vector<1x32xf32> to vector<8x32xf32>
    %30 = arith.addf %28, %29 : vector<8x32xf32>
    %31 = arith.mulf %16, %30 : vector<8x32xf32>
    %32 = arith.addf %27, %31 : vector<8x32xf32>
    %33 = math.tanh %32 : vector<8x32xf32>
    %cst_23 = arith.constant 1.000000e+00 : f32
    %34 = vector.broadcast %cst_23 : f32 to vector<8x32xf32>
    %35 = arith.subf %34, %25 : vector<8x32xf32>
    %36 = arith.mulf %35, %33 : vector<8x32xf32>
    %37 = arith.mulf %25, %7 : vector<8x32xf32>
    %38 = arith.addf %36, %37 : vector<8x32xf32>
    %c0_24 = arith.constant 0 : index
    %c0_25 = arith.constant 0 : index
    %c0_26 = arith.constant 0 : index
    %39 = vector.load %arg17[%c0_24, %c0_25, %c0_26] : memref<8x8x32xf32, #tpu.memory_space<vmem>>, vector<8x1x32xf32>
    %40 = vector.shape_cast %39 : vector<8x1x32xf32> to vector<8x32xf32>
    %41 = vector.shape_cast %38 : vector<8x32xf32> to vector<8x1x32xf32>
    tpu.vector_store %arg17[%c0_24, %c0_25, %c0_26], %41 {strides = array<i32>} : memref<8x8x32xf32, #tpu.memory_space<vmem>>, vector<8x1x32xf32>,
    %c0_27 = arith.constant 0 : index
    %c1 = arith.constant 1 : index
    %c0_28 = arith.constant 0 : index
    %42 = vector.load %arg2[%c0_27, %c1, %c0_28] : memref<8x8x32xf32, #tpu.memory_space<vmem>>, vector<8x1x32xf32>
    %43 = vector.shape_cast %42 : vector<8x1x32xf32> to vector<8x32xf32>
    %cst_29 = arith.constant dense<0.000000e+00> : vector<8x32xf32>
    %44 = tpu.matmul %38, %3, %cst_29 {dimension_numbers = #tpu.dot_dimension_numbers<[1], [0], [0], [1], [0, 0, 1, 1], [], []>} : vector<8x32xf32>, vector<32x32xf32>, vector<8x32xf32> -> vector<8x32xf32>
    %45 = arith.addf %43, %44 : vector<8x32xf32>
    %46 = arith.negf %45 : vector<8x32xf32>
    %47 = math.exp %46 : vector<8x32xf32>
    %cst_30 = arith.constant 1.000000e+00 : f32
    %48 = vector.broadcast %cst_30 : f32 to vector<8x32xf32>
    %49 = arith.addf %48, %47 : vector<8x32xf32>
    %50 = arith.divf %48, %49 : vector<8x32xf32>
    %c0_31 = arith.constant 0 : index
    %c1_32 = arith.constant 1 : index
    %c0_33 = arith.constant 0 : index
    %51 = vector.load %arg3[%c0_31, %c1_32, %c0_33] : memref<8x8x32xf32, #tpu.memory_space<vmem>>, vector<8x1x32xf32>
    %52 = vector.shape_cast %51 : vector<8x1x32xf32> to vector<8x32xf32>
    %cst_34 = arith.constant dense<0.000000e+00> : vector<8x32xf32>
    %53 = tpu.matmul %38, %4, %cst_34 {dimension_numbers = #tpu.dot_dimension_numbers<[1], [0], [0], [1], [0, 0, 1, 1], [], []>} : vector<8x32xf32>, vector<32x32xf32>, vector<8x32xf32> -> vector<8x32xf32>
    %54 = arith.addf %52, %53 : vector<8x32xf32>
    %55 = arith.negf %54 : vector<8x32xf32>
    %56 = math.exp %55 : vector<8x32xf32>
    %cst_35 = arith.constant 1.000000e+00 : f32
    %57 = vector.broadcast %cst_35 : f32 to vector<8x32xf32>
    %58 = arith.addf %57, %56 : vector<8x32xf32>
    %59 = arith.divf %57, %58 : vector<8x32xf32>
    %c0_36 = arith.constant 0 : index
    %c1_37 = arith.constant 1 : index
    %c0_38 = arith.constant 0 : index
    %60 = vector.load %arg4[%c0_36, %c1_37, %c0_38] : memref<8x8x32xf32, #tpu.memory_space<vmem>>, vector<8x1x32xf32>
    %61 = vector.shape_cast %60 : vector<8x1x32xf32> to vector<8x32xf32>
    %cst_39 = arith.constant dense<0.000000e+00> : vector<8x32xf32>
    %62 = tpu.matmul %38, %5, %cst_39 {dimension_numbers = #tpu.dot_dimension_numbers<[1], [0], [0], [1], [0, 0, 1, 1], [], []>} : vector<8x32xf32>, vector<32x32xf32>, vector<8x32xf32> -> vector<8x32xf32>
    %63 = vector.broadcast %6 : vector<1x32xf32> to vector<8x32xf32>
    %64 = arith.addf %62, %63 : vector<8x32xf32>
    %65 = arith.mulf %50, %64 : vector<8x32xf32>
    %66 = arith.addf %61, %65 : vector<8x32xf32>
    %67 = math.tanh %66 : vector<8x32xf32>
    %cst_40 = arith.constant 1.000000e+00 : f32
    %68 = vector.broadcast %cst_40 : f32 to vector<8x32xf32>
    %69 = arith.subf %68, %59 : vector<8x32xf32>
    %70 = arith.mulf %69, %67 : vector<8x32xf32>
    %71 = arith.mulf %59, %38 : vector<8x32xf32>
    %72 = arith.addf %70, %71 : vector<8x32xf32>
    %c0_41 = arith.constant 0 : index
    %c1_42 = arith.constant 1 : index
    %c0_43 = arith.constant 0 : index
    %73 = vector.load %arg17[%c0_41, %c1_42, %c0_43] : memref<8x8x32xf32, #tpu.memory_space<vmem>>, vector<8x1x32xf32>
    %74 = vector.shape_cast %73 : vector<8x1x32xf32> to vector<8x32xf32>
    %75 = vector.shape_cast %72 : vector<8x32xf32> to vector<8x1x32xf32>
    tpu.vector_store %arg17[%c0_41, %c1_42, %c0_43], %75 {strides = array<i32>} : memref<8x8x32xf32, #tpu.memory_space<vmem>>, vector<8x1x32xf32>,
    %c0_44 = arith.constant 0 : index
    %c2 = arith.constant 2 : index
    %c0_45 = arith.constant 0 : index
    %76 = vector.load %arg2[%c0_44, %c2, %c0_45] : memref<8x8x32xf32, #tpu.memory_space<vmem>>, vector<8x1x32xf32>
    %77 = vector.shape_cast %76 : vector<8x1x32xf32> to vector<8x32xf32>
    %cst_46 = arith.constant dense<0.000000e+00> : vector<8x32xf32>
    %78 = tpu.matmul %72, %3, %cst_46 {dimension_numbers = #tpu.dot_dimension_numbers<[1], [0], [0], [1], [0, 0, 1, 1], [], []>} : vector<8x32xf32>, vector<32x32xf32>, vector<8x32xf32> -> vector<8x32xf32>
    %79 = arith.addf %77, %78 : vector<8x32xf32>
    %80 = arith.negf %79 : vector<8x32xf32>
    %81 = math.exp %80 : vector<8x32xf32>
    %cst_47 = arith.constant 1.000000e+00 : f32
    %82 = vector.broadcast %cst_47 : f32 to vector<8x32xf32>
    %83 = arith.addf %82, %81 : vector<8x32xf32>
    %84 = arith.divf %82, %83 : vector<8x32xf32>
    %c0_48 = arith.constant 0 : index
    %c2_49 = arith.constant 2 : index
    %c0_50 = arith.constant 0 : index
    %85 = vector.load %arg3[%c0_48, %c2_49, %c0_50] : memref<8x8x32xf32, #tpu.memory_space<vmem>>, vector<8x1x32xf32>
    %86 = vector.shape_cast %85 : vector<8x1x32xf32> to vector<8x32xf32>
    %cst_51 = arith.constant dense<0.000000e+00> : vector<8x32xf32>
    %87 = tpu.matmul %72, %4, %cst_51 {dimension_numbers = #tpu.dot_dimension_numbers<[1], [0], [0], [1], [0, 0, 1, 1], [], []>} : vector<8x32xf32>, vector<32x32xf32>, vector<8x32xf32> -> vector<8x32xf32>
    %88 = arith.addf %86, %87 : vector<8x32xf32>
    %89 = arith.negf %88 : vector<8x32xf32>
    %90 = math.exp %89 : vector<8x32xf32>
    %cst_52 = arith.constant 1.000000e+00 : f32
    %91 = vector.broadcast %cst_52 : f32 to vector<8x32xf32>
    %92 = arith.addf %91, %90 : vector<8x32xf32>
    %93 = arith.divf %91, %92 : vector<8x32xf32>
    %c0_53 = arith.constant 0 : index
    %c2_54 = arith.constant 2 : index
    %c0_55 = arith.constant 0 : index
    %94 = vector.load %arg4[%c0_53, %c2_54, %c0_55] : memref<8x8x32xf32, #tpu.memory_space<vmem>>, vector<8x1x32xf32>
    %95 = vector.shape_cast %94 : vector<8x1x32xf32> to vector<8x32xf32>
    %cst_56 = arith.constant dense<0.000000e+00> : vector<8x32xf32>
    %96 = tpu.matmul %72, %5, %cst_56 {dimension_numbers = #tpu.dot_dimension_numbers<[1], [0], [0], [1], [0, 0, 1, 1], [], []>} : vector<8x32xf32>, vector<32x32xf32>, vector<8x32xf32> -> vector<8x32xf32>
    %97 = vector.broadcast %6 : vector<1x32xf32> to vector<8x32xf32>
    %98 = arith.addf %96, %97 : vector<8x32xf32>
    %99 = arith.mulf %84, %98 : vector<8x32xf32>
    %100 = arith.addf %95, %99 : vector<8x32xf32>
    %101 = math.tanh %100 : vector<8x32xf32>
    %cst_57 = arith.constant 1.000000e+00 : f32
    %102 = vector.broadcast %cst_57 : f32 to vector<8x32xf32>
    %103 = arith.subf %102, %93 : vector<8x32xf32>
    %104 = arith.mulf %103, %101 : vector<8x32xf32>
    %105 = arith.mulf %93, %72 : vector<8x32xf32>
    %106 = arith.addf %104, %105 : vector<8x32xf32>
    %c0_58 = arith.constant 0 : index
    %c2_59 = arith.constant 2 : index
    %c0_60 = arith.constant 0 : index
    %107 = vector.load %arg17[%c0_58, %c2_59, %c0_60] : memref<8x8x32xf32, #tpu.memory_space<vmem>>, vector<8x1x32xf32>
    %108 = vector.shape_cast %107 : vector<8x1x32xf32> to vector<8x32xf32>
    %109 = vector.shape_cast %106 : vector<8x32xf32> to vector<8x1x32xf32>
    tpu.vector_store %arg17[%c0_58, %c2_59, %c0_60], %109 {strides = array<i32>} : memref<8x8x32xf32, #tpu.memory_space<vmem>>, vector<8x1x32xf32>,
    %c0_61 = arith.constant 0 : index
    %c3 = arith.constant 3 : index
    %c0_62 = arith.constant 0 : index
    %110 = vector.load %arg2[%c0_61, %c3, %c0_62] : memref<8x8x32xf32, #tpu.memory_space<vmem>>, vector<8x1x32xf32>
    %111 = vector.shape_cast %110 : vector<8x1x32xf32> to vector<8x32xf32>
    %cst_63 = arith.constant dense<0.000000e+00> : vector<8x32xf32>
    %112 = tpu.matmul %106, %3, %cst_63 {dimension_numbers = #tpu.dot_dimension_numbers<[1], [0], [0], [1], [0, 0, 1, 1], [], []>} : vector<8x32xf32>, vector<32x32xf32>, vector<8x32xf32> -> vector<8x32xf32>
    %113 = arith.addf %111, %112 : vector<8x32xf32>
    %114 = arith.negf %113 : vector<8x32xf32>
    %115 = math.exp %114 : vector<8x32xf32>
    %cst_64 = arith.constant 1.000000e+00 : f32
    %116 = vector.broadcast %cst_64 : f32 to vector<8x32xf32>
    %117 = arith.addf %116, %115 : vector<8x32xf32>
    %118 = arith.divf %116, %117 : vector<8x32xf32>
    %c0_65 = arith.constant 0 : index
    %c3_66 = arith.constant 3 : index
    %c0_67 = arith.constant 0 : index
    %119 = vector.load %arg3[%c0_65, %c3_66, %c0_67] : memref<8x8x32xf32, #tpu.memory_space<vmem>>, vector<8x1x32xf32>
    %120 = vector.shape_cast %119 : vector<8x1x32xf32> to vector<8x32xf32>
    %cst_68 = arith.constant dense<0.000000e+00> : vector<8x32xf32>
    %121 = tpu.matmul %106, %4, %cst_68 {dimension_numbers = #tpu.dot_dimension_numbers<[1], [0], [0], [1], [0, 0, 1, 1], [], []>} : vector<8x32xf32>, vector<32x32xf32>, vector<8x32xf32> -> vector<8x32xf32>
    %122 = arith.addf %120, %121 : vector<8x32xf32>
    %123 = arith.negf %122 : vector<8x32xf32>
    %124 = math.exp %123 : vector<8x32xf32>
    %cst_69 = arith.constant 1.000000e+00 : f32
    %125 = vector.broadcast %cst_69 : f32 to vector<8x32xf32>
    %126 = arith.addf %125, %124 : vector<8x32xf32>
    %127 = arith.divf %125, %126 : vector<8x32xf32>
    %c0_70 = arith.constant 0 : index
    %c3_71 = arith.constant 3 : index
    %c0_72 = arith.constant 0 : index
    %128 = vector.load %arg4[%c0_70, %c3_71, %c0_72] : memref<8x8x32xf32, #tpu.memory_space<vmem>>, vector<8x1x32xf32>
    %129 = vector.shape_cast %128 : vector<8x1x32xf32> to vector<8x32xf32>
    %cst_73 = arith.constant dense<0.000000e+00> : vector<8x32xf32>
    %130 = tpu.matmul %106, %5, %cst_73 {dimension_numbers = #tpu.dot_dimension_numbers<[1], [0], [0], [1], [0, 0, 1, 1], [], []>} : vector<8x32xf32>, vector<32x32xf32>, vector<8x32xf32> -> vector<8x32xf32>
    %131 = vector.broadcast %6 : vector<1x32xf32> to vector<8x32xf32>
    %132 = arith.addf %130, %131 : vector<8x32xf32>
    %133 = arith.mulf %118, %132 : vector<8x32xf32>
    %134 = arith.addf %129, %133 : vector<8x32xf32>
    %135 = math.tanh %134 : vector<8x32xf32>
    %cst_74 = arith.constant 1.000000e+00 : f32
    %136 = vector.broadcast %cst_74 : f32 to vector<8x32xf32>
    %137 = arith.subf %136, %127 : vector<8x32xf32>
    %138 = arith.mulf %137, %135 : vector<8x32xf32>
    %139 = arith.mulf %127, %106 : vector<8x32xf32>
    %140 = arith.addf %138, %139 : vector<8x32xf32>
    %c0_75 = arith.constant 0 : index
    %c3_76 = arith.constant 3 : index
    %c0_77 = arith.constant 0 : index
    %141 = vector.load %arg17[%c0_75, %c3_76, %c0_77] : memref<8x8x32xf32, #tpu.memory_space<vmem>>, vector<8x1x32xf32>
    %142 = vector.shape_cast %141 : vector<8x1x32xf32> to vector<8x32xf32>
    %143 = vector.shape_cast %140 : vector<8x32xf32> to vector<8x1x32xf32>
    tpu.vector_store %arg17[%c0_75, %c3_76, %c0_77], %143 {strides = array<i32>} : memref<8x8x32xf32, #tpu.memory_space<vmem>>, vector<8x1x32xf32>,
    %c0_78 = arith.constant 0 : index
    %c4 = arith.constant 4 : index
    %c0_79 = arith.constant 0 : index
    %144 = vector.load %arg2[%c0_78, %c4, %c0_79] : memref<8x8x32xf32, #tpu.memory_space<vmem>>, vector<8x1x32xf32>
    %145 = vector.shape_cast %144 : vector<8x1x32xf32> to vector<8x32xf32>
    %cst_80 = arith.constant dense<0.000000e+00> : vector<8x32xf32>
    %146 = tpu.matmul %140, %3, %cst_80 {dimension_numbers = #tpu.dot_dimension_numbers<[1], [0], [0], [1], [0, 0, 1, 1], [], []>} : vector<8x32xf32>, vector<32x32xf32>, vector<8x32xf32> -> vector<8x32xf32>
    %147 = arith.addf %145, %146 : vector<8x32xf32>
    %148 = arith.negf %147 : vector<8x32xf32>
    %149 = math.exp %148 : vector<8x32xf32>
    %cst_81 = arith.constant 1.000000e+00 : f32
    %150 = vector.broadcast %cst_81 : f32 to vector<8x32xf32>
    %151 = arith.addf %150, %149 : vector<8x32xf32>
    %152 = arith.divf %150, %151 : vector<8x32xf32>
    %c0_82 = arith.constant 0 : index
    %c4_83 = arith.constant 4 : index
    %c0_84 = arith.constant 0 : index
    %153 = vector.load %arg3[%c0_82, %c4_83, %c0_84] : memref<8x8x32xf32, #tpu.memory_space<vmem>>, vector<8x1x32xf32>
    %154 = vector.shape_cast %153 : vector<8x1x32xf32> to vector<8x32xf32>
    %cst_85 = arith.constant dense<0.000000e+00> : vector<8x32xf32>
    %155 = tpu.matmul %140, %4, %cst_85 {dimension_numbers = #tpu.dot_dimension_numbers<[1], [0], [0], [1], [0, 0, 1, 1], [], []>} : vector<8x32xf32>, vector<32x32xf32>, vector<8x32xf32> -> vector<8x32xf32>
    %156 = arith.addf %154, %155 : vector<8x32xf32>
    %157 = arith.negf %156 : vector<8x32xf32>
    %158 = math.exp %157 : vector<8x32xf32>
    %cst_86 = arith.constant 1.000000e+00 : f32
    %159 = vector.broadcast %cst_86 : f32 to vector<8x32xf32>
    %160 = arith.addf %159, %158 : vector<8x32xf32>
    %161 = arith.divf %159, %160 : vector<8x32xf32>
    %c0_87 = arith.constant 0 : index
    %c4_88 = arith.constant 4 : index
    %c0_89 = arith.constant 0 : index
    %162 = vector.load %arg4[%c0_87, %c4_88, %c0_89] : memref<8x8x32xf32, #tpu.memory_space<vmem>>, vector<8x1x32xf32>
    %163 = vector.shape_cast %162 : vector<8x1x32xf32> to vector<8x32xf32>
    %cst_90 = arith.constant dense<0.000000e+00> : vector<8x32xf32>
    %164 = tpu.matmul %140, %5, %cst_90 {dimension_numbers = #tpu.dot_dimension_numbers<[1], [0], [0], [1], [0, 0, 1, 1], [], []>} : vector<8x32xf32>, vector<32x32xf32>, vector<8x32xf32> -> vector<8x32xf32>
    %165 = vector.broadcast %6 : vector<1x32xf32> to vector<8x32xf32>
    %166 = arith.addf %164, %165 : vector<8x32xf32>
    %167 = arith.mulf %152, %166 : vector<8x32xf32>
    %168 = arith.addf %163, %167 : vector<8x32xf32>
    %169 = math.tanh %168 : vector<8x32xf32>
    %cst_91 = arith.constant 1.000000e+00 : f32
    %170 = vector.broadcast %cst_91 : f32 to vector<8x32xf32>
    %171 = arith.subf %170, %161 : vector<8x32xf32>
    %172 = arith.mulf %171, %169 : vector<8x32xf32>
    %173 = arith.mulf %161, %140 : vector<8x32xf32>
    %174 = arith.addf %172, %173 : vector<8x32xf32>
    %c0_92 = arith.constant 0 : index
    %c4_93 = arith.constant 4 : index
    %c0_94 = arith.constant 0 : index
    %175 = vector.load %arg17[%c0_92, %c4_93, %c0_94] : memref<8x8x32xf32, #tpu.memory_space<vmem>>, vector<8x1x32xf32>
    %176 = vector.shape_cast %175 : vector<8x1x32xf32> to vector<8x32xf32>
    %177 = vector.shape_cast %174 : vector<8x32xf32> to vector<8x1x32xf32>
    tpu.vector_store %arg17[%c0_92, %c4_93, %c0_94], %177 {strides = array<i32>} : memref<8x8x32xf32, #tpu.memory_space<vmem>>, vector<8x1x32xf32>,
    %c0_95 = arith.constant 0 : index
    %c5 = arith.constant 5 : index
    %c0_96 = arith.constant 0 : index
    %178 = vector.load %arg2[%c0_95, %c5, %c0_96] : memref<8x8x32xf32, #tpu.memory_space<vmem>>, vector<8x1x32xf32>
    %179 = vector.shape_cast %178 : vector<8x1x32xf32> to vector<8x32xf32>
    %cst_97 = arith.constant dense<0.000000e+00> : vector<8x32xf32>
    %180 = tpu.matmul %174, %3, %cst_97 {dimension_numbers = #tpu.dot_dimension_numbers<[1], [0], [0], [1], [0, 0, 1, 1], [], []>} : vector<8x32xf32>, vector<32x32xf32>, vector<8x32xf32> -> vector<8x32xf32>
    %181 = arith.addf %179, %180 : vector<8x32xf32>
    %182 = arith.negf %181 : vector<8x32xf32>
    %183 = math.exp %182 : vector<8x32xf32>
    %cst_98 = arith.constant 1.000000e+00 : f32
    %184 = vector.broadcast %cst_98 : f32 to vector<8x32xf32>
    %185 = arith.addf %184, %183 : vector<8x32xf32>
    %186 = arith.divf %184, %185 : vector<8x32xf32>
    %c0_99 = arith.constant 0 : index
    %c5_100 = arith.constant 5 : index
    %c0_101 = arith.constant 0 : index
    %187 = vector.load %arg3[%c0_99, %c5_100, %c0_101] : memref<8x8x32xf32, #tpu.memory_space<vmem>>, vector<8x1x32xf32>
    %188 = vector.shape_cast %187 : vector<8x1x32xf32> to vector<8x32xf32>
    %cst_102 = arith.constant dense<0.000000e+00> : vector<8x32xf32>
    %189 = tpu.matmul %174, %4, %cst_102 {dimension_numbers = #tpu.dot_dimension_numbers<[1], [0], [0], [1], [0, 0, 1, 1], [], []>} : vector<8x32xf32>, vector<32x32xf32>, vector<8x32xf32> -> vector<8x32xf32>
    %190 = arith.addf %188, %189 : vector<8x32xf32>
    %191 = arith.negf %190 : vector<8x32xf32>
    %192 = math.exp %191 : vector<8x32xf32>
    %cst_103 = arith.constant 1.000000e+00 : f32
    %193 = vector.broadcast %cst_103 : f32 to vector<8x32xf32>
    %194 = arith.addf %193, %192 : vector<8x32xf32>
    %195 = arith.divf %193, %194 : vector<8x32xf32>
    %c0_104 = arith.constant 0 : index
    %c5_105 = arith.constant 5 : index
    %c0_106 = arith.constant 0 : index
    %196 = vector.load %arg4[%c0_104, %c5_105, %c0_106] : memref<8x8x32xf32, #tpu.memory_space<vmem>>, vector<8x1x32xf32>
    %197 = vector.shape_cast %196 : vector<8x1x32xf32> to vector<8x32xf32>
    %cst_107 = arith.constant dense<0.000000e+00> : vector<8x32xf32>
    %198 = tpu.matmul %174, %5, %cst_107 {dimension_numbers = #tpu.dot_dimension_numbers<[1], [0], [0], [1], [0, 0, 1, 1], [], []>} : vector<8x32xf32>, vector<32x32xf32>, vector<8x32xf32> -> vector<8x32xf32>
    %199 = vector.broadcast %6 : vector<1x32xf32> to vector<8x32xf32>
    %200 = arith.addf %198, %199 : vector<8x32xf32>
    %201 = arith.mulf %186, %200 : vector<8x32xf32>
    %202 = arith.addf %197, %201 : vector<8x32xf32>
    %203 = math.tanh %202 : vector<8x32xf32>
    %cst_108 = arith.constant 1.000000e+00 : f32
    %204 = vector.broadcast %cst_108 : f32 to vector<8x32xf32>
    %205 = arith.subf %204, %195 : vector<8x32xf32>
    %206 = arith.mulf %205, %203 : vector<8x32xf32>
    %207 = arith.mulf %195, %174 : vector<8x32xf32>
    %208 = arith.addf %206, %207 : vector<8x32xf32>
    %c0_109 = arith.constant 0 : index
    %c5_110 = arith.constant 5 : index
    %c0_111 = arith.constant 0 : index
    %209 = vector.load %arg17[%c0_109, %c5_110, %c0_111] : memref<8x8x32xf32, #tpu.memory_space<vmem>>, vector<8x1x32xf32>
    %210 = vector.shape_cast %209 : vector<8x1x32xf32> to vector<8x32xf32>
    %211 = vector.shape_cast %208 : vector<8x32xf32> to vector<8x1x32xf32>
    tpu.vector_store %arg17[%c0_109, %c5_110, %c0_111], %211 {strides = array<i32>} : memref<8x8x32xf32, #tpu.memory_space<vmem>>, vector<8x1x32xf32>,
    %c0_112 = arith.constant 0 : index
    %c6 = arith.constant 6 : index
    %c0_113 = arith.constant 0 : index
    %212 = vector.load %arg2[%c0_112, %c6, %c0_113] : memref<8x8x32xf32, #tpu.memory_space<vmem>>, vector<8x1x32xf32>
    %213 = vector.shape_cast %212 : vector<8x1x32xf32> to vector<8x32xf32>
    %cst_114 = arith.constant dense<0.000000e+00> : vector<8x32xf32>
    %214 = tpu.matmul %208, %3, %cst_114 {dimension_numbers = #tpu.dot_dimension_numbers<[1], [0], [0], [1], [0, 0, 1, 1], [], []>} : vector<8x32xf32>, vector<32x32xf32>, vector<8x32xf32> -> vector<8x32xf32>
    %215 = arith.addf %213, %214 : vector<8x32xf32>
    %216 = arith.negf %215 : vector<8x32xf32>
    %217 = math.exp %216 : vector<8x32xf32>
    %cst_115 = arith.constant 1.000000e+00 : f32
    %218 = vector.broadcast %cst_115 : f32 to vector<8x32xf32>
    %219 = arith.addf %218, %217 : vector<8x32xf32>
    %220 = arith.divf %218, %219 : vector<8x32xf32>
    %c0_116 = arith.constant 0 : index
    %c6_117 = arith.constant 6 : index
    %c0_118 = arith.constant 0 : index
    %221 = vector.load %arg3[%c0_116, %c6_117, %c0_118] : memref<8x8x32xf32, #tpu.memory_space<vmem>>, vector<8x1x32xf32>
    %222 = vector.shape_cast %221 : vector<8x1x32xf32> to vector<8x32xf32>
    %cst_119 = arith.constant dense<0.000000e+00> : vector<8x32xf32>
    %223 = tpu.matmul %208, %4, %cst_119 {dimension_numbers = #tpu.dot_dimension_numbers<[1], [0], [0], [1], [0, 0, 1, 1], [], []>} : vector<8x32xf32>, vector<32x32xf32>, vector<8x32xf32> -> vector<8x32xf32>
    %224 = arith.addf %222, %223 : vector<8x32xf32>
    %225 = arith.negf %224 : vector<8x32xf32>
    %226 = math.exp %225 : vector<8x32xf32>
    %cst_120 = arith.constant 1.000000e+00 : f32
    %227 = vector.broadcast %cst_120 : f32 to vector<8x32xf32>
    %228 = arith.addf %227, %226 : vector<8x32xf32>
    %229 = arith.divf %227, %228 : vector<8x32xf32>
    %c0_121 = arith.constant 0 : index
    %c6_122 = arith.constant 6 : index
    %c0_123 = arith.constant 0 : index
    %230 = vector.load %arg4[%c0_121, %c6_122, %c0_123] : memref<8x8x32xf32, #tpu.memory_space<vmem>>, vector<8x1x32xf32>
    %231 = vector.shape_cast %230 : vector<8x1x32xf32> to vector<8x32xf32>
    %cst_124 = arith.constant dense<0.000000e+00> : vector<8x32xf32>
    %232 = tpu.matmul %208, %5, %cst_124 {dimension_numbers = #tpu.dot_dimension_numbers<[1], [0], [0], [1], [0, 0, 1, 1], [], []>} : vector<8x32xf32>, vector<32x32xf32>, vector<8x32xf32> -> vector<8x32xf32>
    %233 = vector.broadcast %6 : vector<1x32xf32> to vector<8x32xf32>
    %234 = arith.addf %232, %233 : vector<8x32xf32>
    %235 = arith.mulf %220, %234 : vector<8x32xf32>
    %236 = arith.addf %231, %235 : vector<8x32xf32>
    %237 = math.tanh %236 : vector<8x32xf32>
    %cst_125 = arith.constant 1.000000e+00 : f32
    %238 = vector.broadcast %cst_125 : f32 to vector<8x32xf32>
    %239 = arith.subf %238, %229 : vector<8x32xf32>
    %240 = arith.mulf %239, %237 : vector<8x32xf32>
    %241 = arith.mulf %229, %208 : vector<8x32xf32>
    %242 = arith.addf %240, %241 : vector<8x32xf32>
    %c0_126 = arith.constant 0 : index
    %c6_127 = arith.constant 6 : index
    %c0_128 = arith.constant 0 : index
    %243 = vector.load %arg17[%c0_126, %c6_127, %c0_128] : memref<8x8x32xf32, #tpu.memory_space<vmem>>, vector<8x1x32xf32>
    %244 = vector.shape_cast %243 : vector<8x1x32xf32> to vector<8x32xf32>
    %245 = vector.shape_cast %242 : vector<8x32xf32> to vector<8x1x32xf32>
    tpu.vector_store %arg17[%c0_126, %c6_127, %c0_128], %245 {strides = array<i32>} : memref<8x8x32xf32, #tpu.memory_space<vmem>>, vector<8x1x32xf32>,
    %c0_129 = arith.constant 0 : index
    %c7 = arith.constant 7 : index
    %c0_130 = arith.constant 0 : index
    %246 = vector.load %arg2[%c0_129, %c7, %c0_130] : memref<8x8x32xf32, #tpu.memory_space<vmem>>, vector<8x1x32xf32>
    %247 = vector.shape_cast %246 : vector<8x1x32xf32> to vector<8x32xf32>
    %cst_131 = arith.constant dense<0.000000e+00> : vector<8x32xf32>
    %248 = tpu.matmul %242, %3, %cst_131 {dimension_numbers = #tpu.dot_dimension_numbers<[1], [0], [0], [1], [0, 0, 1, 1], [], []>} : vector<8x32xf32>, vector<32x32xf32>, vector<8x32xf32> -> vector<8x32xf32>
    %249 = arith.addf %247, %248 : vector<8x32xf32>
    %250 = arith.negf %249 : vector<8x32xf32>
    %251 = math.exp %250 : vector<8x32xf32>
    %cst_132 = arith.constant 1.000000e+00 : f32
    %252 = vector.broadcast %cst_132 : f32 to vector<8x32xf32>
    %253 = arith.addf %252, %251 : vector<8x32xf32>
    %254 = arith.divf %252, %253 : vector<8x32xf32>
    %c0_133 = arith.constant 0 : index
    %c7_134 = arith.constant 7 : index
    %c0_135 = arith.constant 0 : index
    %255 = vector.load %arg3[%c0_133, %c7_134, %c0_135] : memref<8x8x32xf32, #tpu.memory_space<vmem>>, vector<8x1x32xf32>
    %256 = vector.shape_cast %255 : vector<8x1x32xf32> to vector<8x32xf32>
    %cst_136 = arith.constant dense<0.000000e+00> : vector<8x32xf32>
    %257 = tpu.matmul %242, %4, %cst_136 {dimension_numbers = #tpu.dot_dimension_numbers<[1], [0], [0], [1], [0, 0, 1, 1], [], []>} : vector<8x32xf32>, vector<32x32xf32>, vector<8x32xf32> -> vector<8x32xf32>
    %258 = arith.addf %256, %257 : vector<8x32xf32>
    %259 = arith.negf %258 : vector<8x32xf32>
    %260 = math.exp %259 : vector<8x32xf32>
    %cst_137 = arith.constant 1.000000e+00 : f32
    %261 = vector.broadcast %cst_137 : f32 to vector<8x32xf32>
    %262 = arith.addf %261, %260 : vector<8x32xf32>
    %263 = arith.divf %261, %262 : vector<8x32xf32>
    %c0_138 = arith.constant 0 : index
    %c7_139 = arith.constant 7 : index
    %c0_140 = arith.constant 0 : index
    %264 = vector.load %arg4[%c0_138, %c7_139, %c0_140] : memref<8x8x32xf32, #tpu.memory_space<vmem>>, vector<8x1x32xf32>
    %265 = vector.shape_cast %264 : vector<8x1x32xf32> to vector<8x32xf32>
    %cst_141 = arith.constant dense<0.000000e+00> : vector<8x32xf32>
    %266 = tpu.matmul %242, %5, %cst_141 {dimension_numbers = #tpu.dot_dimension_numbers<[1], [0], [0], [1], [0, 0, 1, 1], [], []>} : vector<8x32xf32>, vector<32x32xf32>, vector<8x32xf32> -> vector<8x32xf32>
    %267 = vector.broadcast %6 : vector<1x32xf32> to vector<8x32xf32>
    %268 = arith.addf %266, %267 : vector<8x32xf32>
    %269 = arith.mulf %254, %268 : vector<8x32xf32>
    %270 = arith.addf %265, %269 : vector<8x32xf32>
    %271 = math.tanh %270 : vector<8x32xf32>
    %cst_142 = arith.constant 1.000000e+00 : f32
    %272 = vector.broadcast %cst_142 : f32 to vector<8x32xf32>
    %273 = arith.subf %272, %263 : vector<8x32xf32>
    %274 = arith.mulf %273, %271 : vector<8x32xf32>
    %275 = arith.mulf %263, %242 : vector<8x32xf32>
    %276 = arith.addf %274, %275 : vector<8x32xf32>
    %c0_143 = arith.constant 0 : index
    %c7_144 = arith.constant 7 : index
    %c0_145 = arith.constant 0 : index
    %277 = vector.load %arg17[%c0_143, %c7_144, %c0_145] : memref<8x8x32xf32, #tpu.memory_space<vmem>>, vector<8x1x32xf32>
    %278 = vector.shape_cast %277 : vector<8x1x32xf32> to vector<8x32xf32>
    %279 = vector.shape_cast %276 : vector<8x32xf32> to vector<8x1x32xf32>
    tpu.vector_store %arg17[%c0_143, %c7_144, %c0_145], %279 {strides = array<i32>} : memref<8x8x32xf32, #tpu.memory_space<vmem>>, vector<8x1x32xf32>,
    %c0_146 = arith.constant 0 : index
    %c0_147 = arith.constant 0 : index
    %280 = vector.load %arg16[%c0_146, %c0_147] : memref<8x32xf32, #tpu.memory_space<vmem>>, vector<8x32xf32>
    tpu.vector_store %arg16[%c0_146, %c0_147], %276 {strides = array<i32>} : memref<8x32xf32, #tpu.memory_space<vmem>>, vector<8x32xf32>,
    %c0_148 = arith.constant 0 : index
    %c0_149 = arith.constant 0 : index
    %281 = vector.load %arg15[%c0_148, %c0_149] : memref<8x32xf32, #tpu.memory_space<vmem>>, vector<8x32xf32>
    tpu.vector_store %arg15[%c0_148, %c0_149], %276 {strides = array<i32>} : memref<8x32xf32, #tpu.memory_space<vmem>>, vector<8x32xf32>,
    %c0_150 = arith.constant 0 : index
    %c0_151 = arith.constant 0 : index
    %c0_152 = arith.constant 0 : index
    %282 = vector.load %arg17[%c0_150, %c0_151, %c0_152] : memref<8x8x32xf32, #tpu.memory_space<vmem>>, vector<8x8x32xf32>
    %283 = vector.shape_cast %282 : vector<8x8x32xf32> to vector<64x32xf32>
    %c0_153 = arith.constant 0 : index
    %c0_154 = arith.constant 0 : index
    %284 = vector.load %arg10[%c0_153, %c0_154] : memref<32x32xf32, #tpu.memory_space<vmem>>, vector<32x32xf32>
    %cst_155 = arith.constant dense<0.000000e+00> : vector<64x32xf32>
    %285 = tpu.matmul %283, %284, %cst_155 {dimension_numbers = #tpu.dot_dimension_numbers<[1], [0], [0], [1], [0, 0, 1, 1], [], []>} : vector<64x32xf32>, vector<32x32xf32>, vector<64x32xf32> -> vector<64x32xf32>
    %c0_156 = arith.constant 0 : index
    %c0_157 = arith.constant 0 : index
    %286 = vector.load %arg11[%c0_156, %c0_157] : memref<1x32xf32, #tpu.memory_space<vmem>>, vector<1x32xf32>
    %287 = vector.broadcast %286 : vector<1x32xf32> to vector<64x32xf32>
    %288 = arith.addf %285, %287 : vector<64x32xf32>
    %cst_158 = arith.constant 0.000000e+00 : f32
    %289 = vector.broadcast %cst_158 : f32 to vector<64x32xf32>
    %290 = arith.cmpf oge, %288, %289 : vector<64x32xf32>
    %cst_159 = arith.constant 0.00999999977 : f32
    %291 = vector.broadcast %cst_159 : f32 to vector<64x32xf32>
    %292 = arith.mulf %291, %288 : vector<64x32xf32>
    %293 = arith.select %290, %288, %292 : vector<64x32xi1>, vector<64x32xf32>
    %c0_160 = arith.constant 0 : index
    %c0_161 = arith.constant 0 : index
    %294 = vector.load %arg12[%c0_160, %c0_161] : memref<32x1xf32, #tpu.memory_space<vmem>>, vector<32x1xf32>
    %cst_162 = arith.constant dense<0.000000e+00> : vector<64x1xf32>
    %295 = tpu.matmul %293, %294, %cst_162 {dimension_numbers = #tpu.dot_dimension_numbers<[1], [0], [0], [1], [0, 0, 1, 1], [], []>} : vector<64x32xf32>, vector<32x1xf32>, vector<64x1xf32> -> vector<64x1xf32>
    %c0_163 = arith.constant 0 : index
    %c0_164 = arith.constant 0 : index
    %296 = vector.load %arg13[%c0_163, %c0_164] : memref<1x1xf32, #tpu.memory_space<vmem>>, vector<1x1xf32>
    %297 = vector.broadcast %296 : vector<1x1xf32> to vector<64x1xf32>
    %298 = arith.addf %295, %297 : vector<64x1xf32>
    %299 = vector.shape_cast %298 : vector<64x1xf32> to vector<8x8x1xf32>
    %c0_165 = arith.constant 0 : index
    %c0_166 = arith.constant 0 : index
    %c0_167 = arith.constant 0 : index
    %300 = vector.load %arg14[%c0_165, %c0_166, %c0_167] : memref<8x8x1xf32, #tpu.memory_space<vmem>>, vector<8x8x1xf32>
    tpu.vector_store %arg14[%c0_165, %c0_166, %c0_167], %299 {strides = array<i32>} : memref<8x8x1xf32, #tpu.memory_space<vmem>>, vector<8x8x1xf32>,
    return
  }
  func.func @transform_0(%arg0: i32, %arg1: i32) -> (i32, i32, i32) {
    %c0_i32 = arith.constant 0 : i32
    %c0_i32_0 = arith.constant 0 : i32
    return %arg0, %arg1, %c0_i32 : i32, i32, i32
  }
  func.func @transform_1(%arg0: i32, %arg1: i32) -> (i32, i32, i32) {
    %c0_i32 = arith.constant 0 : i32
    %c0_i32_0 = arith.constant 0 : i32
    return %arg0, %arg1, %c0_i32 : i32, i32, i32
  }
  func.func @transform_2(%arg0: i32, %arg1: i32) -> (i32, i32, i32) {
    %c0_i32 = arith.constant 0 : i32
    %c0_i32_0 = arith.constant 0 : i32
    return %arg0, %arg1, %c0_i32 : i32, i32, i32
  }
  func.func @transform_3(%arg0: i32, %arg1: i32) -> (i32, i32) {
    %c0_i32 = arith.constant 0 : i32
    %c0_i32_0 = arith.constant 0 : i32
    return %arg0, %c0_i32 : i32, i32
  }
  func.func @transform_4(%arg0: i32, %arg1: i32) -> (i32, i32) {
    %c0_i32 = arith.constant 0 : i32
    %c0_i32_0 = arith.constant 0 : i32
    %c0_i32_1 = arith.constant 0 : i32
    return %c0_i32, %c0_i32_0 : i32, i32
  }
  func.func @transform_5(%arg0: i32, %arg1: i32) -> (i32, i32) {
    %c0_i32 = arith.constant 0 : i32
    %c0_i32_0 = arith.constant 0 : i32
    %c0_i32_1 = arith.constant 0 : i32
    return %c0_i32, %c0_i32_0 : i32, i32
  }
  func.func @transform_6(%arg0: i32, %arg1: i32) -> (i32, i32) {
    %c0_i32 = arith.constant 0 : i32
    %c0_i32_0 = arith.constant 0 : i32
    %c0_i32_1 = arith.constant 0 : i32
    return %c0_i32, %c0_i32_0 : i32, i32
  }
  func.func @transform_7(%arg0: i32, %arg1: i32) -> (i32, i32) {
    %c0_i32 = arith.constant 0 : i32
    %c0_i32_0 = arith.constant 0 : i32
    %c0_i32_1 = arith.constant 0 : i32
    return %c0_i32, %c0_i32_0 : i32, i32
  }
  func.func @transform_8(%arg0: i32, %arg1: i32) -> (i32, i32) {
    %c0_i32 = arith.constant 0 : i32
    %c0_i32_0 = arith.constant 0 : i32
    %c0_i32_1 = arith.constant 0 : i32
    return %c0_i32, %c0_i32_0 : i32, i32
  }
  func.func @transform_9(%arg0: i32, %arg1: i32) -> (i32, i32) {
    %c0_i32 = arith.constant 0 : i32
    %c0_i32_0 = arith.constant 0 : i32
    %c0_i32_1 = arith.constant 0 : i32
    return %c0_i32, %c0_i32_0 : i32, i32
  }
  func.func @transform_10(%arg0: i32, %arg1: i32) -> (i32, i32) {
    %c0_i32 = arith.constant 0 : i32
    %c0_i32_0 = arith.constant 0 : i32
    %c0_i32_1 = arith.constant 0 : i32
    return %c0_i32, %c0_i32_0 : i32, i32
  }
  func.func @transform_11(%arg0: i32, %arg1: i32) -> (i32, i32) {
    %c0_i32 = arith.constant 0 : i32
    %c0_i32_0 = arith.constant 0 : i32
    %c0_i32_1 = arith.constant 0 : i32
    return %c0_i32, %c0_i32_0 : i32, i32
  }
  func.func @transform_12(%arg0: i32, %arg1: i32) -> (i32, i32, i32) {
    %c0_i32 = arith.constant 0 : i32
    %c0_i32_0 = arith.constant 0 : i32
    return %arg0, %arg1, %c0_i32 : i32, i32, i32
  }
  func.func @transform_13(%arg0: i32, %arg1: i32) -> (i32, i32) {
    %c0_i32 = arith.constant 0 : i32
    %c0_i32_0 = arith.constant 0 : i32
    return %arg0, %c0_i32 : i32, i32
  }
}

</mosaic_0001>

<llo_original>
// kernel: rec_critic_forward.2
$region0: #{rec_critic_forward.2}
  #allocation0 [shape = 'u32[]', space=smem, size = 0x4, offset = 0x4, fixed_abs, tag = 'smem constant byte address 0x4 - core index']
  #allocation1 [shape = 'u32[72,128]{1,0:T(1,128)}', space=vmem, size = 0x9000, scoped, tag = 'internal scratch']
  %s0 = inlined_call_operand.vmem [shape: f32[64,16], index: 0, kind: input, shape index: {}]
  %s1 = inlined_call_operand.hbm [shape: f32[16,32], index: 1, kind: input, shape index: {}]
  %s2 = inlined_call_operand.vmem [shape: f32[1,32], index: 2, kind: input, shape index: {}]
  %s3 = inlined_call_operand.vmem [shape: f32[32,32], index: 3, kind: input, shape index: {}]
  %s4 = inlined_call_operand.vmem [shape: f32[32,32], index: 4, kind: input, shape index: {}]
  %s5 = inlined_call_operand.vmem [shape: f32[32,32], index: 5, kind: input, shape index: {}]
  %s6 = inlined_call_operand.vmem [shape: f32[1,32], index: 6, kind: input, shape index: {}]
  %s7 = inlined_call_operand.vmem [shape: f32[1,32], index: 7, kind: input, shape index: {}]
  %s8 = inlined_call_operand.hbm [shape: f32[1,32], index: 8, kind: input, shape index: {}]
  %s9 = inlined_call_operand.vmem [shape: f32[64,32], index: 9, kind: output, shape index: {0}]
  %s10 = inlined_call_operand.vmem [shape: f32[64,32], index: 10, kind: output, shape index: {1}]
  %s11 = inlined_call_operand.vmem [shape: f32[64,32], index: 11, kind: output, shape index: {2}]
  %12 = xla_tuple %s9, %s10, %s11
  %s13 = sld [smem:[#allocation0]]
  $region70: #{rec_critic_forward.2} parent=0
    _
  %s15 = ssub.s32 1, %s13
  %s16 = scalar_select 0, %s15, %s13
  $region1: #{rec_critic_forward.2} parent=0
    #allocation2 [shape = 'u8[8192]{0}', space=vmem, size = 0x2000, scoped, tag = 'input window, operand 1, single buffered']
    #allocation3 [shape = 's32[1]{0}', space=sflag, size = 0x4, scoped, tag = 'scoped memory for rec_critic_forward.2']
    #allocation4 [shape = 'u8[512]{0}', space=vmem, size = 0x400, scoped, tag = 'input window, operand 8, single buffered']
    #allocation5 [shape = 's32[1]{0}', space=sflag, size = 0x4, scoped, tag = 'scoped memory for rec_critic_forward.2']
    %17 = vsyncpa [#allocation3], 0
    %18 = vsyncpa [#allocation5], 0
    // Predicated region
    $region2: #{rec_critic_forward.2} parent=1 // pred_check
      _
    $region3: #{rec_critic_forward.2} parent=1 // pred_check_branch
      %20 = sbr.rel (0) target = $region5
    $region4: #{rec_critic_forward.2} parent=1 // pred_region
      _
    $region5: #{rec_critic_forward.2} parent=1 // pred_fallthru
      _
    // Predicated region
    $region6: #{rec_critic_forward.2} parent=1 // pred_check
      _
    $region7: #{rec_critic_forward.2} parent=1 // pred_check_branch
      %22 = sbr.rel (0) target = $region9
    $region8: #{rec_critic_forward.2} parent=1 // pred_region
      %24 = vsyncadd [#allocation3], 0
      %s25 = sshll.u32 %s1, 4
      %s26 = int_to_ptr.hbm [resolvable:$true] %s25
      %s27 = sshll.u32 [#allocation2], 4
      %s28 = int_to_ptr.vmem [resolvable:$true] %s27
      %33 = dma.hbm_to_vmem [thread:$0]  %s26, 256, %s28, [#allocation3], 128, 128, 8
    $region9: #{rec_critic_forward.2} parent=1 // pred_fallthru
      _
    // Predicated region
    $region10: #{rec_critic_forward.2} parent=1 // pred_check
      _
    $region11: #{rec_critic_forward.2} parent=1 // pred_check_branch
      %35 = sbr.rel (0) target = $region13
    $region12: #{rec_critic_forward.2} parent=1 // pred_region
      _
    $region13: #{rec_critic_forward.2} parent=1 // pred_fallthru
      _
    // Predicated region
    $region14: #{rec_critic_forward.2} parent=1 // pred_check
      _
    $region15: #{rec_critic_forward.2} parent=1 // pred_check_branch
      %37 = sbr.rel (0) target = $region17
    $region16: #{rec_critic_forward.2} parent=1 // pred_region
      _
    $region17: #{rec_critic_forward.2} parent=1 // pred_fallthru
      _
    // Predicated region
    $region18: #{rec_critic_forward.2} parent=1 // pred_check
      _
    $region19: #{rec_critic_forward.2} parent=1 // pred_check_branch
      %39 = sbr.rel (0) target = $region21
    $region20: #{rec_critic_forward.2} parent=1 // pred_region
      _
    $region21: #{rec_critic_forward.2} parent=1 // pred_fallthru
      _
    // Predicated region
    $region22: #{rec_critic_forward.2} parent=1 // pred_check
      _
    $region23: #{rec_critic_forward.2} parent=1 // pred_check_branch
      %41 = sbr.rel (0) target = $region25
    $region24: #{rec_critic_forward.2} parent=1 // pred_region
      _
    $region25: #{rec_critic_forward.2} parent=1 // pred_fallthru
      _
    // Predicated region
    $region26: #{rec_critic_forward.2} parent=1 // pred_check
      _
    $region27: #{rec_critic_forward.2} parent=1 // pred_check_branch
      %43 = sbr.rel (0) target = $region29
    $region28: #{rec_critic_forward.2} parent=1 // pred_region
      _
    $region29: #{rec_critic_forward.2} parent=1 // pred_fallthru
      _
    // Predicated region
    $region30: #{rec_critic_forward.2} parent=1 // pred_check
      _
    $region31: #{rec_critic_forward.2} parent=1 // pred_check_branch
      %45 = sbr.rel (0) target = $region33
    $region32: #{rec_critic_forward.2} parent=1 // pred_region
      _
    $region33: #{rec_critic_forward.2} parent=1 // pred_fallthru
      _
    // Predicated region
    $region34: #{rec_critic_forward.2} parent=1 // pred_check
      _
    $region35: #{rec_critic_forward.2} parent=1 // pred_check_branch
      %47 = sbr.rel (0) target = $region37
    $region36: #{rec_critic_forward.2} parent=1 // pred_region
      %49 = vsyncadd [#allocation5], 0
      %s51 = sshll.u32 %s8, 4
      %s52 = int_to_ptr.hbm [resolvable:$true] %s51
      %s53 = sshll.u32 [#allocation4], 4
      %s54 = int_to_ptr.vmem [resolvable:$true] %s53
      %56 = dma.hbm_to_vmem [thread:$0]  %s52, 16, %s54, [#allocation5]
    $region37: #{rec_critic_forward.2} parent=1 // pred_fallthru
      _
    // Predicated region
    $region38: #{rec_critic_forward.2} parent=1 // pred_check
      _
    $region39: #{rec_critic_forward.2} parent=1 // pred_check_branch
      %58 = sbr.rel (0) target = $region41
    $region40: #{rec_critic_forward.2} parent=1 // pred_region
      %60 = dma.done [#allocation3], 256
    $region41: #{rec_critic_forward.2} parent=1 // pred_fallthru
      _
    // Predicated region
    $region42: #{rec_critic_forward.2} parent=1 // pred_check
      _
    $region43: #{rec_critic_forward.2} parent=1 // pred_check_branch
      %62 = sbr.rel (0) target = $region45
    $region44: #{rec_critic_forward.2} parent=1 // pred_region
      %64 = dma.done [#allocation5], 16
    $region45: #{rec_critic_forward.2} parent=1 // pred_fallthru
      _
    %v65 = vld [vmem:[%s0] sm:$0xff]
    %v66 = vld [vmem:[%s0 + $0x8] sm:$0xff]
    %v67 = vld [vmem:[%s0 + $0x10] sm:$0xff]
    %v68 = vld [vmem:[%s0 + $0x18] sm:$0xff]
    %v69 = vld [vmem:[%s0 + $0x20] sm:$0xff]
    %v70 = vld [vmem:[%s0 + $0x28] sm:$0xff]
    %v71 = vld [vmem:[%s0 + $0x30] sm:$0xff]
    %v72 = vld [vmem:[%s0 + $0x38] sm:$0xff]
    %v73 = vld [vmem:[#allocation2] sm:$0xff]
    %v74 = vld [vmem:[#allocation2 + $0x8] sm:$0xff]
    %v75 = vld [vmem:[%s2] sm:$0x1]
    %v77 = vperm.slane %v75, 0
    %vm79 = vcmask 130048
    %v81 = vsel %vm79, %v65, 0
    %v84 = vsel %vm79, %v66, 0
    %v87 = vsel %vm79, %v67, 0
    %v90 = vsel %vm79, %v68, 0
    %v93 = vsel %vm79, %v69, 0
    %v96 = vsel %vm79, %v70, 0
    %v99 = vsel %vm79, %v71, 0
    %v102 = vsel %vm79, %v72, 0
    %104 = vmatpush.msra.mxu0 0.0
    %105 = vmatpush.msra.mxu0 0.0
    %106 = vmatpush.msra.mxu0 0.0
    %107 = vmatpush.msra.mxu0 0.0
    %108 = vmatpush.msra.mxu0 0.0
    %109 = vmatpush.msra.mxu0 0.0
    %110 = vmatpush.msra.mxu0 0.0
    %111 = vmatpush.msra.mxu0 0.0
    %112 = vmatpush.msra.mxu0 0.0
    %113 = vmatpush.msra.mxu0 0.0
    %114 = vmatpush.msra.mxu0 0.0
    %115 = vmatpush.msra.mxu0 0.0
    %116 = vmatpush.msra.mxu0 0.0
    %117 = vmatpush.msra.mxu0 0.0
    %118 = vmatpush.msra.mxu0 %v74
    %119 = vmatpush.msra.mxu0 %v73
    %120 = vmatmul.f32.gmra.mxu0 %v81
    %v121 = vpop.f32.mrf.mxu0
    %v122 = vadd.f32 %v77, %v121
    %123 = vmatmul.f32.gmra.mxu0 %v84
    %v124 = vpop.f32.mrf.mxu0
    %v125 = vadd.f32 %v77, %v124
    %126 = vmatmul.f32.gmra.mxu0 %v87
    %v127 = vpop.f32.mrf.mxu0
    %v128 = vadd.f32 %v77, %v127
    %129 = vmatmul.f32.gmra.mxu0 %v90
    %v130 = vpop.f32.mrf.mxu0
    %v131 = vadd.f32 %v77, %v130
    %132 = vmatmul.f32.gmra.mxu0 %v93
    %v133 = vpop.f32.mrf.mxu0
    %v134 = vadd.f32 %v77, %v133
    %135 = vmatmul.f32.gmra.mxu0 %v96
    %v136 = vpop.f32.mrf.mxu0
    %v137 = vadd.f32 %v77, %v136
    %138 = vmatmul.f32.gmra.mxu0 %v99
    %v139 = vpop.f32.mrf.mxu0
    %v140 = vadd.f32 %v77, %v139
    %141 = vmatmul.f32.gmra.mxu0 %v102
    %v142 = vpop.f32.mrf.mxu0
    %v143 = vadd.f32 %v77, %v142
    %144 = vdwg.mxu0
    %vm145 = vcmp.ge.f32.partialorder %v122, 0.0
    %vm146 = vcmp.ge.f32.partialorder %v125, 0.0
    %vm147 = vcmp.ge.f32.partialorder %v128, 0.0
    %vm148 = vcmp.ge.f32.partialorder %v131, 0.0
    %vm149 = vcmp.ge.f32.partialorder %v134, 0.0
    %vm150 = vcmp.ge.f32.partialorder %v137, 0.0
    %vm151 = vcmp.ge.f32.partialorder %v140, 0.0
    %vm152 = vcmp.ge.f32.partialorder %v143, 0.0
    %v153 = vmul.f32 %v122, 0.01
    %v154 = vmul.f32 %v125, 0.01
    %v155 = vmul.f32 %v128, 0.01
    %v156 = vmul.f32 %v131, 0.01
    %v157 = vmul.f32 %v134, 0.01
    %v158 = vmul.f32 %v137, 0.01
    %v159 = vmul.f32 %v140, 0.01
    %v160 = vmul.f32 %v143, 0.01
    %v161 = vsel %vm145, %v122, %v153
    %v162 = vsel %vm146, %v125, %v154
    %v163 = vsel %vm147, %v128, %v155
    %v164 = vsel %vm148, %v131, %v156
    %v165 = vsel %vm149, %v134, %v157
    %v166 = vsel %vm150, %v137, %v158
    %v167 = vsel %vm151, %v140, %v159
    %v168 = vsel %vm152, %v143, %v160
    %v169 = vld [vmem:[%s3] sm:$0xff]
    %v170 = vld [vmem:[%s3 + $0x8] sm:$0xff]
    %v171 = vld [vmem:[%s3 + $0x10] sm:$0xff]
    %v172 = vld [vmem:[%s3 + $0x18] sm:$0xff]
    %v173 = vld [vmem:[%s6] sm:$0x1]
    %v175 = vperm.slane %v173, 0
    %vm177 = vcmask 261120
    %v179 = vsel %vm177, %v161, 0
    %v182 = vsel %vm177, %v162, 0
    %v185 = vsel %vm177, %v163, 0
    %v188 = vsel %vm177, %v164, 0
    %v191 = vsel %vm177, %v165, 0
    %v194 = vsel %vm177, %v166, 0
    %v197 = vsel %vm177, %v167, 0
    %v200 = vsel %vm177, %v168, 0
    %202 = vmatpush.msra.mxu0 0.0
    %203 = vmatpush.msra.mxu0 0.0
    %204 = vmatpush.msra.mxu0 0.0
    %205 = vmatpush.msra.mxu0 0.0
    %206 = vmatpush.msra.mxu0 0.0
    %207 = vmatpush.msra.mxu0 0.0
    %208 = vmatpush.msra.mxu0 0.0
    %209 = vmatpush.msra.mxu0 0.0
    %210 = vmatpush.msra.mxu0 0.0
    %211 = vmatpush.msra.mxu0 0.0
    %212 = vmatpush.msra.mxu0 0.0
    %213 = vmatpush.msra.mxu0 0.0
    %214 = vmatpush.msra.mxu0 %v172
    %215 = vmatpush.msra.mxu0 %v171
    %216 = vmatpush.msra.mxu0 %v170
    %217 = vmatpush.msra.mxu0 %v169
    %218 = vmatmul.f32.gmra.mxu0 %v179
    %v219 = vpop.f32.mrf.mxu0
    %v220 = vadd.f32 %v175, %v219
    %221 = vmatmul.f32.gmra.mxu0 %v182
    %v222 = vpop.f32.mrf.mxu0
    %v223 = vadd.f32 %v175, %v222
    %224 = vmatmul.f32.gmra.mxu0 %v185
    %v225 = vpop.f32.mrf.mxu0
    %v226 = vadd.f32 %v175, %v225
    %227 = vmatmul.f32.gmra.mxu0 %v188
    %v228 = vpop.f32.mrf.mxu0
    %v229 = vadd.f32 %v175, %v228
    %230 = vmatmul.f32.gmra.mxu0 %v191
    %v231 = vpop.f32.mrf.mxu0
    %v232 = vadd.f32 %v175, %v231
    %233 = vmatmul.f32.gmra.mxu0 %v194
    %v234 = vpop.f32.mrf.mxu0
    %v235 = vadd.f32 %v175, %v234
    %236 = vmatmul.f32.gmra.mxu0 %v197
    %v237 = vpop.f32.mrf.mxu0
    %v238 = vadd.f32 %v175, %v237
    %239 = vmatmul.f32.gmra.mxu0 %v200
    %v240 = vpop.f32.mrf.mxu0
    %v241 = vadd.f32 %v175, %v240
    %242 = vdwg.mxu0
    %243 = vst.msk [vmem:[%s9] sm:$0xff] %vm177, %v220
    %244 = vst.msk [vmem:[%s9 + $0x8] sm:$0xff] %vm177, %v223
    %245 = vst.msk [vmem:[%s9 + $0x10] sm:$0xff] %vm177, %v226
    %246 = vst.msk [vmem:[%s9 + $0x18] sm:$0xff] %vm177, %v229
    %247 = vst.msk [vmem:[%s9 + $0x20] sm:$0xff] %vm177, %v232
    %248 = vst.msk [vmem:[%s9 + $0x28] sm:$0xff] %vm177, %v235
    %249 = vst.msk [vmem:[%s9 + $0x30] sm:$0xff] %vm177, %v238
    %250 = vst.msk [vmem:[%s9 + $0x38] sm:$0xff] %vm177, %v241
    %v251 = vld [vmem:[%s4] sm:$0xff]
    %v252 = vld [vmem:[%s4 + $0x8] sm:$0xff]
    %v253 = vld [vmem:[%s4 + $0x10] sm:$0xff]
    %v254 = vld [vmem:[%s4 + $0x18] sm:$0xff]
    %v255 = vld [vmem:[%s7] sm:$0x1]
    %v257 = vperm.slane %v255, 0
    %259 = vmatpush.msra.mxu0 0.0
    %260 = vmatpush.msra.mxu0 0.0
    %261 = vmatpush.msra.mxu0 0.0
    %262 = vmatpush.msra.mxu0 0.0
    %263 = vmatpush.msra.mxu0 0.0
    %264 = vmatpush.msra.mxu0 0.0
    %265 = vmatpush.msra.mxu0 0.0
    %266 = vmatpush.msra.mxu0 0.0
    %267 = vmatpush.msra.mxu0 0.0
    %268 = vmatpush.msra.mxu0 0.0
    %269 = vmatpush.msra.mxu0 0.0
    %270 = vmatpush.msra.mxu0 0.0
    %271 = vmatpush.msra.mxu0 %v254
    %272 = vmatpush.msra.mxu0 %v253
    %273 = vmatpush.msra.mxu0 %v252
    %274 = vmatpush.msra.mxu0 %v251
    %275 = vmatmul.f32.gmra.mxu0 %v179
    %v276 = vpop.f32.mrf.mxu0
    %v277 = vadd.f32 %v257, %v276
    %278 = vmatmul.f32.gmra.mxu0 %v182
    %v279 = vpop.f32.mrf.mxu0
    %v280 = vadd.f32 %v257, %v279
    %281 = vmatmul.f32.gmra.mxu0 %v185
    %v282 = vpop.f32.mrf.mxu0
    %v283 = vadd.f32 %v257, %v282
    %284 = vmatmul.f32.gmra.mxu0 %v188
    %v285 = vpop.f32.mrf.mxu0
    %v286 = vadd.f32 %v257, %v285
    %287 = vmatmul.f32.gmra.mxu0 %v191
    %v288 = vpop.f32.mrf.mxu0
    %v289 = vadd.f32 %v257, %v288
    %290 = vmatmul.f32.gmra.mxu0 %v194
    %v291 = vpop.f32.mrf.mxu0
    %v292 = vadd.f32 %v257, %v291
    %293 = vmatmul.f32.gmra.mxu0 %v197
    %v294 = vpop.f32.mrf.mxu0
    %v295 = vadd.f32 %v257, %v294
    %296 = vmatmul.f32.gmra.mxu0 %v200
    %v297 = vpop.f32.mrf.mxu0
    %v298 = vadd.f32 %v257, %v297
    %299 = vdwg.mxu0
    %300 = vst.msk [vmem:[%s10] sm:$0xff] %vm177, %v277
    %301 = vst.msk [vmem:[%s10 + $0x8] sm:$0xff] %vm177, %v280
    %302 = vst.msk [vmem:[%s10 + $0x10] sm:$0xff] %vm177, %v283
    %303 = vst.msk [vmem:[%s10 + $0x18] sm:$0xff] %vm177, %v286
    %304 = vst.msk [vmem:[%s10 + $0x20] sm:$0xff] %vm177, %v289
    %305 = vst.msk [vmem:[%s10 + $0x28] sm:$0xff] %vm177, %v292
    %306 = vst.msk [vmem:[%s10 + $0x30] sm:$0xff] %vm177, %v295
    %307 = vst.msk [vmem:[%s10 + $0x38] sm:$0xff] %vm177, %v298
    %v308 = vld [vmem:[%s5] sm:$0xff]
    %v309 = vld [vmem:[%s5 + $0x8] sm:$0xff]
    %v310 = vld [vmem:[%s5 + $0x10] sm:$0xff]
    %v311 = vld [vmem:[%s5 + $0x18] sm:$0xff]
    %v312 = vld [vmem:[#allocation4] sm:$0x1]
    %v314 = vperm.slane %v312, 0
    %316 = vmatpush.msra.mxu0 0.0
    %317 = vmatpush.msra.mxu0 0.0
    %318 = vmatpush.msra.mxu0 0.0
    %319 = vmatpush.msra.mxu0 0.0
    %320 = vmatpush.msra.mxu0 0.0
    %321 = vmatpush.msra.mxu0 0.0
    %322 = vmatpush.msra.mxu0 0.0
    %323 = vmatpush.msra.mxu0 0.0
    %324 = vmatpush.msra.mxu0 0.0
    %325 = vmatpush.msra.mxu0 0.0
    %326 = vmatpush.msra.mxu0 0.0
    %327 = vmatpush.msra.mxu0 0.0
    %328 = vmatpush.msra.mxu0 %v311
    %329 = vmatpush.msra.mxu0 %v310
    %330 = vmatpush.msra.mxu0 %v309
    %331 = vmatpush.msra.mxu0 %v308
    %332 = vmatmul.f32.gmra.mxu0 %v179
    %v333 = vpop.f32.mrf.mxu0
    %v334 = vadd.f32 %v314, %v333
    %335 = vmatmul.f32.gmra.mxu0 %v182
    %v336 = vpop.f32.mrf.mxu0
    %v337 = vadd.f32 %v314, %v336
    %338 = vmatmul.f32.gmra.mxu0 %v185
    %v339 = vpop.f32.mrf.mxu0
    %v340 = vadd.f32 %v314, %v339
    %341 = vmatmul.f32.gmra.mxu0 %v188
    %v342 = vpop.f32.mrf.mxu0
    %v343 = vadd.f32 %v314, %v342
    %344 = vmatmul.f32.gmra.mxu0 %v191
    %v345 = vpop.f32.mrf.mxu0
    %v346 = vadd.f32 %v314, %v345
    %347 = vmatmul.f32.gmra.mxu0 %v194
    %v348 = vpop.f32.mrf.mxu0
    %v349 = vadd.f32 %v314, %v348
    %350 = vmatmul.f32.gmra.mxu0 %v197
    %v351 = vpop.f32.mrf.mxu0
    %v352 = vadd.f32 %v314, %v351
    %353 = vmatmul.f32.gmra.mxu0 %v200
    %v354 = vpop.f32.mrf.mxu0
    %v355 = vadd.f32 %v314, %v354
    %356 = vdwg.mxu0
    %357 = vst.msk [vmem:[%s11] sm:$0xff] %vm177, %v334
    %358 = vst.msk [vmem:[%s11 + $0x8] sm:$0xff] %vm177, %v337
    %359 = vst.msk [vmem:[%s11 + $0x10] sm:$0xff] %vm177, %v340
    %360 = vst.msk [vmem:[%s11 + $0x18] sm:$0xff] %vm177, %v343
    %361 = vst.msk [vmem:[%s11 + $0x20] sm:$0xff] %vm177, %v346
    %362 = vst.msk [vmem:[%s11 + $0x28] sm:$0xff] %vm177, %v349
    %363 = vst.msk [vmem:[%s11 + $0x30] sm:$0xff] %vm177, %v352
    %364 = vst.msk [vmem:[%s11 + $0x38] sm:$0xff] %vm177, %v355
    // Predicated region
    $region46: #{rec_critic_forward.2} parent=1 // pred_check
      _
    $region47: #{rec_critic_forward.2} parent=1 // pred_check_branch
      %366 = sbr.rel (0) target = $region49
    $region48: #{rec_critic_forward.2} parent=1 // pred_region
      _
    $region49: #{rec_critic_forward.2} parent=1 // pred_fallthru
      _
    // Predicated region
    $region50: #{rec_critic_forward.2} parent=1 // pred_check
      _
    $region51: #{rec_critic_forward.2} parent=1 // pred_check_branch
      %368 = sbr.rel (0) target = $region53
    $region52: #{rec_critic_forward.2} parent=1 // pred_region
      _
    $region53: #{rec_critic_forward.2} parent=1 // pred_fallthru
      _
    // Predicated region
    $region54: #{rec_critic_forward.2} parent=1 // pred_check
      _
    $region55: #{rec_critic_forward.2} parent=1 // pred_check_branch
      %370 = sbr.rel (0) target = $region57
    $region56: #{rec_critic_forward.2} parent=1 // pred_region
      _
    $region57: #{rec_critic_forward.2} parent=1 // pred_fallthru
      _
    // Predicated region
    $region58: #{rec_critic_forward.2} parent=1 // pred_check
      _
    $region59: #{rec_critic_forward.2} parent=1 // pred_check_branch
      %372 = sbr.rel (0) target = $region61
    $region60: #{rec_critic_forward.2} parent=1 // pred_region
      _
    $region61: #{rec_critic_forward.2} parent=1 // pred_fallthru
      _
    // Predicated region
    $region62: #{rec_critic_forward.2} parent=1 // pred_check
      _
    $region63: #{rec_critic_forward.2} parent=1 // pred_check_branch
      %374 = sbr.rel (0) target = $region65
    $region64: #{rec_critic_forward.2} parent=1 // pred_region
      _
    $region65: #{rec_critic_forward.2} parent=1 // pred_fallthru
      _
    // Predicated region
    $region66: #{rec_critic_forward.2} parent=1 // pred_check
      _
    $region67: #{rec_critic_forward.2} parent=1 // pred_check_branch
      %376 = sbr.rel (0) target = $region69
    $region68: #{rec_critic_forward.2} parent=1 // pred_region
      _
    $region69: #{rec_critic_forward.2} parent=1 // pred_fallthru
      _
    %377 = vsyncpa [#allocation3], 1
    %378 = vsyncpa [#allocation5], 1

// kernel: rec_critic_forward.3
$region0: #{rec_critic_forward.3}
  #allocation0 [shape = 'u32[]', space=smem, size = 0x4, offset = 0x4, fixed_abs, tag = 'smem constant byte address 0x4 - core index']
  #allocation1 [shape = 'u32[72,128]{1,0:T(1,128)}', space=vmem, size = 0x9000, scoped, tag = 'internal scratch']
  #allocation2 [shape = 'f32[8,32]{1,0:T(8,128)}', space=vmem, size = 0x1000, scoped, tag = 'scratch operand']
  #allocation3 [shape = 'f32[8,8,32]{2,1,0:T(8,128)}', space=vmem, size = 0x8000, scoped, tag = 'scratch operand']
  #allocation4 [shape = 'f32[1,1]{1,0:T(1,128)S(1)}', space=vmem, size = 0x200, scoped, tag = 'scoped memory for rec_critic_forward.3']
  %s0 = inlined_call_operand.vmem [shape: f32[8,8,32], index: 0, kind: input, shape index: {}]
  %s1 = inlined_call_operand.vmem [shape: f32[8,8,32], index: 1, kind: input, shape index: {}]
  %s2 = inlined_call_operand.vmem [shape: f32[8,8,32], index: 2, kind: input, shape index: {}]
  %s3 = inlined_call_operand.vmem [shape: f32[8,32], index: 3, kind: input, shape index: {}]
  %s4 = inlined_call_operand.hbm [shape: f32[32,32], index: 4, kind: input, shape index: {}]
  %s5 = inlined_call_operand.hbm [shape: f32[32,32], index: 5, kind: input, shape index: {}]
  %s6 = inlined_call_operand.hbm [shape: f32[32,32], index: 6, kind: input, shape index: {}]
  %s7 = inlined_call_operand.vmem [shape: f32[1,32], index: 7, kind: input, shape index: {}]
  %s8 = inlined_call_operand.hbm [shape: f32[32,32], index: 8, kind: input, shape index: {}]
  %s9 = inlined_call_operand.vmem [shape: f32[1,32], index: 9, kind: input, shape index: {}]
  %s10 = inlined_call_operand.vmem [shape: f32[32,1], index: 10, kind: input, shape index: {}]
  %s11 = inlined_call_operand.<no memory space> [shape: f32[1,1], index: 11, kind: input, shape index: {}]
  %s12 = inlined_call_operand.vmem [shape: f32[8,8,1], index: 12, kind: output, shape index: {0}]
  %s13 = inlined_call_operand.vmem [shape: f32[8,32], index: 13, kind: output, shape index: {1}]
  %14 = xla_tuple %s12, %s13
  %s15 = sld [smem:[#allocation0]]
  $region86: #{rec_critic_forward.3} parent=0
    _
  %s17 = ssub.s32 1, %s15
  %s18 = scalar_select 0, %s17, %s15
  %v19 = vstv %s11
  %20 = vst [vmem:[#allocation4] sm:$0x1] %v19
  $region1: #{rec_critic_forward.3} parent=0
    #allocation5 [shape = 'u8[16384]{0}', space=vmem, size = 0x4000, scoped, tag = 'input window, operand 4, single buffered']
    #allocation6 [shape = 's32[1]{0}', space=sflag, size = 0x4, scoped, tag = 'scoped memory for rec_critic_forward.3']
    #allocation7 [shape = 'u8[16384]{0}', space=vmem, size = 0x4000, scoped, tag = 'input window, operand 5, single buffered']
    #allocation8 [shape = 's32[1]{0}', space=sflag, size = 0x4, scoped, tag = 'scoped memory for rec_critic_forward.3']
    #allocation9 [shape = 'u8[16384]{0}', space=vmem, size = 0x4000, scoped, tag = 'input window, operand 6, single buffered']
    #allocation10 [shape = 'u8[16384]{0}', space=vmem, size = 0x4000, scoped, tag = 'input window, operand 8, single buffered']
    #allocation11 [shape = 's32[1]{0}', space=sflag, size = 0x4, scoped, tag = 'scoped memory for rec_critic_forward.3']
    %21 = vsyncpa [#allocation6], 0
    %22 = vsyncpa [#allocation8], 0
    %23 = vsyncpa [#allocation11], 0
    // Predicated region
    $region2: #{rec_critic_forward.3} parent=1 // pred_check
      _
    $region3: #{rec_critic_forward.3} parent=1 // pred_check_branch
      %25 = sbr.rel (0) target = $region5
    $region4: #{rec_critic_forward.3} parent=1 // pred_region
      _
    $region5: #{rec_critic_forward.3} parent=1 // pred_fallthru
      _
    // Predicated region
    $region6: #{rec_critic_forward.3} parent=1 // pred_check
      _
    $region7: #{rec_critic_forward.3} parent=1 // pred_check_branch
      %27 = sbr.rel (0) target = $region9
    $region8: #{rec_critic_forward.3} parent=1 // pred_region
      _
    $region9: #{rec_critic_forward.3} parent=1 // pred_fallthru
      _
    // Predicated region
    $region10: #{rec_critic_forward.3} parent=1 // pred_check
      _
    $region11: #{rec_critic_forward.3} parent=1 // pred_check_branch
      %29 = sbr.rel (0) target = $region13
    $region12: #{rec_critic_forward.3} parent=1 // pred_region
      _
    $region13: #{rec_critic_forward.3} parent=1 // pred_fallthru
      _
    // Predicated region
    $region14: #{rec_critic_forward.3} parent=1 // pred_check
      _
    $region15: #{rec_critic_forward.3} parent=1 // pred_check_branch
      %31 = sbr.rel (0) target = $region17
    $region16: #{rec_critic_forward.3} parent=1 // pred_region
      _
    $region17: #{rec_critic_forward.3} parent=1 // pred_fallthru
      _
    // Predicated region
    $region18: #{rec_critic_forward.3} parent=1 // pred_check
      _
    $region19: #{rec_critic_forward.3} parent=1 // pred_check_branch
      %33 = sbr.rel (0) target = $region21
    $region20: #{rec_critic_forward.3} parent=1 // pred_region
      %35 = vsyncadd [#allocation6], 0
      %s36 = sshll.u32 %s4, 4
      %s37 = int_to_ptr.hbm [resolvable:$true] %s36
      %s38 = sshll.u32 [#allocation5], 4
      %s39 = int_to_ptr.vmem [resolvable:$true] %s38
      %44 = dma.hbm_to_vmem [thread:$0]  %s37, 512, %s39, [#allocation6], 128, 128, 8
    $region21: #{rec_critic_forward.3} parent=1 // pred_fallthru
      _
    // Predicated region
    $region22: #{rec_critic_forward.3} parent=1 // pred_check
      _
    $region23: #{rec_critic_forward.3} parent=1 // pred_check_branch
      %46 = sbr.rel (0) target = $region25
    $region24: #{rec_critic_forward.3} parent=1 // pred_region
      %48 = vsyncadd [#allocation8], 0
      %s49 = sshll.u32 %s5, 4
      %s50 = int_to_ptr.hbm [resolvable:$true] %s49
      %s51 = sshll.u32 [#allocation7], 4
      %s52 = int_to_ptr.vmem [resolvable:$true] %s51
      %57 = dma.hbm_to_vmem [thread:$0]  %s50, 512, %s52, [#allocation8], 128, 128, 8
    $region25: #{rec_critic_forward.3} parent=1 // pred_fallthru
      _
    // Predicated region
    $region26: #{rec_critic_forward.3} parent=1 // pred_check
      _
    $region27: #{rec_critic_forward.3} parent=1 // pred_check_branch
      %59 = sbr.rel (0) target = $region29
    $region28: #{rec_critic_forward.3} parent=1 // pred_region
      %61 = vsyncadd [#allocation8], 0
      %s62 = sshll.u32 %s6, 4
      %s63 = int_to_ptr.hbm [resolvable:$true] %s62
      %s64 = sshll.u32 [#allocation9], 4
      %s65 = int_to_ptr.vmem [resolvable:$true] %s64
      %70 = dma.hbm_to_vmem [thread:$0]  %s63, 512, %s65, [#allocation8], 128, 128, 8
    $region29: #{rec_critic_forward.3} parent=1 // pred_fallthru
      _
    // Predicated region
    $region30: #{rec_critic_forward.3} parent=1 // pred_check
      _
    $region31: #{rec_critic_forward.3} parent=1 // pred_check_branch
      %72 = sbr.rel (0) target = $region33
    $region32: #{rec_critic_forward.3} parent=1 // pred_region
      _
    $region33: #{rec_critic_forward.3} parent=1 // pred_fallthru
      _
    // Predicated region
    $region34: #{rec_critic_forward.3} parent=1 // pred_check
      _
    $region35: #{rec_critic_forward.3} parent=1 // pred_check_branch
      %74 = sbr.rel (0) target = $region37
    $region36: #{rec_critic_forward.3} parent=1 // pred_region
      %76 = vsyncadd [#allocation11], 0
      %s77 = sshll.u32 %s8, 4
      %s78 = int_to_ptr.hbm [resolvable:$true] %s77
      %s79 = sshll.u32 [#allocation10], 4
      %s80 = int_to_ptr.vmem [resolvable:$true] %s79
      %85 = dma.hbm_to_vmem [thread:$0]  %s78, 512, %s80, [#allocation11], 128, 128, 8
    $region37: #{rec_critic_forward.3} parent=1 // pred_fallthru
      _
    // Predicated region
    $region38: #{rec_critic_forward.3} parent=1 // pred_check
      _
    $region39: #{rec_critic_forward.3} parent=1 // pred_check_branch
      %87 = sbr.rel (0) target = $region41
    $region40: #{rec_critic_forward.3} parent=1 // pred_region
      _
    $region41: #{rec_critic_forward.3} parent=1 // pred_fallthru
      _
    // Predicated region
    $region42: #{rec_critic_forward.3} parent=1 // pred_check
      _
    $region43: #{rec_critic_forward.3} parent=1 // pred_check_branch
      %89 = sbr.rel (0) target = $region45
    $region44: #{rec_critic_forward.3} parent=1 // pred_region
      _
    $region45: #{rec_critic_forward.3} parent=1 // pred_fallthru
      _
    // Predicated region
    $region46: #{rec_critic_forward.3} parent=1 // pred_check
      _
    $region47: #{rec_critic_forward.3} parent=1 // pred_check_branch
      %91 = sbr.rel (0) target = $region49
    $region48: #{rec_critic_forward.3} parent=1 // pred_region
      _
    $region49: #{rec_critic_forward.3} parent=1 // pred_fallthru
      _
    // Predicated region
    $region50: #{rec_critic_forward.3} parent=1 // pred_check
      _
    $region51: #{rec_critic_forward.3} parent=1 // pred_check_branch
      %93 = sbr.rel (0) target = $region53
    $region52: #{rec_critic_forward.3} parent=1 // pred_region
      %95 = dma.done [#allocation6], 512
    $region53: #{rec_critic_forward.3} parent=1 // pred_fallthru
      _
    // Predicated region
    $region54: #{rec_critic_forward.3} parent=1 // pred_check
      _
    $region55: #{rec_critic_forward.3} parent=1 // pred_check_branch
      %97 = sbr.rel (0) target = $region57
    $region56: #{rec_critic_forward.3} parent=1 // pred_region
      %99 = dma.done [#allocation8], 512
    $region57: #{rec_critic_forward.3} parent=1 // pred_fallthru
      _
    // Predicated region
    $region58: #{rec_critic_forward.3} parent=1 // pred_check
      _
    $region59: #{rec_critic_forward.3} parent=1 // pred_check_branch
      %101 = sbr.rel (0) target = $region61
    $region60: #{rec_critic_forward.3} parent=1 // pred_region
      %103 = dma.done [#allocation8], 512
    $region61: #{rec_critic_forward.3} parent=1 // pred_fallthru
      _
    // Predicated region
    $region62: #{rec_critic_forward.3} parent=1 // pred_check
      _
    $region63: #{rec_critic_forward.3} parent=1 // pred_check_branch
      %105 = sbr.rel (0) target = $region65
    $region64: #{rec_critic_forward.3} parent=1 // pred_region
      %107 = dma.done [#allocation11], 512
    $region65: #{rec_critic_forward.3} parent=1 // pred_fallthru
      _
    %p108 = scmp.eq.s32.totalorder 0, 0
    // Predicated region
    $region66: #{rec_critic_forward.3} parent=1 // pred_check
      %p109 = pneg %p108
    $region67: #{rec_critic_forward.3} parent=1 // pred_check_branch
      %111 = sbr.rel (%p109) target = $region69
    $region68: #{rec_critic_forward.3} parent=1 // pred_region
      %v112 = vld [vmem:[%s3] sm:$0xff]
      %vm113 = vcmask 261120
      %114 = vst.msk [vmem:[#allocation2] sm:$0xff] %vm113, %v112
    $region69: #{rec_critic_forward.3} parent=1 // pred_fallthru
      _
    %v115 = vld [vmem:[#allocation5] sm:$0xff]
    %v116 = vld [vmem:[#allocation5 + $0x8] sm:$0xff]
    %v117 = vld [vmem:[#allocation5 + $0x10] sm:$0xff]
    %v118 = vld [vmem:[#allocation5 + $0x18] sm:$0xff]
    %v119 = vld [vmem:[#allocation7] sm:$0xff]
    %v120 = vld [vmem:[#allocation7 + $0x8] sm:$0xff]
    %v121 = vld [vmem:[#allocation7 + $0x10] sm:$0xff]
    %v122 = vld [vmem:[#allocation7 + $0x18] sm:$0xff]
    %v123 = vld [vmem:[#allocation9] sm:$0xff]
    %v124 = vld [vmem:[#allocation9 + $0x8] sm:$0xff]
    %v125 = vld [vmem:[#allocation9 + $0x10] sm:$0xff]
    %v126 = vld [vmem:[#allocation9 + $0x18] sm:$0xff]
    %v127 = vld [vmem:[%s7] sm:$0x1]
    %v128 = vld [vmem:[#allocation2] sm:$0xff]
    %v129 = vld [vmem:[%s0] sm:$0x1]
    %v130 = vld [vmem:[%s0 + $0x8] sm:$0x1]
    %v131 = vld [vmem:[%s0 + $0x10] sm:$0x1]
    %v132 = vld [vmem:[%s0 + $0x18] sm:$0x1]
    %v133 = vld [vmem:[%s0 + $0x20] sm:$0x1]
    %v134 = vld [vmem:[%s0 + $0x28] sm:$0x1]
    %v135 = vld [vmem:[%s0 + $0x30] sm:$0x1]
    %v136 = vld [vmem:[%s0 + $0x38] sm:$0x1]
    %vm137 = vcmask 261120
    %v139 = vsel %vm137, %v128, 0
    %141 = vmatpush.msra.mxu0 0.0
    %142 = vmatpush.msra.mxu0 0.0
    %143 = vmatpush.msra.mxu0 0.0
    %144 = vmatpush.msra.mxu0 0.0
    %145 = vmatpush.msra.mxu0 0.0
    %146 = vmatpush.msra.mxu0 0.0
    %147 = vmatpush.msra.mxu0 0.0
    %148 = vmatpush.msra.mxu0 0.0
    %149 = vmatpush.msra.mxu0 0.0
    %150 = vmatpush.msra.mxu0 0.0
    %151 = vmatpush.msra.mxu0 0.0
    %152 = vmatpush.msra.mxu0 0.0
    %153 = vmatpush.msra.mxu0 %v118
    %154 = vmatpush.msra.mxu0 %v117
    %155 = vmatpush.msra.mxu0 %v116
    %156 = vmatpush.msra.mxu0 %v115
    %157 = vmatmul.f32.gmra.mxu0 %v139
    %v158 = vpop.f32.mrf.mxu0
    %v159 = vadd.f32 0.0, %v158
    %160 = vdwg.mxu0
    %v162 = vrot.slane %v159, 1
    %v163 = vrot.slane %v159, 2
    %v164 = vrot.slane %v159, 3
    %v165 = vrot.slane %v159, 4
    %v166 = vrot.slane %v159, 5
    %v167 = vrot.slane %v159, 6
    %v168 = vrot.slane %v159, 7
    %v177 = vadd.f32 %v129, %v159
    %v178 = vadd.f32 %v130, %v162
    %v179 = vadd.f32 %v131, %v163
    %v180 = vadd.f32 %v132, %v164
    %v181 = vadd.f32 %v133, %v165
    %v182 = vadd.f32 %v134, %v166
    %v183 = vadd.f32 %v135, %v167
    %v184 = vadd.f32 %v136, %v168
    %v185 = vxor.u32 %v177, 2147483648
    %v186 = vxor.u32 %v178, 2147483648
    %v187 = vxor.u32 %v179, 2147483648
    %v188 = vxor.u32 %v180, 2147483648
    %v189 = vxor.u32 %v181, 2147483648
    %v190 = vxor.u32 %v182, 2147483648
    %v191 = vxor.u32 %v183, 2147483648
    %v192 = vxor.u32 %v184, 2147483648
    %v193 = vmul.f32 %v185, 1.442695
    %v194 = vpow.pop %v193
    %v195 = vmul.f32 %v186, 1.442695
    %v196 = vpow.pop %v195
    %v197 = vmul.f32 %v187, 1.442695
    %v198 = vpow.pop %v197
    %v199 = vmul.f32 %v188, 1.442695
    %v200 = vpow.pop %v199
    %v201 = vmul.f32 %v189, 1.442695
    %v202 = vpow.pop %v201
    %v203 = vmul.f32 %v190, 1.442695
    %v204 = vpow.pop %v203
    %v205 = vmul.f32 %v191, 1.442695
    %v206 = vpow.pop %v205
    %v207 = vmul.f32 %v192, 1.442695
    %v208 = vpow.pop %v207
    %v209 = vadd.f32 %v194, 1.0
    %v210 = vadd.f32 %v196, 1.0
    %v211 = vadd.f32 %v198, 1.0
    %v212 = vadd.f32 %v200, 1.0
    %v213 = vadd.f32 %v202, 1.0
    %v214 = vadd.f32 %v204, 1.0
    %v215 = vadd.f32 %v206, 1.0
    %v216 = vadd.f32 %v208, 1.0
    %v217 = vrcp.pop %v209
    %v218 = vmul.f32 %v209, %v217
    %v219 = vsub.f32 1.0, %v218
    %v220 = vmul.f32 %v217, %v219
    %v221 = vadd.f32 %v217, %v220
    %vm222 = vweird.f32 %v209
    %vm223 = vweird.f32 %v217
    %vm224 = vmor %vm222, %vm223
    %v225 = vsel %vm224, %v217, %v221
    %v226 = vand.u32 2147483647, %v209
    %vm227 = vcmp.eq.f32.partialorder %v226, 8.507059e+37
    %v228 = vand.u32 %v209, 2147483648
    %v229 = vor.u32 1.1754944e-38, %v228
    %v230 = vsel %vm227, %v229, %v225
    %v231 = vmul.f32 1.0, %v230
    %v232 = vrcp.pop %v210
    %v233 = vmul.f32 %v210, %v232
    %v234 = vsub.f32 1.0, %v233
    %v235 = vmul.f32 %v232, %v234
    %v236 = vadd.f32 %v232, %v235
    %vm237 = vweird.f32 %v210
    %vm238 = vweird.f32 %v232
    %vm239 = vmor %vm237, %vm238
    %v240 = vsel %vm239, %v232, %v236
    %v241 = vand.u32 2147483647, %v210
    %vm242 = vcmp.eq.f32.partialorder %v241, 8.507059e+37
    %v243 = vand.u32 %v210, 2147483648
    %v244 = vor.u32 1.1754944e-38, %v243
    %v245 = vsel %vm242, %v244, %v240
    %v246 = vmul.f32 1.0, %v245
    %v247 = vrcp.pop %v211
    %v248 = vmul.f32 %v211, %v247
    %v249 = vsub.f32 1.0, %v248
    %v250 = vmul.f32 %v247, %v249
    %v251 = vadd.f32 %v247, %v250
    %vm252 = vweird.f32 %v211
    %vm253 = vweird.f32 %v247
    %vm254 = vmor %vm252, %vm253
    %v255 = vsel %vm254, %v247, %v251
    %v256 = vand.u32 2147483647, %v211
    %vm257 = vcmp.eq.f32.partialorder %v256, 8.507059e+37
    %v258 = vand.u32 %v211, 2147483648
    %v259 = vor.u32 1.1754944e-38, %v258
    %v260 = vsel %vm257, %v259, %v255
    %v261 = vmul.f32 1.0, %v260
    %v262 = vrcp.pop %v212
    %v263 = vmul.f32 %v212, %v262
    %v264 = vsub.f32 1.0, %v263
    %v265 = vmul.f32 %v262, %v264
    %v266 = vadd.f32 %v262, %v265
    %vm267 = vweird.f32 %v212
    %vm268 = vweird.f32 %v262
    %vm269 = vmor %vm267, %vm268
    %v270 = vsel %vm269, %v262, %v266
    %v271 = vand.u32 2147483647, %v212
    %vm272 = vcmp.eq.f32.partialorder %v271, 8.507059e+37
    %v273 = vand.u32 %v212, 2147483648
    %v274 = vor.u32 1.1754944e-38, %v273
    %v275 = vsel %vm272, %v274, %v270
    %v276 = vmul.f32 1.0, %v275
    %v277 = vrcp.pop %v213
    %v278 = vmul.f32 %v213, %v277
    %v279 = vsub.f32 1.0, %v278
    %v280 = vmul.f32 %v277, %v279
    %v281 = vadd.f32 %v277, %v280
    %vm282 = vweird.f32 %v213
    %vm283 = vweird.f32 %v277
    %vm284 = vmor %vm282, %vm283
    %v285 = vsel %vm284, %v277, %v281
    %v286 = vand.u32 2147483647, %v213
    %vm287 = vcmp.eq.f32.partialorder %v286, 8.507059e+37
    %v288 = vand.u32 %v213, 2147483648
    %v289 = vor.u32 1.1754944e-38, %v288
    %v290 = vsel %vm287, %v289, %v285
    %v291 = vmul.f32 1.0, %v290
    %v292 = vrcp.pop %v214
    %v293 = vmul.f32 %v214, %v292
    %v294 = vsub.f32 1.0, %v293
    %v295 = vmul.f32 %v292, %v294
    %v296 = vadd.f32 %v292, %v295
    %vm297 = vweird.f32 %v214
    %vm298 = vweird.f32 %v292
    %vm299 = vmor %vm297, %vm298
    %v300 = vsel %vm299, %v292, %v296
    %v301 = vand.u32 2147483647, %v214
    %vm302 = vcmp.eq.f32.partialorder %v301, 8.507059e+37
    %v303 = vand.u32 %v214, 2147483648
    %v304 = vor.u32 1.1754944e-38, %v303
    %v305 = vsel %vm302, %v304, %v300
    %v306 = vmul.f32 1.0, %v305
    %v307 = vrcp.pop %v215
    %v308 = vmul.f32 %v215, %v307
    %v309 = vsub.f32 1.0, %v308
    %v310 = vmul.f32 %v307, %v309
    %v311 = vadd.f32 %v307, %v310
    %vm312 = vweird.f32 %v215
    %vm313 = vweird.f32 %v307
    %vm314 = vmor %vm312, %vm313
    %v315 = vsel %vm314, %v307, %v311
    %v316 = vand.u32 2147483647, %v215
    %vm317 = vcmp.eq.f32.partialorder %v316, 8.507059e+37
    %v318 = vand.u32 %v215, 2147483648
    %v319 = vor.u32 1.1754944e-38, %v318
    %v320 = vsel %vm317, %v319, %v315
    %v321 = vmul.f32 1.0, %v320
    %v322 = vrcp.pop %v216
    %v323 = vmul.f32 %v216, %v322
    %v324 = vsub.f32 1.0, %v323
    %v325 = vmul.f32 %v322, %v324
    %v326 = vadd.f32 %v322, %v325
    %vm327 = vweird.f32 %v216
    %vm328 = vweird.f32 %v322
    %vm329 = vmor %vm327, %vm328
    %v330 = vsel %vm329, %v322, %v326
    %v331 = vand.u32 2147483647, %v216
    %vm332 = vcmp.eq.f32.partialorder %v331, 8.507059e+37
    %v333 = vand.u32 %v216, 2147483648
    %v334 = vor.u32 1.1754944e-38, %v333
    %v335 = vsel %vm332, %v334, %v330
    %v336 = vmul.f32 1.0, %v335
    %v337 = vld [vmem:[%s1] sm:$0x1]
    %v338 = vld [vmem:[%s1 + $0x8] sm:$0x1]
    %v339 = vld [vmem:[%s1 + $0x10] sm:$0x1]
    %v340 = vld [vmem:[%s1 + $0x18] sm:$0x1]
    %v341 = vld [vmem:[%s1 + $0x20] sm:$0x1]
    %v342 = vld [vmem:[%s1 + $0x28] sm:$0x1]
    %v343 = vld [vmem:[%s1 + $0x30] sm:$0x1]
    %v344 = vld [vmem:[%s1 + $0x38] sm:$0x1]
    %345 = vmatpush.msra.mxu0 0.0
    %346 = vmatpush.msra.mxu0 0.0
    %347 = vmatpush.msra.mxu0 0.0
    %348 = vmatpush.msra.mxu0 0.0
    %349 = vmatpush.msra.mxu0 0.0
    %350 = vmatpush.msra.mxu0 0.0
    %351 = vmatpush.msra.mxu0 0.0
    %352 = vmatpush.msra.mxu0 0.0
    %353 = vmatpush.msra.mxu0 0.0
    %354 = vmatpush.msra.mxu0 0.0
    %355 = vmatpush.msra.mxu0 0.0
    %356 = vmatpush.msra.mxu0 0.0
    %357 = vmatpush.msra.mxu0 %v122
    %358 = vmatpush.msra.mxu0 %v121
    %359 = vmatpush.msra.mxu0 %v120
    %360 = vmatpush.msra.mxu0 %v119
    %361 = vmatmul.f32.gmra.mxu0 %v139
    %v362 = vpop.f32.mrf.mxu0
    %v363 = vadd.f32 0.0, %v362
    %364 = vdwg.mxu0
    %v366 = vrot.slane %v363, 1
    %v367 = vrot.slane %v363, 2
    %v368 = vrot.slane %v363, 3
    %v369 = vrot.slane %v363, 4
    %v370 = vrot.slane %v363, 5
    %v371 = vrot.slane %v363, 6
    %v372 = vrot.slane %v363, 7
    %v381 = vadd.f32 %v337, %v363
    %v382 = vadd.f32 %v338, %v366
    %v383 = vadd.f32 %v339, %v367
    %v384 = vadd.f32 %v340, %v368
    %v385 = vadd.f32 %v341, %v369
    %v386 = vadd.f32 %v342, %v370
    %v387 = vadd.f32 %v343, %v371
    %v388 = vadd.f32 %v344, %v372
    %v389 = vxor.u32 %v381, 2147483648
    %v390 = vxor.u32 %v382, 2147483648
    %v391 = vxor.u32 %v383, 2147483648
    %v392 = vxor.u32 %v384, 2147483648
    %v393 = vxor.u32 %v385, 2147483648
    %v394 = vxor.u32 %v386, 2147483648
    %v395 = vxor.u32 %v387, 2147483648
    %v396 = vxor.u32 %v388, 2147483648
    %v397 = vmul.f32 %v389, 1.442695
    %v398 = vpow.pop %v397
    %v399 = vmul.f32 %v390, 1.442695
    %v400 = vpow.pop %v399
    %v401 = vmul.f32 %v391, 1.442695
    %v402 = vpow.pop %v401
    %v403 = vmul.f32 %v392, 1.442695
    %v404 = vpow.pop %v403
    %v405 = vmul.f32 %v393, 1.442695
    %v406 = vpow.pop %v405
    %v407 = vmul.f32 %v394, 1.442695
    %v408 = vpow.pop %v407
    %v409 = vmul.f32 %v395, 1.442695
    %v410 = vpow.pop %v409
    %v411 = vmul.f32 %v396, 1.442695
    %v412 = vpow.pop %v411
    %v413 = vadd.f32 %v398, 1.0
    %v414 = vadd.f32 %v400, 1.0
    %v415 = vadd.f32 %v402, 1.0
    %v416 = vadd.f32 %v404, 1.0
    %v417 = vadd.f32 %v406, 1.0
    %v418 = vadd.f32 %v408, 1.0
    %v419 = vadd.f32 %v410, 1.0
    %v420 = vadd.f32 %v412, 1.0
    %v421 = vrcp.pop %v413
    %v422 = vmul.f32 %v413, %v421
    %v423 = vsub.f32 1.0, %v422
    %v424 = vmul.f32 %v421, %v423
    %v425 = vadd.f32 %v421, %v424
    %vm426 = vweird.f32 %v413
    %vm427 = vweird.f32 %v421
    %vm428 = vmor %vm426, %vm427
    %v429 = vsel %vm428, %v421, %v425
    %v430 = vand.u32 2147483647, %v413
    %vm431 = vcmp.eq.f32.partialorder %v430, 8.507059e+37
    %v432 = vand.u32 %v413, 2147483648
    %v433 = vor.u32 1.1754944e-38, %v432
    %v434 = vsel %vm431, %v433, %v429
    %v435 = vmul.f32 1.0, %v434
    %v436 = vrcp.pop %v414
    %v437 = vmul.f32 %v414, %v436
    %v438 = vsub.f32 1.0, %v437
    %v439 = vmul.f32 %v436, %v438
    %v440 = vadd.f32 %v436, %v439
    %vm441 = vweird.f32 %v414
    %vm442 = vweird.f32 %v436
    %vm443 = vmor %vm441, %vm442
    %v444 = vsel %vm443, %v436, %v440
    %v445 = vand.u32 2147483647, %v414
    %vm446 = vcmp.eq.f32.partialorder %v445, 8.507059e+37
    %v447 = vand.u32 %v414, 2147483648
    %v448 = vor.u32 1.1754944e-38, %v447
    %v449 = vsel %vm446, %v448, %v444
    %v450 = vmul.f32 1.0, %v449
    %v451 = vrcp.pop %v415
    %v452 = vmul.f32 %v415, %v451
    %v453 = vsub.f32 1.0, %v452
    %v454 = vmul.f32 %v451, %v453
    %v455 = vadd.f32 %v451, %v454
    %vm456 = vweird.f32 %v415
    %vm457 = vweird.f32 %v451
    %vm458 = vmor %vm456, %vm457
    %v459 = vsel %vm458, %v451, %v455
    %v460 = vand.u32 2147483647, %v415
    %vm461 = vcmp.eq.f32.partialorder %v460, 8.507059e+37
    %v462 = vand.u32 %v415, 2147483648
    %v463 = vor.u32 1.1754944e-38, %v462
    %v464 = vsel %vm461, %v463, %v459
    %v465 = vmul.f32 1.0, %v464
    %v466 = vrcp.pop %v416
    %v467 = vmul.f32 %v416, %v466
    %v468 = vsub.f32 1.0, %v467
    %v469 = vmul.f32 %v466, %v468
    %v470 = vadd.f32 %v466, %v469
    %vm471 = vweird.f32 %v416
    %vm472 = vweird.f32 %v466
    %vm473 = vmor %vm471, %vm472
    %v474 = vsel %vm473, %v466, %v470
    %v475 = vand.u32 2147483647, %v416
    %vm476 = vcmp.eq.f32.partialorder %v475, 8.507059e+37
    %v477 = vand.u32 %v416, 2147483648
    %v478 = vor.u32 1.1754944e-38, %v477
    %v479 = vsel %vm476, %v478, %v474
    %v480 = vmul.f32 1.0, %v479
    %v481 = vrcp.pop %v417
    %v482 = vmul.f32 %v417, %v481
    %v483 = vsub.f32 1.0, %v482
    %v484 = vmul.f32 %v481, %v483
    %v485 = vadd.f32 %v481, %v484
    %vm486 = vweird.f32 %v417
    %vm487 = vweird.f32 %v481
    %vm488 = vmor %vm486, %vm487
    %v489 = vsel %vm488, %v481, %v485
    %v490 = vand.u32 2147483647, %v417
    %vm491 = vcmp.eq.f32.partialorder %v490, 8.507059e+37
    %v492 = vand.u32 %v417, 2147483648
    %v493 = vor.u32 1.1754944e-38, %v492
    %v494 = vsel %vm491, %v493, %v489
    %v495 = vmul.f32 1.0, %v494
    %v496 = vrcp.pop %v418
    %v497 = vmul.f32 %v418, %v496
    %v498 = vsub.f32 1.0, %v497
    %v499 = vmul.f32 %v496, %v498
    %v500 = vadd.f32 %v496, %v499
    %vm501 = vweird.f32 %v418
    %vm502 = vweird.f32 %v496
    %vm503 = vmor %vm501, %vm502
    %v504 = vsel %vm503, %v496, %v500
    %v505 = vand.u32 2147483647, %v418
    %vm506 = vcmp.eq.f32.partialorder %v505, 8.507059e+37
    %v507 = vand.u32 %v418, 2147483648
    %v508 = vor.u32 1.1754944e-38, %v507
    %v509 = vsel %vm506, %v508, %v504
    %v510 = vmul.f32 1.0, %v509
    %v511 = vrcp.pop %v419
    %v512 = vmul.f32 %v419, %v511
    %v513 = vsub.f32 1.0, %v512
    %v514 = vmul.f32 %v511, %v513
    %v515 = vadd.f32 %v511, %v514
    %vm516 = vweird.f32 %v419
    %vm517 = vweird.f32 %v511
    %vm518 = vmor %vm516, %vm517
    %v519 = vsel %vm518, %v511, %v515
    %v520 = vand.u32 2147483647, %v419
    %vm521 = vcmp.eq.f32.partialorder %v520, 8.507059e+37
    %v522 = vand.u32 %v419, 2147483648
    %v523 = vor.u32 1.1754944e-38, %v522
    %v524 = vsel %vm521, %v523, %v519
    %v525 = vmul.f32 1.0, %v524
    %v526 = vrcp.pop %v420
    %v527 = vmul.f32 %v420, %v526
    %v528 = vsub.f32 1.0, %v527
    %v529 = vmul.f32 %v526, %v528
    %v530 = vadd.f32 %v526, %v529
    %vm531 = vweird.f32 %v420
    %vm532 = vweird.f32 %v526
    %vm533 = vmor %vm531, %vm532
    %v534 = vsel %vm533, %v526, %v530
    %v535 = vand.u32 2147483647, %v420
    %vm536 = vcmp.eq.f32.partialorder %v535, 8.507059e+37
    %v537 = vand.u32 %v420, 2147483648
    %v538 = vor.u32 1.1754944e-38, %v537
    %v539 = vsel %vm536, %v538, %v534
    %v540 = vmul.f32 1.0, %v539
    %v541 = vld [vmem:[%s2] sm:$0x1]
    %v542 = vld [vmem:[%s2 + $0x8] sm:$0x1]
    %v543 = vld [vmem:[%s2 + $0x10] sm:$0x1]
    %v544 = vld [vmem:[%s2 + $0x18] sm:$0x1]
    %v545 = vld [vmem:[%s2 + $0x20] sm:$0x1]
    %v546 = vld [vmem:[%s2 + $0x28] sm:$0x1]
    %v547 = vld [vmem:[%s2 + $0x30] sm:$0x1]
    %v548 = vld [vmem:[%s2 + $0x38] sm:$0x1]
    %v550 = vperm.slane %v127, 0
    %552 = vmatpush.msra.mxu0 0.0
    %553 = vmatpush.msra.mxu0 0.0
    %554 = vmatpush.msra.mxu0 0.0
    %555 = vmatpush.msra.mxu0 0.0
    %556 = vmatpush.msra.mxu0 0.0
    %557 = vmatpush.msra.mxu0 0.0
    %558 = vmatpush.msra.mxu0 0.0
    %559 = vmatpush.msra.mxu0 0.0
    %560 = vmatpush.msra.mxu0 0.0
    %561 = vmatpush.msra.mxu0 0.0
    %562 = vmatpush.msra.mxu0 0.0
    %563 = vmatpush.msra.mxu0 0.0
    %564 = vmatpush.msra.mxu0 %v126
    %565 = vmatpush.msra.mxu0 %v125
    %566 = vmatpush.msra.mxu0 %v124
    %567 = vmatpush.msra.mxu0 %v123
    %568 = vmatmul.f32.gmra.mxu0 %v139
    %v569 = vpop.f32.mrf.mxu0
    %v570 = vadd.f32 %v550, %v569
    %571 = vdwg.mxu0
    %v573 = vrot.slane %v570, 1
    %v574 = vrot.slane %v570, 2
    %v575 = vrot.slane %v570, 3
    %v576 = vrot.slane %v570, 4
    %v577 = vrot.slane %v570, 5
    %v578 = vrot.slane %v570, 6
    %v579 = vrot.slane %v570, 7
    %v588 = vmul.f32 %v231, %v570
    %v589 = vmul.f32 %v246, %v573
    %v590 = vmul.f32 %v261, %v574
    %v591 = vmul.f32 %v276, %v575
    %v592 = vmul.f32 %v291, %v576
    %v593 = vmul.f32 %v306, %v577
    %v594 = vmul.f32 %v321, %v578
    %v595 = vmul.f32 %v336, %v579
    %v596 = vadd.f32 %v541, %v588
    %v597 = vadd.f32 %v542, %v589
    %v598 = vadd.f32 %v543, %v590
    %v599 = vadd.f32 %v544, %v591
    %v600 = vadd.f32 %v545, %v592
    %v601 = vadd.f32 %v546, %v593
    %v602 = vadd.f32 %v547, %v594
    %v603 = vadd.f32 %v548, %v595
    %v604 = vtanh.pop %v596
    %v605 = vtanh.pop %v597
    %v606 = vtanh.pop %v598
    %v607 = vtanh.pop %v599
    %v608 = vtanh.pop %v600
    %v609 = vtanh.pop %v601
    %v610 = vtanh.pop %v602
    %v611 = vtanh.pop %v603
    %v612 = vsub.f32 1.0, %v435
    %v613 = vsub.f32 1.0, %v450
    %v614 = vsub.f32 1.0, %v465
    %v615 = vsub.f32 1.0, %v480
    %v616 = vsub.f32 1.0, %v495
    %v617 = vsub.f32 1.0, %v510
    %v618 = vsub.f32 1.0, %v525
    %v619 = vsub.f32 1.0, %v540
    %v620 = vmul.f32 %v612, %v604
    %v621 = vmul.f32 %v613, %v605
    %v622 = vmul.f32 %v614, %v606
    %v623 = vmul.f32 %v615, %v607
    %v624 = vmul.f32 %v616, %v608
    %v625 = vmul.f32 %v617, %v609
    %v626 = vmul.f32 %v618, %v610
    %v627 = vmul.f32 %v619, %v611
    %v628 = vrot.slane %v128, 1
    %v629 = vrot.slane %v128, 2
    %v630 = vrot.slane %v128, 3
    %v631 = vrot.slane %v128, 4
    %v632 = vrot.slane %v128, 5
    %v633 = vrot.slane %v128, 6
    %v634 = vrot.slane %v128, 7
    %v643 = vmul.f32 %v435, %v128
    %v644 = vmul.f32 %v450, %v628
    %v645 = vmul.f32 %v465, %v629
    %v646 = vmul.f32 %v480, %v630
    %v647 = vmul.f32 %v495, %v631
    %v648 = vmul.f32 %v510, %v632
    %v649 = vmul.f32 %v525, %v633
    %v650 = vmul.f32 %v540, %v634
    %v651 = vadd.f32 %v620, %v643
    %v652 = vadd.f32 %v621, %v644
    %v653 = vadd.f32 %v622, %v645
    %v654 = vadd.f32 %v623, %v646
    %v655 = vadd.f32 %v624, %v647
    %v656 = vadd.f32 %v625, %v648
    %v657 = vadd.f32 %v626, %v649
    %v658 = vadd.f32 %v627, %v650
    %vm659 = vcmask 253952
    %660 = vst.msk [vmem:[#allocation3] sm:$0x1] %vm659, %v651
    %661 = vst.msk [vmem:[#allocation3 + $0x8] sm:$0x1] %vm659, %v652
    %662 = vst.msk [vmem:[#allocation3 + $0x10] sm:$0x1] %vm659, %v653
    %663 = vst.msk [vmem:[#allocation3 + $0x18] sm:$0x1] %vm659, %v654
    %664 = vst.msk [vmem:[#allocation3 + $0x20] sm:$0x1] %vm659, %v655
    %665 = vst.msk [vmem:[#allocation3 + $0x28] sm:$0x1] %vm659, %v656
    %666 = vst.msk [vmem:[#allocation3 + $0x30] sm:$0x1] %vm659, %v657
    %667 = vst.msk [vmem:[#allocation3 + $0x38] sm:$0x1] %vm659, %v658
    %v668 = vld [vmem:[%s0 + $0x1] sm:$0x1]
    %v669 = vld [vmem:[%s0 + $0x9] sm:$0x1]
    %v670 = vld [vmem:[%s0 + $0x11] sm:$0x1]
    %v671 = vld [vmem:[%s0 + $0x19] sm:$0x1]
    %v672 = vld [vmem:[%s0 + $0x21] sm:$0x1]
    %v673 = vld [vmem:[%s0 + $0x29] sm:$0x1]
    %v674 = vld [vmem:[%s0 + $0x31] sm:$0x1]
    %v675 = vld [vmem:[%s0 + $0x39] sm:$0x1]
    %v684 = vrot.slane %v652, 7
    %vm685 = vcmask 1041409
    %v686 = vsel %vm685, %v684, %v651
    %v687 = vrot.slane %v653, 6
    %vm688 = vcmask 1042434
    %v689 = vsel %vm688, %v687, %v686
    %v690 = vrot.slane %v654, 5
    %vm691 = vcmask 1043459
    %v692 = vsel %vm691, %v690, %v689
    %v693 = vrot.slane %v655, 4
    %vm694 = vcmask 1044484
    %v695 = vsel %vm694, %v693, %v692
    %v696 = vrot.slane %v656, 3
    %vm697 = vcmask 1045509
    %v698 = vsel %vm697, %v696, %v695
    %v699 = vrot.slane %v657, 2
    %vm700 = vcmask 1046534
    %v701 = vsel %vm700, %v699, %v698
    %v702 = vrot.slane %v658, 1
    %vm703 = vcmask 1047559
    %v704 = vsel %vm703, %v702, %v701
    %v705 = vsel %vm137, %v704, 0
    %707 = vmatpush.msra.mxu0 0.0
    %708 = vmatpush.msra.mxu0 0.0
    %709 = vmatpush.msra.mxu0 0.0
    %710 = vmatpush.msra.mxu0 0.0
    %711 = vmatpush.msra.mxu0 0.0
    %712 = vmatpush.msra.mxu0 0.0
    %713 = vmatpush.msra.mxu0 0.0
    %714 = vmatpush.msra.mxu0 0.0
    %715 = vmatpush.msra.mxu0 0.0
    %716 = vmatpush.msra.mxu0 0.0
    %717 = vmatpush.msra.mxu0 0.0
    %718 = vmatpush.msra.mxu0 0.0
    %719 = vmatpush.msra.mxu0 %v118
    %720 = vmatpush.msra.mxu0 %v117
    %721 = vmatpush.msra.mxu0 %v116
    %722 = vmatpush.msra.mxu0 %v115
    %723 = vmatmul.f32.gmra.mxu0 %v705
    %v724 = vpop.f32.mrf.mxu0
    %v725 = vadd.f32 0.0, %v724
    %726 = vdwg.mxu0
    %v728 = vrot.slane %v725, 1
    %v729 = vrot.slane %v725, 2
    %v730 = vrot.slane %v725, 3
    %v731 = vrot.slane %v725, 4
    %v732 = vrot.slane %v725, 5
    %v733 = vrot.slane %v725, 6
    %v734 = vrot.slane %v725, 7
    %v743 = vadd.f32 %v668, %v725
    %v744 = vadd.f32 %v669, %v728
    %v745 = vadd.f32 %v670, %v729
    %v746 = vadd.f32 %v671, %v730
    %v747 = vadd.f32 %v672, %v731
    %v748 = vadd.f32 %v673, %v732
    %v749 = vadd.f32 %v674, %v733
    %v750 = vadd.f32 %v675, %v734
    %v751 = vxor.u32 %v743, 2147483648
    %v752 = vxor.u32 %v744, 2147483648
    %v753 = vxor.u32 %v745, 2147483648
    %v754 = vxor.u32 %v746, 2147483648
    %v755 = vxor.u32 %v747, 2147483648
    %v756 = vxor.u32 %v748, 2147483648
    %v757 = vxor.u32 %v749, 2147483648
    %v758 = vxor.u32 %v750, 2147483648
    %v759 = vmul.f32 %v751, 1.442695
    %v760 = vpow.pop %v759
    %v761 = vmul.f32 %v752, 1.442695
    %v762 = vpow.pop %v761
    %v763 = vmul.f32 %v753, 1.442695
    %v764 = vpow.pop %v763
    %v765 = vmul.f32 %v754, 1.442695
    %v766 = vpow.pop %v765
    %v767 = vmul.f32 %v755, 1.442695
    %v768 = vpow.pop %v767
    %v769 = vmul.f32 %v756, 1.442695
    %v770 = vpow.pop %v769
    %v771 = vmul.f32 %v757, 1.442695
    %v772 = vpow.pop %v771
    %v773 = vmul.f32 %v758, 1.442695
    %v774 = vpow.pop %v773
    %v775 = vadd.f32 %v760, 1.0
    %v776 = vadd.f32 %v762, 1.0
    %v777 = vadd.f32 %v764, 1.0
    %v778 = vadd.f32 %v766, 1.0
    %v779 = vadd.f32 %v768, 1.0
    %v780 = vadd.f32 %v770, 1.0
    %v781 = vadd.f32 %v772, 1.0
    %v782 = vadd.f32 %v774, 1.0
    %v783 = vrcp.pop %v775
    %v784 = vmul.f32 %v775, %v783
    %v785 = vsub.f32 1.0, %v784
    %v786 = vmul.f32 %v783, %v785
    %v787 = vadd.f32 %v783, %v786
    %vm788 = vweird.f32 %v775
    %vm789 = vweird.f32 %v783
    %vm790 = vmor %vm788, %vm789
    %v791 = vsel %vm790, %v783, %v787
    %v792 = vand.u32 2147483647, %v775
    %vm793 = vcmp.eq.f32.partialorder %v792, 8.507059e+37
    %v794 = vand.u32 %v775, 2147483648
    %v795 = vor.u32 1.1754944e-38, %v794
    %v796 = vsel %vm793, %v795, %v791
    %v797 = vmul.f32 1.0, %v796
    %v798 = vrcp.pop %v776
    %v799 = vmul.f32 %v776, %v798
    %v800 = vsub.f32 1.0, %v799
    %v801 = vmul.f32 %v798, %v800
    %v802 = vadd.f32 %v798, %v801
    %vm803 = vweird.f32 %v776
    %vm804 = vweird.f32 %v798
    %vm805 = vmor %vm803, %vm804
    %v806 = vsel %vm805, %v798, %v802
    %v807 = vand.u32 2147483647, %v776
    %vm808 = vcmp.eq.f32.partialorder %v807, 8.507059e+37
    %v809 = vand.u32 %v776, 2147483648
    %v810 = vor.u32 1.1754944e-38, %v809
    %v811 = vsel %vm808, %v810, %v806
    %v812 = vmul.f32 1.0, %v811
    %v813 = vrcp.pop %v777
    %v814 = vmul.f32 %v777, %v813
    %v815 = vsub.f32 1.0, %v814
    %v816 = vmul.f32 %v813, %v815
    %v817 = vadd.f32 %v813, %v816
    %vm818 = vweird.f32 %v777
    %vm819 = vweird.f32 %v813
    %vm820 = vmor %vm818, %vm819
    %v821 = vsel %vm820, %v813, %v817
    %v822 = vand.u32 2147483647, %v777
    %vm823 = vcmp.eq.f32.partialorder %v822, 8.507059e+37
    %v824 = vand.u32 %v777, 2147483648
    %v825 = vor.u32 1.1754944e-38, %v824
    %v826 = vsel %vm823, %v825, %v821
    %v827 = vmul.f32 1.0, %v826
    %v828 = vrcp.pop %v778
    %v829 = vmul.f32 %v778, %v828
    %v830 = vsub.f32 1.0, %v829
    %v831 = vmul.f32 %v828, %v830
    %v832 = vadd.f32 %v828, %v831
    %vm833 = vweird.f32 %v778
    %vm834 = vweird.f32 %v828
    %vm835 = vmor %vm833, %vm834
    %v836 = vsel %vm835, %v828, %v832
    %v837 = vand.u32 2147483647, %v778
    %vm838 = vcmp.eq.f32.partialorder %v837, 8.507059e+37
    %v839 = vand.u32 %v778, 2147483648
    %v840 = vor.u32 1.1754944e-38, %v839
    %v841 = vsel %vm838, %v840, %v836
    %v842 = vmul.f32 1.0, %v841
    %v843 = vrcp.pop %v779
    %v844 = vmul.f32 %v779, %v843
    %v845 = vsub.f32 1.0, %v844
    %v846 = vmul.f32 %v843, %v845
    %v847 = vadd.f32 %v843, %v846
    %vm848 = vweird.f32 %v779
    %vm849 = vweird.f32 %v843
    %vm850 = vmor %vm848, %vm849
    %v851 = vsel %vm850, %v843, %v847
    %v852 = vand.u32 2147483647, %v779
    %vm853 = vcmp.eq.f32.partialorder %v852, 8.507059e+37
    %v854 = vand.u32 %v779, 2147483648
    %v855 = vor.u32 1.1754944e-38, %v854
    %v856 = vsel %vm853, %v855, %v851
    %v857 = vmul.f32 1.0, %v856
    %v858 = vrcp.pop %v780
    %v859 = vmul.f32 %v780, %v858
    %v860 = vsub.f32 1.0, %v859
    %v861 = vmul.f32 %v858, %v860
    %v862 = vadd.f32 %v858, %v861
    %vm863 = vweird.f32 %v780
    %vm864 = vweird.f32 %v858
    %vm865 = vmor %vm863, %vm864
    %v866 = vsel %vm865, %v858, %v862
    %v867 = vand.u32 2147483647, %v780
    %vm868 = vcmp.eq.f32.partialorder %v867, 8.507059e+37
    %v869 = vand.u32 %v780, 2147483648
    %v870 = vor.u32 1.1754944e-38, %v869
    %v871 = vsel %vm868, %v870, %v866
    %v872 = vmul.f32 1.0, %v871
    %v873 = vrcp.pop %v781
    %v874 = vmul.f32 %v781, %v873
    %v875 = vsub.f32 1.0, %v874
    %v876 = vmul.f32 %v873, %v875
    %v877 = vadd.f32 %v873, %v876
    %vm878 = vweird.f32 %v781
    %vm879 = vweird.f32 %v873
    %vm880 = vmor %vm878, %vm879
    %v881 = vsel %vm880, %v873, %v877
    %v882 = vand.u32 2147483647, %v781
    %vm883 = vcmp.eq.f32.partialorder %v882, 8.507059e+37
    %v884 = vand.u32 %v781, 2147483648
    %v885 = vor.u32 1.1754944e-38, %v884
    %v886 = vsel %vm883, %v885, %v881
    %v887 = vmul.f32 1.0, %v886
    %v888 = vrcp.pop %v782
    %v889 = vmul.f32 %v782, %v888
    %v890 = vsub.f32 1.0, %v889
    %v891 = vmul.f32 %v888, %v890
    %v892 = vadd.f32 %v888, %v891
    %vm893 = vweird.f32 %v782
    %vm894 = vweird.f32 %v888
    %vm895 = vmor %vm893, %vm894
    %v896 = vsel %vm895, %v888, %v892
    %v897 = vand.u32 2147483647, %v782
    %vm898 = vcmp.eq.f32.partialorder %v897, 8.507059e+37
    %v899 = vand.u32 %v782, 2147483648
    %v900 = vor.u32 1.1754944e-38, %v899
    %v901 = vsel %vm898, %v900, %v896
    %v902 = vmul.f32 1.0, %v901
    %v903 = vld [vmem:[%s1 + $0x1] sm:$0x1]
    %v904 = vld [vmem:[%s1 + $0x9] sm:$0x1]
    %v905 = vld [vmem:[%s1 + $0x11] sm:$0x1]
    %v906 = vld [vmem:[%s1 + $0x19] sm:$0x1]
    %v907 = vld [vmem:[%s1 + $0x21] sm:$0x1]
    %v908 = vld [vmem:[%s1 + $0x29] sm:$0x1]
    %v909 = vld [vmem:[%s1 + $0x31] sm:$0x1]
    %v910 = vld [vmem:[%s1 + $0x39] sm:$0x1]
    %911 = vmatpush.msra.mxu0 0.0
    %912 = vmatpush.msra.mxu0 0.0
    %913 = vmatpush.msra.mxu0 0.0
    %914 = vmatpush.msra.mxu0 0.0
    %915 = vmatpush.msra.mxu0 0.0
    %916 = vmatpush.msra.mxu0 0.0
    %917 = vmatpush.msra.mxu0 0.0
    %918 = vmatpush.msra.mxu0 0.0
    %919 = vmatpush.msra.mxu0 0.0
    %920 = vmatpush.msra.mxu0 0.0
    %921 = vmatpush.msra.mxu0 0.0
    %922 = vmatpush.msra.mxu0 0.0
    %923 = vmatpush.msra.mxu0 %v122
    %924 = vmatpush.msra.mxu0 %v121
    %925 = vmatpush.msra.mxu0 %v120
    %926 = vmatpush.msra.mxu0 %v119
    %927 = vmatmul.f32.gmra.mxu0 %v705
    %v928 = vpop.f32.mrf.mxu0
    %v929 = vadd.f32 0.0, %v928
    %930 = vdwg.mxu0
    %v932 = vrot.slane %v929, 1
    %v933 = vrot.slane %v929, 2
    %v934 = vrot.slane %v929, 3
    %v935 = vrot.slane %v929, 4
    %v936 = vrot.slane %v929, 5
    %v937 = vrot.slane %v929, 6
    %v938 = vrot.slane %v929, 7
    %v947 = vadd.f32 %v903, %v929
    %v948 = vadd.f32 %v904, %v932
    %v949 = vadd.f32 %v905, %v933
    %v950 = vadd.f32 %v906, %v934
    %v951 = vadd.f32 %v907, %v935
    %v952 = vadd.f32 %v908, %v936
    %v953 = vadd.f32 %v909, %v937
    %v954 = vadd.f32 %v910, %v938
    %v955 = vxor.u32 %v947, 2147483648
    %v956 = vxor.u32 %v948, 2147483648
    %v957 = vxor.u32 %v949, 2147483648
    %v958 = vxor.u32 %v950, 2147483648
    %v959 = vxor.u32 %v951, 2147483648
    %v960 = vxor.u32 %v952, 2147483648
    %v961 = vxor.u32 %v953, 2147483648
    %v962 = vxor.u32 %v954, 2147483648
    %v963 = vmul.f32 %v955, 1.442695
    %v964 = vpow.pop %v963
    %v965 = vmul.f32 %v956, 1.442695
    %v966 = vpow.pop %v965
    %v967 = vmul.f32 %v957, 1.442695
    %v968 = vpow.pop %v967
    %v969 = vmul.f32 %v958, 1.442695
    %v970 = vpow.pop %v969
    %v971 = vmul.f32 %v959, 1.442695
    %v972 = vpow.pop %v971
    %v973 = vmul.f32 %v960, 1.442695
    %v974 = vpow.pop %v973
    %v975 = vmul.f32 %v961, 1.442695
    %v976 = vpow.pop %v975
    %v977 = vmul.f32 %v962, 1.442695
    %v978 = vpow.pop %v977
    %v979 = vadd.f32 %v964, 1.0
    %v980 = vadd.f32 %v966, 1.0
    %v981 = vadd.f32 %v968, 1.0
    %v982 = vadd.f32 %v970, 1.0
    %v983 = vadd.f32 %v972, 1.0
    %v984 = vadd.f32 %v974, 1.0
    %v985 = vadd.f32 %v976, 1.0
    %v986 = vadd.f32 %v978, 1.0
    %v987 = vrcp.pop %v979
    %v988 = vmul.f32 %v979, %v987
    %v989 = vsub.f32 1.0, %v988
    %v990 = vmul.f32 %v987, %v989
    %v991 = vadd.f32 %v987, %v990
    %vm992 = vweird.f32 %v979
    %vm993 = vweird.f32 %v987
    %vm994 = vmor %vm992, %vm993
    %v995 = vsel %vm994, %v987, %v991
    %v996 = vand.u32 2147483647, %v979
    %vm997 = vcmp.eq.f32.partialorder %v996, 8.507059e+37
    %v998 = vand.u32 %v979, 2147483648
    %v999 = vor.u32 1.1754944e-38, %v998
    %v1000 = vsel %vm997, %v999, %v995
    %v1001 = vmul.f32 1.0, %v1000
    %v1002 = vrcp.pop %v980
    %v1003 = vmul.f32 %v980, %v1002
    %v1004 = vsub.f32 1.0, %v1003
    %v1005 = vmul.f32 %v1002, %v1004
    %v1006 = vadd.f32 %v1002, %v1005
    %vm1007 = vweird.f32 %v980
    %vm1008 = vweird.f32 %v1002
    %vm1009 = vmor %vm1007, %vm1008
    %v1010 = vsel %vm1009, %v1002, %v1006
    %v1011 = vand.u32 2147483647, %v980
    %vm1012 = vcmp.eq.f32.partialorder %v1011, 8.507059e+37
    %v1013 = vand.u32 %v980, 2147483648
    %v1014 = vor.u32 1.1754944e-38, %v1013
    %v1015 = vsel %vm1012, %v1014, %v1010
    %v1016 = vmul.f32 1.0, %v1015
    %v1017 = vrcp.pop %v981
    %v1018 = vmul.f32 %v981, %v1017
    %v1019 = vsub.f32 1.0, %v1018
    %v1020 = vmul.f32 %v1017, %v1019
    %v1021 = vadd.f32 %v1017, %v1020
    %vm1022 = vweird.f32 %v981
    %vm1023 = vweird.f32 %v1017
    %vm1024 = vmor %vm1022, %vm1023
    %v1025 = vsel %vm1024, %v1017, %v1021
    %v1026 = vand.u32 2147483647, %v981
    %vm1027 = vcmp.eq.f32.partialorder %v1026, 8.507059e+37
    %v1028 = vand.u32 %v981, 2147483648
    %v1029 = vor.u32 1.1754944e-38, %v1028
    %v1030 = vsel %vm1027, %v1029, %v1025
    %v1031 = vmul.f32 1.0, %v1030
    %v1032 = vrcp.pop %v982
    %v1033 = vmul.f32 %v982, %v1032
    %v1034 = vsub.f32 1.0, %v1033
    %v1035 = vmul.f32 %v1032, %v1034
    %v1036 = vadd.f32 %v1032, %v1035
    %vm1037 = vweird.f32 %v982
    %vm1038 = vweird.f32 %v1032
    %vm1039 = vmor %vm1037, %vm1038
    %v1040 = vsel %vm1039, %v1032, %v1036
    %v1041 = vand.u32 2147483647, %v982
    %vm1042 = vcmp.eq.f32.partialorder %v1041, 8.507059e+37
    %v1043 = vand.u32 %v982, 2147483648
    %v1044 = vor.u32 1.1754944e-38, %v1043
    %v1045 = vsel %vm1042, %v1044, %v1040
    %v1046 = vmul.f32 1.0, %v1045
    %v1047 = vrcp.pop %v983
    %v1048 = vmul.f32 %v983, %v1047
    %v1049 = vsub.f32 1.0, %v1048
    %v1050 = vmul.f32 %v1047, %v1049
    %v1051 = vadd.f32 %v1047, %v1050
    %vm1052 = vweird.f32 %v983
    %vm1053 = vweird.f32 %v1047
    %vm1054 = vmor %vm1052, %vm1053
    %v1055 = vsel %vm1054, %v1047, %v1051
    %v1056 = vand.u32 2147483647, %v983
    %vm1057 = vcmp.eq.f32.partialorder %v1056, 8.507059e+37
    %v1058 = vand.u32 %v983, 2147483648
    %v1059 = vor.u32 1.1754944e-38, %v1058
    %v1060 = vsel %vm1057, %v1059, %v1055
    %v1061 = vmul.f32 1.0, %v1060
    %v1062 = vrcp.pop %v984
    %v1063 = vmul.f32 %v984, %v1062
    %v1064 = vsub.f32 1.0, %v1063
    %v1065 = vmul.f32 %v1062, %v1064
    %v1066 = vadd.f32 %v1062, %v1065
    %vm1067 = vweird.f32 %v984
    %vm1068 = vweird.f32 %v1062
    %vm1069 = vmor %vm1067, %vm1068
    %v1070 = vsel %vm1069, %v1062, %v1066
    %v1071 = vand.u32 2147483647, %v984
    %vm1072 = vcmp.eq.f32.partialorder %v1071, 8.507059e+37
    %v1073 = vand.u32 %v984, 2147483648
    %v1074 = vor.u32 1.1754944e-38, %v1073
    %v1075 = vsel %vm1072, %v1074, %v1070
    %v1076 = vmul.f32 1.0, %v1075
    %v1077 = vrcp.pop %v985
    %v1078 = vmul.f32 %v985, %v1077
    %v1079 = vsub.f32 1.0, %v1078
    %v1080 = vmul.f32 %v1077, %v1079
    %v1081 = vadd.f32 %v1077, %v1080
    %vm1082 = vweird.f32 %v985
    %vm1083 = vweird.f32 %v1077
    %vm1084 = vmor %vm1082, %vm1083
    %v1085 = vsel %vm1084, %v1077, %v1081
    %v1086 = vand.u32 2147483647, %v985
    %vm1087 = vcmp.eq.f32.partialorder %v1086, 8.507059e+37
    %v1088 = vand.u32 %v985, 2147483648
    %v1089 = vor.u32 1.1754944e-38, %v1088
    %v1090 = vsel %vm1087, %v1089, %v1085
    %v1091 = vmul.f32 1.0, %v1090
    %v1092 = vrcp.pop %v986
    %v1093 = vmul.f32 %v986, %v1092
    %v1094 = vsub.f32 1.0, %v1093
    %v1095 = vmul.f32 %v1092, %v1094
    %v1096 = vadd.f32 %v1092, %v1095
    %vm1097 = vweird.f32 %v986
    %vm1098 = vweird.f32 %v1092
    %vm1099 = vmor %vm1097, %vm1098
    %v1100 = vsel %vm1099, %v1092, %v1096
    %v1101 = vand.u32 2147483647, %v986
    %vm1102 = vcmp.eq.f32.partialorder %v1101, 8.507059e+37
    %v1103 = vand.u32 %v986, 2147483648
    %v1104 = vor.u32 1.1754944e-38, %v1103
    %v1105 = vsel %vm1102, %v1104, %v1100
    %v1106 = vmul.f32 1.0, %v1105
    %v1107 = vld [vmem:[%s2 + $0x1] sm:$0x1]
    %v1108 = vld [vmem:[%s2 + $0x9] sm:$0x1]
    %v1109 = vld [vmem:[%s2 + $0x11] sm:$0x1]
    %v1110 = vld [vmem:[%s2 + $0x19] sm:$0x1]
    %v1111 = vld [vmem:[%s2 + $0x21] sm:$0x1]
    %v1112 = vld [vmem:[%s2 + $0x29] sm:$0x1]
    %v1113 = vld [vmem:[%s2 + $0x31] sm:$0x1]
    %v1114 = vld [vmem:[%s2 + $0x39] sm:$0x1]
    %1115 = vmatpush.msra.mxu0 0.0
    %1116 = vmatpush.msra.mxu0 0.0
    %1117 = vmatpush.msra.mxu0 0.0
    %1118 = vmatpush.msra.mxu0 0.0
    %1119 = vmatpush.msra.mxu0 0.0
    %1120 = vmatpush.msra.mxu0 0.0
    %1121 = vmatpush.msra.mxu0 0.0
    %1122 = vmatpush.msra.mxu0 0.0
    %1123 = vmatpush.msra.mxu0 0.0
    %1124 = vmatpush.msra.mxu0 0.0
    %1125 = vmatpush.msra.mxu0 0.0
    %1126 = vmatpush.msra.mxu0 0.0
    %1127 = vmatpush.msra.mxu0 %v126
    %1128 = vmatpush.msra.mxu0 %v125
    %1129 = vmatpush.msra.mxu0 %v124
    %1130 = vmatpush.msra.mxu0 %v123
    %1131 = vmatmul.f32.gmra.mxu0 %v705
    %v1132 = vpop.f32.mrf.mxu0
    %v1133 = vadd.f32 %v550, %v1132
    %1134 = vdwg.mxu0
    %v1136 = vrot.slane %v1133, 1
    %v1137 = vrot.slane %v1133, 2
    %v1138 = vrot.slane %v1133, 3
    %v1139 = vrot.slane %v1133, 4
    %v1140 = vrot.slane %v1133, 5
    %v1141 = vrot.slane %v1133, 6
    %v1142 = vrot.slane %v1133, 7
    %v1151 = vmul.f32 %v797, %v1133
    %v1152 = vmul.f32 %v812, %v1136
    %v1153 = vmul.f32 %v827, %v1137
    %v1154 = vmul.f32 %v842, %v1138
    %v1155 = vmul.f32 %v857, %v1139
    %v1156 = vmul.f32 %v872, %v1140
    %v1157 = vmul.f32 %v887, %v1141
    %v1158 = vmul.f32 %v902, %v1142
    %v1159 = vadd.f32 %v1107, %v1151
    %v1160 = vadd.f32 %v1108, %v1152
    %v1161 = vadd.f32 %v1109, %v1153
    %v1162 = vadd.f32 %v1110, %v1154
    %v1163 = vadd.f32 %v1111, %v1155
    %v1164 = vadd.f32 %v1112, %v1156
    %v1165 = vadd.f32 %v1113, %v1157
    %v1166 = vadd.f32 %v1114, %v1158
    %v1167 = vtanh.pop %v1159
    %v1168 = vtanh.pop %v1160
    %v1169 = vtanh.pop %v1161
    %v1170 = vtanh.pop %v1162
    %v1171 = vtanh.pop %v1163
    %v1172 = vtanh.pop %v1164
    %v1173 = vtanh.pop %v1165
    %v1174 = vtanh.pop %v1166
    %v1175 = vsub.f32 1.0, %v1001
    %v1176 = vsub.f32 1.0, %v1016
    %v1177 = vsub.f32 1.0, %v1031
    %v1178 = vsub.f32 1.0, %v1046
    %v1179 = vsub.f32 1.0, %v1061
    %v1180 = vsub.f32 1.0, %v1076
    %v1181 = vsub.f32 1.0, %v1091
    %v1182 = vsub.f32 1.0, %v1106
    %v1183 = vmul.f32 %v1175, %v1167
    %v1184 = vmul.f32 %v1176, %v1168
    %v1185 = vmul.f32 %v1177, %v1169
    %v1186 = vmul.f32 %v1178, %v1170
    %v1187 = vmul.f32 %v1179, %v1171
    %v1188 = vmul.f32 %v1180, %v1172
    %v1189 = vmul.f32 %v1181, %v1173
    %v1190 = vmul.f32 %v1182, %v1174
    %v1191 = vmul.f32 %v1001, %v651
    %v1192 = vmul.f32 %v1016, %v652
    %v1193 = vmul.f32 %v1031, %v653
    %v1194 = vmul.f32 %v1046, %v654
    %v1195 = vmul.f32 %v1061, %v655
    %v1196 = vmul.f32 %v1076, %v656
    %v1197 = vmul.f32 %v1091, %v657
    %v1198 = vmul.f32 %v1106, %v658
    %v1199 = vadd.f32 %v1183, %v1191
    %v1200 = vadd.f32 %v1184, %v1192
    %v1201 = vadd.f32 %v1185, %v1193
    %v1202 = vadd.f32 %v1186, %v1194
    %v1203 = vadd.f32 %v1187, %v1195
    %v1204 = vadd.f32 %v1188, %v1196
    %v1205 = vadd.f32 %v1189, %v1197
    %v1206 = vadd.f32 %v1190, %v1198
    %1207 = vst.msk [vmem:[#allocation3 + $0x1] sm:$0x1] %vm659, %v1199
    %1208 = vst.msk [vmem:[#allocation3 + $0x9] sm:$0x1] %vm659, %v1200
    %1209 = vst.msk [vmem:[#allocation3 + $0x11] sm:$0x1] %vm659, %v1201
    %1210 = vst.msk [vmem:[#allocation3 + $0x19] sm:$0x1] %vm659, %v1202
    %1211 = vst.msk [vmem:[#allocation3 + $0x21] sm:$0x1] %vm659, %v1203
    %1212 = vst.msk [vmem:[#allocation3 + $0x29] sm:$0x1] %vm659, %v1204
    %1213 = vst.msk [vmem:[#allocation3 + $0x31] sm:$0x1] %vm659, %v1205
    %1214 = vst.msk [vmem:[#allocation3 + $0x39] sm:$0x1] %vm659, %v1206
    %v1215 = vld [vmem:[%s0 + $0x2] sm:$0x1]
    %v1216 = vld [vmem:[%s0 + $0xa] sm:$0x1]
    %v1217 = vld [vmem:[%s0 + $0x12] sm:$0x1]
    %v1218 = vld [vmem:[%s0 + $0x1a] sm:$0x1]
    %v1219 = vld [vmem:[%s0 + $0x22] sm:$0x1]
    %v1220 = vld [vmem:[%s0 + $0x2a] sm:$0x1]
    %v1221 = vld [vmem:[%s0 + $0x32] sm:$0x1]
    %v1222 = vld [vmem:[%s0 + $0x3a] sm:$0x1]
    %v1231 = vrot.slane %v1200, 7
    %v1232 = vsel %vm685, %v1231, %v1199
    %v1233 = vrot.slane %v1201, 6
    %v1234 = vsel %vm688, %v1233, %v1232
    %v1235 = vrot.slane %v1202, 5
    %v1236 = vsel %vm691, %v1235, %v1234
    %v1237 = vrot.slane %v1203, 4
    %v1238 = vsel %vm694, %v1237, %v1236
    %v1239 = vrot.slane %v1204, 3
    %v1240 = vsel %vm697, %v1239, %v1238
    %v1241 = vrot.slane %v1205, 2
    %v1242 = vsel %vm700, %v1241, %v1240
    %v1243 = vrot.slane %v1206, 1
    %v1244 = vsel %vm703, %v1243, %v1242
    %v1245 = vsel %vm137, %v1244, 0
    %1247 = vmatpush.msra.mxu0 0.0
    %1248 = vmatpush.msra.mxu0 0.0
    %1249 = vmatpush.msra.mxu0 0.0
    %1250 = vmatpush.msra.mxu0 0.0
    %1251 = vmatpush.msra.mxu0 0.0
    %1252 = vmatpush.msra.mxu0 0.0
    %1253 = vmatpush.msra.mxu0 0.0
    %1254 = vmatpush.msra.mxu0 0.0
    %1255 = vmatpush.msra.mxu0 0.0
    %1256 = vmatpush.msra.mxu0 0.0
    %1257 = vmatpush.msra.mxu0 0.0
    %1258 = vmatpush.msra.mxu0 0.0
    %1259 = vmatpush.msra.mxu0 %v118
    %1260 = vmatpush.msra.mxu0 %v117
    %1261 = vmatpush.msra.mxu0 %v116
    %1262 = vmatpush.msra.mxu0 %v115
    %1263 = vmatmul.f32.gmra.mxu0 %v1245
    %v1264 = vpop.f32.mrf.mxu0
    %v1265 = vadd.f32 0.0, %v1264
    %1266 = vdwg.mxu0
    %v1268 = vrot.slane %v1265, 1
    %v1269 = vrot.slane %v1265, 2
    %v1270 = vrot.slane %v1265, 3
    %v1271 = vrot.slane %v1265, 4
    %v1272 = vrot.slane %v1265, 5
    %v1273 = vrot.slane %v1265, 6
    %v1274 = vrot.slane %v1265, 7
    %v1283 = vadd.f32 %v1215, %v1265
    %v1284 = vadd.f32 %v1216, %v1268
    %v1285 = vadd.f32 %v1217, %v1269
    %v1286 = vadd.f32 %v1218, %v1270
    %v1287 = vadd.f32 %v1219, %v1271
    %v1288 = vadd.f32 %v1220, %v1272
    %v1289 = vadd.f32 %v1221, %v1273
    %v1290 = vadd.f32 %v1222, %v1274
    %v1291 = vxor.u32 %v1283, 2147483648
    %v1292 = vxor.u32 %v1284, 2147483648
    %v1293 = vxor.u32 %v1285, 2147483648
    %v1294 = vxor.u32 %v1286, 2147483648
    %v1295 = vxor.u32 %v1287, 2147483648
    %v1296 = vxor.u32 %v1288, 2147483648
    %v1297 = vxor.u32 %v1289, 2147483648
    %v1298 = vxor.u32 %v1290, 2147483648
    %v1299 = vmul.f32 %v1291, 1.442695
    %v1300 = vpow.pop %v1299
    %v1301 = vmul.f32 %v1292, 1.442695
    %v1302 = vpow.pop %v1301
    %v1303 = vmul.f32 %v1293, 1.442695
    %v1304 = vpow.pop %v1303
    %v1305 = vmul.f32 %v1294, 1.442695
    %v1306 = vpow.pop %v1305
    %v1307 = vmul.f32 %v1295, 1.442695
    %v1308 = vpow.pop %v1307
    %v1309 = vmul.f32 %v1296, 1.442695
    %v1310 = vpow.pop %v1309
    %v1311 = vmul.f32 %v1297, 1.442695
    %v1312 = vpow.pop %v1311
    %v1313 = vmul.f32 %v1298, 1.442695
    %v1314 = vpow.pop %v1313
    %v1315 = vadd.f32 %v1300, 1.0
    %v1316 = vadd.f32 %v1302, 1.0
    %v1317 = vadd.f32 %v1304, 1.0
    %v1318 = vadd.f32 %v1306, 1.0
    %v1319 = vadd.f32 %v1308, 1.0
    %v1320 = vadd.f32 %v1310, 1.0
    %v1321 = vadd.f32 %v1312, 1.0
    %v1322 = vadd.f32 %v1314, 1.0
    %v1323 = vrcp.pop %v1315
    %v1324 = vmul.f32 %v1315, %v1323
    %v1325 = vsub.f32 1.0, %v1324
    %v1326 = vmul.f32 %v1323, %v1325
    %v1327 = vadd.f32 %v1323, %v1326
    %vm1328 = vweird.f32 %v1315
    %vm1329 = vweird.f32 %v1323
    %vm1330 = vmor %vm1328, %vm1329
    %v1331 = vsel %vm1330, %v1323, %v1327
    %v1332 = vand.u32 2147483647, %v1315
    %vm1333 = vcmp.eq.f32.partialorder %v1332, 8.507059e+37
    %v1334 = vand.u32 %v1315, 2147483648
    %v1335 = vor.u32 1.1754944e-38, %v1334
    %v1336 = vsel %vm1333, %v1335, %v1331
    %v1337 = vmul.f32 1.0, %v1336
    %v1338 = vrcp.pop %v1316
    %v1339 = vmul.f32 %v1316, %v1338
    %v1340 = vsub.f32 1.0, %v1339
    %v1341 = vmul.f32 %v1338, %v1340
    %v1342 = vadd.f32 %v1338, %v1341
    %vm1343 = vweird.f32 %v1316
    %vm1344 = vweird.f32 %v1338
    %vm1345 = vmor %vm1343, %vm1344
    %v1346 = vsel %vm1345, %v1338, %v1342
    %v1347 = vand.u32 2147483647, %v1316
    %vm1348 = vcmp.eq.f32.partialorder %v1347, 8.507059e+37
    %v1349 = vand.u32 %v1316, 2147483648
    %v1350 = vor.u32 1.1754944e-38, %v1349
    %v1351 = vsel %vm1348, %v1350, %v1346
    %v1352 = vmul.f32 1.0, %v1351
    %v1353 = vrcp.pop %v1317
    %v1354 = vmul.f32 %v1317, %v1353
    %v1355 = vsub.f32 1.0, %v1354
    %v1356 = vmul.f32 %v1353, %v1355
    %v1357 = vadd.f32 %v1353, %v1356
    %vm1358 = vweird.f32 %v1317
    %vm1359 = vweird.f32 %v1353
    %vm1360 = vmor %vm1358, %vm1359
    %v1361 = vsel %vm1360, %v1353, %v1357
    %v1362 = vand.u32 2147483647, %v1317
    %vm1363 = vcmp.eq.f32.partialorder %v1362, 8.507059e+37
    %v1364 = vand.u32 %v1317, 2147483648
    %v1365 = vor.u32 1.1754944e-38, %v1364
    %v1366 = vsel %vm1363, %v1365, %v1361
    %v1367 = vmul.f32 1.0, %v1366
    %v1368 = vrcp.pop %v1318
    %v1369 = vmul.f32 %v1318, %v1368
    %v1370 = vsub.f32 1.0, %v1369
    %v1371 = vmul.f32 %v1368, %v1370
    %v1372 = vadd.f32 %v1368, %v1371
    %vm1373 = vweird.f32 %v1318
    %vm1374 = vweird.f32 %v1368
    %vm1375 = vmor %vm1373, %vm1374
    %v1376 = vsel %vm1375, %v1368, %v1372
    %v1377 = vand.u32 2147483647, %v1318
    %vm1378 = vcmp.eq.f32.partialorder %v1377, 8.507059e+37
    %v1379 = vand.u32 %v1318, 2147483648
    %v1380 = vor.u32 1.1754944e-38, %v1379
    %v1381 = vsel %vm1378, %v1380, %v1376
    %v1382 = vmul.f32 1.0, %v1381
    %v1383 = vrcp.pop %v1319
    %v1384 = vmul.f32 %v1319, %v1383
    %v1385 = vsub.f32 1.0, %v1384
    %v1386 = vmul.f32 %v1383, %v1385
    %v1387 = vadd.f32 %v1383, %v1386
    %vm1388 = vweird.f32 %v1319
    %vm1389 = vweird.f32 %v1383
    %vm1390 = vmor %vm1388, %vm1389
    %v1391 = vsel %vm1390, %v1383, %v1387
    %v1392 = vand.u32 2147483647, %v1319
    %vm1393 = vcmp.eq.f32.partialorder %v1392, 8.507059e+37
    %v1394 = vand.u32 %v1319, 2147483648
    %v1395 = vor.u32 1.1754944e-38, %v1394
    %v1396 = vsel %vm1393, %v1395, %v1391
    %v1397 = vmul.f32 1.0, %v1396
    %v1398 = vrcp.pop %v1320
    %v1399 = vmul.f32 %v1320, %v1398
    %v1400 = vsub.f32 1.0, %v1399
    %v1401 = vmul.f32 %v1398, %v1400
    %v1402 = vadd.f32 %v1398, %v1401
    %vm1403 = vweird.f32 %v1320
    %vm1404 = vweird.f32 %v1398
    %vm1405 = vmor %vm1403, %vm1404
    %v1406 = vsel %vm1405, %v1398, %v1402
    %v1407 = vand.u32 2147483647, %v1320
    %vm1408 = vcmp.eq.f32.partialorder %v1407, 8.507059e+37
    %v1409 = vand.u32 %v1320, 2147483648
    %v1410 = vor.u32 1.1754944e-38, %v1409
    %v1411 = vsel %vm1408, %v1410, %v1406
    %v1412 = vmul.f32 1.0, %v1411
    %v1413 = vrcp.pop %v1321
    %v1414 = vmul.f32 %v1321, %v1413
    %v1415 = vsub.f32 1.0, %v1414
    %v1416 = vmul.f32 %v1413, %v1415
    %v1417 = vadd.f32 %v1413, %v1416
    %vm1418 = vweird.f32 %v1321
    %vm1419 = vweird.f32 %v1413
    %vm1420 = vmor %vm1418, %vm1419
    %v1421 = vsel %vm1420, %v1413, %v1417
    %v1422 = vand.u32 2147483647, %v1321
    %vm1423 = vcmp.eq.f32.partialorder %v1422, 8.507059e+37
    %v1424 = vand.u32 %v1321, 2147483648
    %v1425 = vor.u32 1.1754944e-38, %v1424
    %v1426 = vsel %vm1423, %v1425, %v1421
    %v1427 = vmul.f32 1.0, %v1426
    %v1428 = vrcp.pop %v1322
    %v1429 = vmul.f32 %v1322, %v1428
    %v1430 = vsub.f32 1.0, %v1429
    %v1431 = vmul.f32 %v1428, %v1430
    %v1432 = vadd.f32 %v1428, %v1431
    %vm1433 = vweird.f32 %v1322
    %vm1434 = vweird.f32 %v1428
    %vm1435 = vmor %vm1433, %vm1434
    %v1436 = vsel %vm1435, %v1428, %v1432
    %v1437 = vand.u32 2147483647, %v1322
    %vm1438 = vcmp.eq.f32.partialorder %v1437, 8.507059e+37
    %v1439 = vand.u32 %v1322, 2147483648
    %v1440 = vor.u32 1.1754944e-38, %v1439
    %v1441 = vsel %vm1438, %v1440, %v1436
    %v1442 = vmul.f32 1.0, %v1441
    %v1443 = vld [vmem:[%s1 + $0x2] sm:$0x1]
    %v1444 = vld [vmem:[%s1 + $0xa] sm:$0x1]
    %v1445 = vld [vmem:[%s1 + $0x12] sm:$0x1]
    %v1446 = vld [vmem:[%s1 + $0x1a] sm:$0x1]
    %v1447 = vld [vmem:[%s1 + $0x22] sm:$0x1]
    %v1448 = vld [vmem:[%s1 + $0x2a] sm:$0x1]
    %v1449 = vld [vmem:[%s1 + $0x32] sm:$0x1]
    %v1450 = vld [vmem:[%s1 + $0x3a] sm:$0x1]
    %1451 = vmatpush.msra.mxu0 0.0
    %1452 = vmatpush.msra.mxu0 0.0
    %1453 = vmatpush.msra.mxu0 0.0
    %1454 = vmatpush.msra.mxu0 0.0
    %1455 = vmatpush.msra.mxu0 0.0
    %1456 = vmatpush.msra.mxu0 0.0
    %1457 = vmatpush.msra.mxu0 0.0
    %1458 = vmatpush.msra.mxu0 0.0
    %1459 = vmatpush.msra.mxu0 0.0
    %1460 = vmatpush.msra.mxu0 0.0
    %1461 = vmatpush.msra.mxu0 0.0
    %1462 = vmatpush.msra.mxu0 0.0
    %1463 = vmatpush.msra.mxu0 %v122
    %1464 = vmatpush.msra.mxu0 %v121
    %1465 = vmatpush.msra.mxu0 %v120
    %1466 = vmatpush.msra.mxu0 %v119
    %1467 = vmatmul.f32.gmra.mxu0 %v1245
    %v1468 = vpop.f32.mrf.mxu0
    %v1469 = vadd.f32 0.0, %v1468
    %1470 = vdwg.mxu0
    %v1472 = vrot.slane %v1469, 1
    %v1473 = vrot.slane %v1469, 2
    %v1474 = vrot.slane %v1469, 3
    %v1475 = vrot.slane %v1469, 4
    %v1476 = vrot.slane %v1469, 5
    %v1477 = vrot.slane %v1469, 6
    %v1478 = vrot.slane %v1469, 7
    %v1487 = vadd.f32 %v1443, %v1469
    %v1488 = vadd.f32 %v1444, %v1472
    %v1489 = vadd.f32 %v1445, %v1473
    %v1490 = vadd.f32 %v1446, %v1474
    %v1491 = vadd.f32 %v1447, %v1475
    %v1492 = vadd.f32 %v1448, %v1476
    %v1493 = vadd.f32 %v1449, %v1477
    %v1494 = vadd.f32 %v1450, %v1478
    %v1495 = vxor.u32 %v1487, 2147483648
    %v1496 = vxor.u32 %v1488, 2147483648
    %v1497 = vxor.u32 %v1489, 2147483648
    %v1498 = vxor.u32 %v1490, 2147483648
    %v1499 = vxor.u32 %v1491, 2147483648
    %v1500 = vxor.u32 %v1492, 2147483648
    %v1501 = vxor.u32 %v1493, 2147483648
    %v1502 = vxor.u32 %v1494, 2147483648
    %v1503 = vmul.f32 %v1495, 1.442695
    %v1504 = vpow.pop %v1503
    %v1505 = vmul.f32 %v1496, 1.442695
    %v1506 = vpow.pop %v1505
    %v1507 = vmul.f32 %v1497, 1.442695
    %v1508 = vpow.pop %v1507
    %v1509 = vmul.f32 %v1498, 1.442695
    %v1510 = vpow.pop %v1509
    %v1511 = vmul.f32 %v1499, 1.442695
    %v1512 = vpow.pop %v1511
    %v1513 = vmul.f32 %v1500, 1.442695
    %v1514 = vpow.pop %v1513
    %v1515 = vmul.f32 %v1501, 1.442695
    %v1516 = vpow.pop %v1515
    %v1517 = vmul.f32 %v1502, 1.442695
    %v1518 = vpow.pop %v1517
    %v1519 = vadd.f32 %v1504, 1.0
    %v1520 = vadd.f32 %v1506, 1.0
    %v1521 = vadd.f32 %v1508, 1.0
    %v1522 = vadd.f32 %v1510, 1.0
    %v1523 = vadd.f32 %v1512, 1.0
    %v1524 = vadd.f32 %v1514, 1.0
    %v1525 = vadd.f32 %v1516, 1.0
    %v1526 = vadd.f32 %v1518, 1.0
    %v1527 = vrcp.pop %v1519
    %v1528 = vmul.f32 %v1519, %v1527
    %v1529 = vsub.f32 1.0, %v1528
    %v1530 = vmul.f32 %v1527, %v1529
    %v1531 = vadd.f32 %v1527, %v1530
    %vm1532 = vweird.f32 %v1519
    %vm1533 = vweird.f32 %v1527
    %vm1534 = vmor %vm1532, %vm1533
    %v1535 = vsel %vm1534, %v1527, %v1531
    %v1536 = vand.u32 2147483647, %v1519
    %vm1537 = vcmp.eq.f32.partialorder %v1536, 8.507059e+37
    %v1538 = vand.u32 %v1519, 2147483648
    %v1539 = vor.u32 1.1754944e-38, %v1538
    %v1540 = vsel %vm1537, %v1539, %v1535
    %v1541 = vmul.f32 1.0, %v1540
    %v1542 = vrcp.pop %v1520
    %v1543 = vmul.f32 %v1520, %v1542
    %v1544 = vsub.f32 1.0, %v1543
    %v1545 = vmul.f32 %v1542, %v1544
    %v1546 = vadd.f32 %v1542, %v1545
    %vm1547 = vweird.f32 %v1520
    %vm1548 = vweird.f32 %v1542
    %vm1549 = vmor %vm1547, %vm1548
    %v1550 = vsel %vm1549, %v1542, %v1546
    %v1551 = vand.u32 2147483647, %v1520
    %vm1552 = vcmp.eq.f32.partialorder %v1551, 8.507059e+37
    %v1553 = vand.u32 %v1520, 2147483648
    %v1554 = vor.u32 1.1754944e-38, %v1553
    %v1555 = vsel %vm1552, %v1554, %v1550
    %v1556 = vmul.f32 1.0, %v1555
    %v1557 = vrcp.pop %v1521
    %v1558 = vmul.f32 %v1521, %v1557
    %v1559 = vsub.f32 1.0, %v1558
    %v1560 = vmul.f32 %v1557, %v1559
    %v1561 = vadd.f32 %v1557, %v1560
    %vm1562 = vweird.f32 %v1521
    %vm1563 = vweird.f32 %v1557
    %vm1564 = vmor %vm1562, %vm1563
    %v1565 = vsel %vm1564, %v1557, %v1561
    %v1566 = vand.u32 2147483647, %v1521
    %vm1567 = vcmp.eq.f32.partialorder %v1566, 8.507059e+37
    %v1568 = vand.u32 %v1521, 2147483648
    %v1569 = vor.u32 1.1754944e-38, %v1568
    %v1570 = vsel %vm1567, %v1569, %v1565
    %v1571 = vmul.f32 1.0, %v1570
    %v1572 = vrcp.pop %v1522
    %v1573 = vmul.f32 %v1522, %v1572
    %v1574 = vsub.f32 1.0, %v1573
    %v1575 = vmul.f32 %v1572, %v1574
    %v1576 = vadd.f32 %v1572, %v1575
    %vm1577 = vweird.f32 %v1522
    %vm1578 = vweird.f32 %v1572
    %vm1579 = vmor %vm1577, %vm1578
    %v1580 = vsel %vm1579, %v1572, %v1576
    %v1581 = vand.u32 2147483647, %v1522
    %vm1582 = vcmp.eq.f32.partialorder %v1581, 8.507059e+37
    %v1583 = vand.u32 %v1522, 2147483648
    %v1584 = vor.u32 1.1754944e-38, %v1583
    %v1585 = vsel %vm1582, %v1584, %v1580
    %v1586 = vmul.f32 1.0, %v1585
    %v1587 = vrcp.pop %v1523
    %v1588 = vmul.f32 %v1523, %v1587
    %v1589 = vsub.f32 1.0, %v1588
    %v1590 = vmul.f32 %v1587, %v1589
    %v1591 = vadd.f32 %v1587, %v1590
    %vm1592 = vweird.f32 %v1523
    %vm1593 = vweird.f32 %v1587
    %vm1594 = vmor %vm1592, %vm1593
    %v1595 = vsel %vm1594, %v1587, %v1591
    %v1596 = vand.u32 2147483647, %v1523
    %vm1597 = vcmp.eq.f32.partialorder %v1596, 8.507059e+37
    %v1598 = vand.u32 %v1523, 2147483648
    %v1599 = vor.u32 1.1754944e-38, %v1598
    %v1600 = vsel %vm1597, %v1599, %v1595
    %v1601 = vmul.f32 1.0, %v1600
    %v1602 = vrcp.pop %v1524
    %v1603 = vmul.f32 %v1524, %v1602
    %v1604 = vsub.f32 1.0, %v1603
    %v1605 = vmul.f32 %v1602, %v1604
    %v1606 = vadd.f32 %v1602, %v1605
    %vm1607 = vweird.f32 %v1524
    %vm1608 = vweird.f32 %v1602
    %vm1609 = vmor %vm1607, %vm1608
    %v1610 = vsel %vm1609, %v1602, %v1606
    %v1611 = vand.u32 2147483647, %v1524
    %vm1612 = vcmp.eq.f32.partialorder %v1611, 8.507059e+37
    %v1613 = vand.u32 %v1524, 2147483648
    %v1614 = vor.u32 1.1754944e-38, %v1613
    %v1615 = vsel %vm1612, %v1614, %v1610
    %v1616 = vmul.f32 1.0, %v1615
    %v1617 = vrcp.pop %v1525
    %v1618 = vmul.f32 %v1525, %v1617
    %v1619 = vsub.f32 1.0, %v1618
    %v1620 = vmul.f32 %v1617, %v1619
    %v1621 = vadd.f32 %v1617, %v1620
    %vm1622 = vweird.f32 %v1525
    %vm1623 = vweird.f32 %v1617
    %vm1624 = vmor %vm1622, %vm1623
    %v1625 = vsel %vm1624, %v1617, %v1621
    %v1626 = vand.u32 2147483647, %v1525
    %vm1627 = vcmp.eq.f32.partialorder %v1626, 8.507059e+37
    %v1628 = vand.u32 %v1525, 2147483648
    %v1629 = vor.u32 1.1754944e-38, %v1628
    %v1630 = vsel %vm1627, %v1629, %v1625
    %v1631 = vmul.f32 1.0, %v1630
    %v1632 = vrcp.pop %v1526
    %v1633 = vmul.f32 %v1526, %v1632
    %v1634 = vsub.f32 1.0, %v1633
    %v1635 = vmul.f32 %v1632, %v1634
    %v1636 = vadd.f32 %v1632, %v1635
    %vm1637 = vweird.f32 %v1526
    %vm1638 = vweird.f32 %v1632
    %vm1639 = vmor %vm1637, %vm1638
    %v1640 = vsel %vm1639, %v1632, %v1636
    %v1641 = vand.u32 2147483647, %v1526
    %vm1642 = vcmp.eq.f32.partialorder %v1641, 8.507059e+37
    %v1643 = vand.u32 %v1526, 2147483648
    %v1644 = vor.u32 1.1754944e-38, %v1643
    %v1645 = vsel %vm1642, %v1644, %v1640
    %v1646 = vmul.f32 1.0, %v1645
    %v1647 = vld [vmem:[%s2 + $0x2] sm:$0x1]
    %v1648 = vld [vmem:[%s2 + $0xa] sm:$0x1]
    %v1649 = vld [vmem:[%s2 + $0x12] sm:$0x1]
    %v1650 = vld [vmem:[%s2 + $0x1a] sm:$0x1]
    %v1651 = vld [vmem:[%s2 + $0x22] sm:$0x1]
    %v1652 = vld [vmem:[%s2 + $0x2a] sm:$0x1]
    %v1653 = vld [vmem:[%s2 + $0x32] sm:$0x1]
    %v1654 = vld [vmem:[%s2 + $0x3a] sm:$0x1]
    %1655 = vmatpush.msra.mxu0 0.0
    %1656 = vmatpush.msra.mxu0 0.0
    %1657 = vmatpush.msra.mxu0 0.0
    %1658 = vmatpush.msra.mxu0 0.0
    %1659 = vmatpush.msra.mxu0 0.0
    %1660 = vmatpush.msra.mxu0 0.0
    %1661 = vmatpush.msra.mxu0 0.0
    %1662 = vmatpush.msra.mxu0 0.0
    %1663 = vmatpush.msra.mxu0 0.0
    %1664 = vmatpush.msra.mxu0 0.0
    %1665 = vmatpush.msra.mxu0 0.0
    %1666 = vmatpush.msra.mxu0 0.0
    %1667 = vmatpush.msra.mxu0 %v126
    %1668 = vmatpush.msra.mxu0 %v125
    %1669 = vmatpush.msra.mxu0 %v124
    %1670 = vmatpush.msra.mxu0 %v123
    %1671 = vmatmul.f32.gmra.mxu0 %v1245
    %v1672 = vpop.f32.mrf.mxu0
    %v1673 = vadd.f32 %v550, %v1672
    %1674 = vdwg.mxu0
    %v1676 = vrot.slane %v1673, 1
    %v1677 = vrot.slane %v1673, 2
    %v1678 = vrot.slane %v1673, 3
    %v1679 = vrot.slane %v1673, 4
    %v1680 = vrot.slane %v1673, 5
    %v1681 = vrot.slane %v1673, 6
    %v1682 = vrot.slane %v1673, 7
    %v1691 = vmul.f32 %v1337, %v1673
    %v1692 = vmul.f32 %v1352, %v1676
    %v1693 = vmul.f32 %v1367, %v1677
    %v1694 = vmul.f32 %v1382, %v1678
    %v1695 = vmul.f32 %v1397, %v1679
    %v1696 = vmul.f32 %v1412, %v1680
    %v1697 = vmul.f32 %v1427, %v1681
    %v1698 = vmul.f32 %v1442, %v1682
    %v1699 = vadd.f32 %v1647, %v1691
    %v1700 = vadd.f32 %v1648, %v1692
    %v1701 = vadd.f32 %v1649, %v1693
    %v1702 = vadd.f32 %v1650, %v1694
    %v1703 = vadd.f32 %v1651, %v1695
    %v1704 = vadd.f32 %v1652, %v1696
    %v1705 = vadd.f32 %v1653, %v1697
    %v1706 = vadd.f32 %v1654, %v1698
    %v1707 = vtanh.pop %v1699
    %v1708 = vtanh.pop %v1700
    %v1709 = vtanh.pop %v1701
    %v1710 = vtanh.pop %v1702
    %v1711 = vtanh.pop %v1703
    %v1712 = vtanh.pop %v1704
    %v1713 = vtanh.pop %v1705
    %v1714 = vtanh.pop %v1706
    %v1715 = vsub.f32 1.0, %v1541
    %v1716 = vsub.f32 1.0, %v1556
    %v1717 = vsub.f32 1.0, %v1571
    %v1718 = vsub.f32 1.0, %v1586
    %v1719 = vsub.f32 1.0, %v1601
    %v1720 = vsub.f32 1.0, %v1616
    %v1721 = vsub.f32 1.0, %v1631
    %v1722 = vsub.f32 1.0, %v1646
    %v1723 = vmul.f32 %v1715, %v1707
    %v1724 = vmul.f32 %v1716, %v1708
    %v1725 = vmul.f32 %v1717, %v1709
    %v1726 = vmul.f32 %v1718, %v1710
    %v1727 = vmul.f32 %v1719, %v1711
    %v1728 = vmul.f32 %v1720, %v1712
    %v1729 = vmul.f32 %v1721, %v1713
    %v1730 = vmul.f32 %v1722, %v1714
    %v1731 = vmul.f32 %v1541, %v1199
    %v1732 = vmul.f32 %v1556, %v1200
    %v1733 = vmul.f32 %v1571, %v1201
    %v1734 = vmul.f32 %v1586, %v1202
    %v1735 = vmul.f32 %v1601, %v1203
    %v1736 = vmul.f32 %v1616, %v1204
    %v1737 = vmul.f32 %v1631, %v1205
    %v1738 = vmul.f32 %v1646, %v1206
    %v1739 = vadd.f32 %v1723, %v1731
    %v1740 = vadd.f32 %v1724, %v1732
    %v1741 = vadd.f32 %v1725, %v1733
    %v1742 = vadd.f32 %v1726, %v1734
    %v1743 = vadd.f32 %v1727, %v1735
    %v1744 = vadd.f32 %v1728, %v1736
    %v1745 = vadd.f32 %v1729, %v1737
    %v1746 = vadd.f32 %v1730, %v1738
    %1747 = vst.msk [vmem:[#allocation3 + $0x2] sm:$0x1] %vm659, %v1739
    %1748 = vst.msk [vmem:[#allocation3 + $0xa] sm:$0x1] %vm659, %v1740
    %1749 = vst.msk [vmem:[#allocation3 + $0x12] sm:$0x1] %vm659, %v1741
    %1750 = vst.msk [vmem:[#allocation3 + $0x1a] sm:$0x1] %vm659, %v1742
    %1751 = vst.msk [vmem:[#allocation3 + $0x22] sm:$0x1] %vm659, %v1743
    %1752 = vst.msk [vmem:[#allocation3 + $0x2a] sm:$0x1] %vm659, %v1744
    %1753 = vst.msk [vmem:[#allocation3 + $0x32] sm:$0x1] %vm659, %v1745
    %1754 = vst.msk [vmem:[#allocation3 + $0x3a] sm:$0x1] %vm659, %v1746
    %v1755 = vld [vmem:[%s0 + $0x3] sm:$0x1]
    %v1756 = vld [vmem:[%s0 + $0xb] sm:$0x1]
    %v1757 = vld [vmem:[%s0 + $0x13] sm:$0x1]
    %v1758 = vld [vmem:[%s0 + $0x1b] sm:$0x1]
    %v1759 = vld [vmem:[%s0 + $0x23] sm:$0x1]
    %v1760 = vld [vmem:[%s0 + $0x2b] sm:$0x1]
    %v1761 = vld [vmem:[%s0 + $0x33] sm:$0x1]
    %v1762 = vld [vmem:[%s0 + $0x3b] sm:$0x1]
    %v1771 = vrot.slane %v1740, 7
    %v1772 = vsel %vm685, %v1771, %v1739
    %v1773 = vrot.slane %v1741, 6
    %v1774 = vsel %vm688, %v1773, %v1772
    %v1775 = vrot.slane %v1742, 5
    %v1776 = vsel %vm691, %v1775, %v1774
    %v1777 = vrot.slane %v1743, 4
    %v1778 = vsel %vm694, %v1777, %v1776
    %v1779 = vrot.slane %v1744, 3
    %v1780 = vsel %vm697, %v1779, %v1778
    %v1781 = vrot.slane %v1745, 2
    %v1782 = vsel %vm700, %v1781, %v1780
    %v1783 = vrot.slane %v1746, 1
    %v1784 = vsel %vm703, %v1783, %v1782
    %v1785 = vsel %vm137, %v1784, 0
    %1787 = vmatpush.msra.mxu0 0.0
    %1788 = vmatpush.msra.mxu0 0.0
    %1789 = vmatpush.msra.mxu0 0.0
    %1790 = vmatpush.msra.mxu0 0.0
    %1791 = vmatpush.msra.mxu0 0.0
    %1792 = vmatpush.msra.mxu0 0.0
    %1793 = vmatpush.msra.mxu0 0.0
    %1794 = vmatpush.msra.mxu0 0.0
    %1795 = vmatpush.msra.mxu0 0.0
    %1796 = vmatpush.msra.mxu0 0.0
    %1797 = vmatpush.msra.mxu0 0.0
    %1798 = vmatpush.msra.mxu0 0.0
    %1799 = vmatpush.msra.mxu0 %v118
    %1800 = vmatpush.msra.mxu0 %v117
    %1801 = vmatpush.msra.mxu0 %v116
    %1802 = vmatpush.msra.mxu0 %v115
    %1803 = vmatmul.f32.gmra.mxu0 %v1785
    %v1804 = vpop.f32.mrf.mxu0
    %v1805 = vadd.f32 0.0, %v1804
    %1806 = vdwg.mxu0
    %v1808 = vrot.slane %v1805, 1
    %v1809 = vrot.slane %v1805, 2
    %v1810 = vrot.slane %v1805, 3
    %v1811 = vrot.slane %v1805, 4
    %v1812 = vrot.slane %v1805, 5
    %v1813 = vrot.slane %v1805, 6
    %v1814 = vrot.slane %v1805, 7
    %v1823 = vadd.f32 %v1755, %v1805
    %v1824 = vadd.f32 %v1756, %v1808
    %v1825 = vadd.f32 %v1757, %v1809
    %v1826 = vadd.f32 %v1758, %v1810
    %v1827 = vadd.f32 %v1759, %v1811
    %v1828 = vadd.f32 %v1760, %v1812
    %v1829 = vadd.f32 %v1761, %v1813
    %v1830 = vadd.f32 %v1762, %v1814
    %v1831 = vxor.u32 %v1823, 2147483648
    %v1832 = vxor.u32 %v1824, 2147483648
    %v1833 = vxor.u32 %v1825, 2147483648
    %v1834 = vxor.u32 %v1826, 2147483648
    %v1835 = vxor.u32 %v1827, 2147483648
    %v1836 = vxor.u32 %v1828, 2147483648
    %v1837 = vxor.u32 %v1829, 2147483648
    %v1838 = vxor.u32 %v1830, 2147483648
    %v1839 = vmul.f32 %v1831, 1.442695
    %v1840 = vpow.pop %v1839
    %v1841 = vmul.f32 %v1832, 1.442695
    %v1842 = vpow.pop %v1841
    %v1843 = vmul.f32 %v1833, 1.442695
    %v1844 = vpow.pop %v1843
    %v1845 = vmul.f32 %v1834, 1.442695
    %v1846 = vpow.pop %v1845
    %v1847 = vmul.f32 %v1835, 1.442695
    %v1848 = vpow.pop %v1847
    %v1849 = vmul.f32 %v1836, 1.442695
    %v1850 = vpow.pop %v1849
    %v1851 = vmul.f32 %v1837, 1.442695
    %v1852 = vpow.pop %v1851
    %v1853 = vmul.f32 %v1838, 1.442695
    %v1854 = vpow.pop %v1853
    %v1855 = vadd.f32 %v1840, 1.0
    %v1856 = vadd.f32 %v1842, 1.0
    %v1857 = vadd.f32 %v1844, 1.0
    %v1858 = vadd.f32 %v1846, 1.0
    %v1859 = vadd.f32 %v1848, 1.0
    %v1860 = vadd.f32 %v1850, 1.0
    %v1861 = vadd.f32 %v1852, 1.0
    %v1862 = vadd.f32 %v1854, 1.0
    %v1863 = vrcp.pop %v1855
    %v1864 = vmul.f32 %v1855, %v1863
    %v1865 = vsub.f32 1.0, %v1864
    %v1866 = vmul.f32 %v1863, %v1865
    %v1867 = vadd.f32 %v1863, %v1866
    %vm1868 = vweird.f32 %v1855
    %vm1869 = vweird.f32 %v1863
    %vm1870 = vmor %vm1868, %vm1869
    %v1871 = vsel %vm1870, %v1863, %v1867
    %v1872 = vand.u32 2147483647, %v1855
    %vm1873 = vcmp.eq.f32.partialorder %v1872, 8.507059e+37
    %v1874 = vand.u32 %v1855, 2147483648
    %v1875 = vor.u32 1.1754944e-38, %v1874
    %v1876 = vsel %vm1873, %v1875, %v1871
    %v1877 = vmul.f32 1.0, %v1876
    %v1878 = vrcp.pop %v1856
    %v1879 = vmul.f32 %v1856, %v1878
    %v1880 = vsub.f32 1.0, %v1879
    %v1881 = vmul.f32 %v1878, %v1880
    %v1882 = vadd.f32 %v1878, %v1881
    %vm1883 = vweird.f32 %v1856
    %vm1884 = vweird.f32 %v1878
    %vm1885 = vmor %vm1883, %vm1884
    %v1886 = vsel %vm1885, %v1878, %v1882
    %v1887 = vand.u32 2147483647, %v1856
    %vm1888 = vcmp.eq.f32.partialorder %v1887, 8.507059e+37
    %v1889 = vand.u32 %v1856, 2147483648
    %v1890 = vor.u32 1.1754944e-38, %v1889
    %v1891 = vsel %vm1888, %v1890, %v1886
    %v1892 = vmul.f32 1.0, %v1891
    %v1893 = vrcp.pop %v1857
    %v1894 = vmul.f32 %v1857, %v1893
    %v1895 = vsub.f32 1.0, %v1894
    %v1896 = vmul.f32 %v1893, %v1895
    %v1897 = vadd.f32 %v1893, %v1896
    %vm1898 = vweird.f32 %v1857
    %vm1899 = vweird.f32 %v1893
    %vm1900 = vmor %vm1898, %vm1899
    %v1901 = vsel %vm1900, %v1893, %v1897
    %v1902 = vand.u32 2147483647, %v1857
    %vm1903 = vcmp.eq.f32.partialorder %v1902, 8.507059e+37
    %v1904 = vand.u32 %v1857, 2147483648
    %v1905 = vor.u32 1.1754944e-38, %v1904
    %v1906 = vsel %vm1903, %v1905, %v1901
    %v1907 = vmul.f32 1.0, %v1906
    %v1908 = vrcp.pop %v1858
    %v1909 = vmul.f32 %v1858, %v1908
    %v1910 = vsub.f32 1.0, %v1909
    %v1911 = vmul.f32 %v1908, %v1910
    %v1912 = vadd.f32 %v1908, %v1911
    %vm1913 = vweird.f32 %v1858
    %vm1914 = vweird.f32 %v1908
    %vm1915 = vmor %vm1913, %vm1914
    %v1916 = vsel %vm1915, %v1908, %v1912
    %v1917 = vand.u32 2147483647, %v1858
    %vm1918 = vcmp.eq.f32.partialorder %v1917, 8.507059e+37
    %v1919 = vand.u32 %v1858, 2147483648
    %v1920 = vor.u32 1.1754944e-38, %v1919
    %v1921 = vsel %vm1918, %v1920, %v1916
    %v1922 = vmul.f32 1.0, %v1921
    %v1923 = vrcp.pop %v1859
    %v1924 = vmul.f32 %v1859, %v1923
    %v1925 = vsub.f32 1.0, %v1924
    %v1926 = vmul.f32 %v1923, %v1925
    %v1927 = vadd.f32 %v1923, %v1926
    %vm1928 = vweird.f32 %v1859
    %vm1929 = vweird.f32 %v1923
    %vm1930 = vmor %vm1928, %vm1929
    %v1931 = vsel %vm1930, %v1923, %v1927
    %v1932 = vand.u32 2147483647, %v1859
    %vm1933 = vcmp.eq.f32.partialorder %v1932, 8.507059e+37
    %v1934 = vand.u32 %v1859, 2147483648
    %v1935 = vor.u32 1.1754944e-38, %v1934
    %v1936 = vsel %vm1933, %v1935, %v1931
    %v1937 = vmul.f32 1.0, %v1936
    %v1938 = vrcp.pop %v1860
    %v1939 = vmul.f32 %v1860, %v1938
    %v1940 = vsub.f32 1.0, %v1939
    %v1941 = vmul.f32 %v1938, %v1940
    %v1942 = vadd.f32 %v1938, %v1941
    %vm1943 = vweird.f32 %v1860
    %vm1944 = vweird.f32 %v1938
    %vm1945 = vmor %vm1943, %vm1944
    %v1946 = vsel %vm1945, %v1938, %v1942
    %v1947 = vand.u32 2147483647, %v1860
    %vm1948 = vcmp.eq.f32.partialorder %v1947, 8.507059e+37
    %v1949 = vand.u32 %v1860, 2147483648
    %v1950 = vor.u32 1.1754944e-38, %v1949
    %v1951 = vsel %vm1948, %v1950, %v1946
    %v1952 = vmul.f32 1.0, %v1951
    %v1953 = vrcp.pop %v1861
    %v1954 = vmul.f32 %v1861, %v1953
    %v1955 = vsub.f32 1.0, %v1954
    %v1956 = vmul.f32 %v1953, %v1955
    %v1957 = vadd.f32 %v1953, %v1956
    %vm1958 = vweird.f32 %v1861
    %vm1959 = vweird.f32 %v1953
    %vm1960 = vmor %vm1958, %vm1959
    %v1961 = vsel %vm1960, %v1953, %v1957
    %v1962 = vand.u32 2147483647, %v1861
    %vm1963 = vcmp.eq.f32.partialorder %v1962, 8.507059e+37
    %v1964 = vand.u32 %v1861, 2147483648
    %v1965 = vor.u32 1.1754944e-38, %v1964
    %v1966 = vsel %vm1963, %v1965, %v1961
    %v1967 = vmul.f32 1.0, %v1966
    %v1968 = vrcp.pop %v1862
    %v1969 = vmul.f32 %v1862, %v1968
    %v1970 = vsub.f32 1.0, %v1969
    %v1971 = vmul.f32 %v1968, %v1970
    %v1972 = vadd.f32 %v1968, %v1971
    %vm1973 = vweird.f32 %v1862
    %vm1974 = vweird.f32 %v1968
    %vm1975 = vmor %vm1973, %vm1974
    %v1976 = vsel %vm1975, %v1968, %v1972
    %v1977 = vand.u32 2147483647, %v1862
    %vm1978 = vcmp.eq.f32.partialorder %v1977, 8.507059e+37
    %v1979 = vand.u32 %v1862, 2147483648
    %v1980 = vor.u32 1.1754944e-38, %v1979
    %v1981 = vsel %vm1978, %v1980, %v1976
    %v1982 = vmul.f32 1.0, %v1981
    %v1983 = vld [vmem:[%s1 + $0x3] sm:$0x1]
    %v1984 = vld [vmem:[%s1 + $0xb] sm:$0x1]
    %v1985 = vld [vmem:[%s1 + $0x13] sm:$0x1]
    %v1986 = vld [vmem:[%s1 + $0x1b] sm:$0x1]
    %v1987 = vld [vmem:[%s1 + $0x23] sm:$0x1]
    %v1988 = vld [vmem:[%s1 + $0x2b] sm:$0x1]
    %v1989 = vld [vmem:[%s1 + $0x33] sm:$0x1]
    %v1990 = vld [vmem:[%s1 + $0x3b] sm:$0x1]
    %1991 = vmatpush.msra.mxu0 0.0
    %1992 = vmatpush.msra.mxu0 0.0
    %1993 = vmatpush.msra.mxu0 0.0
    %1994 = vmatpush.msra.mxu0 0.0
    %1995 = vmatpush.msra.mxu0 0.0
    %1996 = vmatpush.msra.mxu0 0.0
    %1997 = vmatpush.msra.mxu0 0.0
    %1998 = vmatpush.msra.mxu0 0.0
    %1999 = vmatpush.msra.mxu0 0.0
    %2000 = vmatpush.msra.mxu0 0.0
    %2001 = vmatpush.msra.mxu0 0.0
    %2002 = vmatpush.msra.mxu0 0.0
    %2003 = vmatpush.msra.mxu0 %v122
    %2004 = vmatpush.msra.mxu0 %v121
    %2005 = vmatpush.msra.mxu0 %v120
    %2006 = vmatpush.msra.mxu0 %v119
    %2007 = vmatmul.f32.gmra.mxu0 %v1785
    %v2008 = vpop.f32.mrf.mxu0
    %v2009 = vadd.f32 0.0, %v2008
    %2010 = vdwg.mxu0
    %v2012 = vrot.slane %v2009, 1
    %v2013 = vrot.slane %v2009, 2
    %v2014 = vrot.slane %v2009, 3
    %v2015 = vrot.slane %v2009, 4
    %v2016 = vrot.slane %v2009, 5
    %v2017 = vrot.slane %v2009, 6
    %v2018 = vrot.slane %v2009, 7
    %v2027 = vadd.f32 %v1983, %v2009
    %v2028 = vadd.f32 %v1984, %v2012
    %v2029 = vadd.f32 %v1985, %v2013
    %v2030 = vadd.f32 %v1986, %v2014
    %v2031 = vadd.f32 %v1987, %v2015
    %v2032 = vadd.f32 %v1988, %v2016
    %v2033 = vadd.f32 %v1989, %v2017
    %v2034 = vadd.f32 %v1990, %v2018
    %v2035 = vxor.u32 %v2027, 2147483648
    %v2036 = vxor.u32 %v2028, 2147483648
    %v2037 = vxor.u32 %v2029, 2147483648
    %v2038 = vxor.u32 %v2030, 2147483648
    %v2039 = vxor.u32 %v2031, 2147483648
    %v2040 = vxor.u32 %v2032, 2147483648
    %v2041 = vxor.u32 %v2033, 2147483648
    %v2042 = vxor.u32 %v2034, 2147483648
    %v2043 = vmul.f32 %v2035, 1.442695
    %v2044 = vpow.pop %v2043
    %v2045 = vmul.f32 %v2036, 1.442695
    %v2046 = vpow.pop %v2045
    %v2047 = vmul.f32 %v2037, 1.442695
    %v2048 = vpow.pop %v2047
    %v2049 = vmul.f32 %v2038, 1.442695
    %v2050 = vpow.pop %v2049
    %v2051 = vmul.f32 %v2039, 1.442695
    %v2052 = vpow.pop %v2051
    %v2053 = vmul.f32 %v2040, 1.442695
    %v2054 = vpow.pop %v2053
    %v2055 = vmul.f32 %v2041, 1.442695
    %v2056 = vpow.pop %v2055
    %v2057 = vmul.f32 %v2042, 1.442695
    %v2058 = vpow.pop %v2057
    %v2059 = vadd.f32 %v2044, 1.0
    %v2060 = vadd.f32 %v2046, 1.0
    %v2061 = vadd.f32 %v2048, 1.0
    %v2062 = vadd.f32 %v2050, 1.0
    %v2063 = vadd.f32 %v2052, 1.0
    %v2064 = vadd.f32 %v2054, 1.0
    %v2065 = vadd.f32 %v2056, 1.0
    %v2066 = vadd.f32 %v2058, 1.0
    %v2067 = vrcp.pop %v2059
    %v2068 = vmul.f32 %v2059, %v2067
    %v2069 = vsub.f32 1.0, %v2068
    %v2070 = vmul.f32 %v2067, %v2069
    %v2071 = vadd.f32 %v2067, %v2070
    %vm2072 = vweird.f32 %v2059
    %vm2073 = vweird.f32 %v2067
    %vm2074 = vmor %vm2072, %vm2073
    %v2075 = vsel %vm2074, %v2067, %v2071
    %v2076 = vand.u32 2147483647, %v2059
    %vm2077 = vcmp.eq.f32.partialorder %v2076, 8.507059e+37
    %v2078 = vand.u32 %v2059, 2147483648
    %v2079 = vor.u32 1.1754944e-38, %v2078
    %v2080 = vsel %vm2077, %v2079, %v2075
    %v2081 = vmul.f32 1.0, %v2080
    %v2082 = vrcp.pop %v2060
    %v2083 = vmul.f32 %v2060, %v2082
    %v2084 = vsub.f32 1.0, %v2083
    %v2085 = vmul.f32 %v2082, %v2084
    %v2086 = vadd.f32 %v2082, %v2085
    %vm2087 = vweird.f32 %v2060
    %vm2088 = vweird.f32 %v2082
    %vm2089 = vmor %vm2087, %vm2088
    %v2090 = vsel %vm2089, %v2082, %v2086
    %v2091 = vand.u32 2147483647, %v2060
    %vm2092 = vcmp.eq.f32.partialorder %v2091, 8.507059e+37
    %v2093 = vand.u32 %v2060, 2147483648
    %v2094 = vor.u32 1.1754944e-38, %v2093
    %v2095 = vsel %vm2092, %v2094, %v2090
    %v2096 = vmul.f32 1.0, %v2095
    %v2097 = vrcp.pop %v2061
    %v2098 = vmul.f32 %v2061, %v2097
    %v2099 = vsub.f32 1.0, %v2098
    %v2100 = vmul.f32 %v2097, %v2099
    %v2101 = vadd.f32 %v2097, %v2100
    %vm2102 = vweird.f32 %v2061
    %vm2103 = vweird.f32 %v2097
    %vm2104 = vmor %vm2102, %vm2103
    %v2105 = vsel %vm2104, %v2097, %v2101
    %v2106 = vand.u32 2147483647, %v2061
    %vm2107 = vcmp.eq.f32.partialorder %v2106, 8.507059e+37
    %v2108 = vand.u32 %v2061, 2147483648
    %v2109 = vor.u32 1.1754944e-38, %v2108
    %v2110 = vsel %vm2107, %v2109, %v2105
    %v2111 = vmul.f32 1.0, %v2110
    %v2112 = vrcp.pop %v2062
    %v2113 = vmul.f32 %v2062, %v2112
    %v2114 = vsub.f32 1.0, %v2113
    %v2115 = vmul.f32 %v2112, %v2114
    %v2116 = vadd.f32 %v2112, %v2115
    %vm2117 = vweird.f32 %v2062
    %vm2118 = vweird.f32 %v2112
    %vm2119 = vmor %vm2117, %vm2118
    %v2120 = vsel %vm2119, %v2112, %v2116
    %v2121 = vand.u32 2147483647, %v2062
    %vm2122 = vcmp.eq.f32.partialorder %v2121, 8.507059e+37
    %v2123 = vand.u32 %v2062, 2147483648
    %v2124 = vor.u32 1.1754944e-38, %v2123
    %v2125 = vsel %vm2122, %v2124, %v2120
    %v2126 = vmul.f32 1.0, %v2125
    %v2127 = vrcp.pop %v2063
    %v2128 = vmul.f32 %v2063, %v2127
    %v2129 = vsub.f32 1.0, %v2128
    %v2130 = vmul.f32 %v2127, %v2129
    %v2131 = vadd.f32 %v2127, %v2130
    %vm2132 = vweird.f32 %v2063
    %vm2133 = vweird.f32 %v2127
    %vm2134 = vmor %vm2132, %vm2133
    %v2135 = vsel %vm2134, %v2127, %v2131
    %v2136 = vand.u32 2147483647, %v2063
    %vm2137 = vcmp.eq.f32.partialorder %v2136, 8.507059e+37
    %v2138 = vand.u32 %v2063, 2147483648
    %v2139 = vor.u32 1.1754944e-38, %v2138
    %v2140 = vsel %vm2137, %v2139, %v2135
    %v2141 = vmul.f32 1.0, %v2140
    %v2142 = vrcp.pop %v2064
    %v2143 = vmul.f32 %v2064, %v2142
    %v2144 = vsub.f32 1.0, %v2143
    %v2145 = vmul.f32 %v2142, %v2144
    %v2146 = vadd.f32 %v2142, %v2145
    %vm2147 = vweird.f32 %v2064
    %vm2148 = vweird.f32 %v2142
    %vm2149 = vmor %vm2147, %vm2148
    %v2150 = vsel %vm2149, %v2142, %v2146
    %v2151 = vand.u32 2147483647, %v2064
    %vm2152 = vcmp.eq.f32.partialorder %v2151, 8.507059e+37
    %v2153 = vand.u32 %v2064, 2147483648
    %v2154 = vor.u32 1.1754944e-38, %v2153
    %v2155 = vsel %vm2152, %v2154, %v2150
    %v2156 = vmul.f32 1.0, %v2155
    %v2157 = vrcp.pop %v2065
    %v2158 = vmul.f32 %v2065, %v2157
    %v2159 = vsub.f32 1.0, %v2158
    %v2160 = vmul.f32 %v2157, %v2159
    %v2161 = vadd.f32 %v2157, %v2160
    %vm2162 = vweird.f32 %v2065
    %vm2163 = vweird.f32 %v2157
    %vm2164 = vmor %vm2162, %vm2163
    %v2165 = vsel %vm2164, %v2157, %v2161
    %v2166 = vand.u32 2147483647, %v2065
    %vm2167 = vcmp.eq.f32.partialorder %v2166, 8.507059e+37
    %v2168 = vand.u32 %v2065, 2147483648
    %v2169 = vor.u32 1.1754944e-38, %v2168
    %v2170 = vsel %vm2167, %v2169, %v2165
    %v2171 = vmul.f32 1.0, %v2170
    %v2172 = vrcp.pop %v2066
    %v2173 = vmul.f32 %v2066, %v2172
    %v2174 = vsub.f32 1.0, %v2173
    %v2175 = vmul.f32 %v2172, %v2174
    %v2176 = vadd.f32 %v2172, %v2175
    %vm2177 = vweird.f32 %v2066
    %vm2178 = vweird.f32 %v2172
    %vm2179 = vmor %vm2177, %vm2178
    %v2180 = vsel %vm2179, %v2172, %v2176
    %v2181 = vand.u32 2147483647, %v2066
    %vm2182 = vcmp.eq.f32.partialorder %v2181, 8.507059e+37
    %v2183 = vand.u32 %v2066, 2147483648
    %v2184 = vor.u32 1.1754944e-38, %v2183
    %v2185 = vsel %vm2182, %v2184, %v2180
    %v2186 = vmul.f32 1.0, %v2185
    %v2187 = vld [vmem:[%s2 + $0x3] sm:$0x1]
    %v2188 = vld [vmem:[%s2 + $0xb] sm:$0x1]
    %v2189 = vld [vmem:[%s2 + $0x13] sm:$0x1]
    %v2190 = vld [vmem:[%s2 + $0x1b] sm:$0x1]
    %v2191 = vld [vmem:[%s2 + $0x23] sm:$0x1]
    %v2192 = vld [vmem:[%s2 + $0x2b] sm:$0x1]
    %v2193 = vld [vmem:[%s2 + $0x33] sm:$0x1]
    %v2194 = vld [vmem:[%s2 + $0x3b] sm:$0x1]
    %2195 = vmatpush.msra.mxu0 0.0
    %2196 = vmatpush.msra.mxu0 0.0
    %2197 = vmatpush.msra.mxu0 0.0
    %2198 = vmatpush.msra.mxu0 0.0
    %2199 = vmatpush.msra.mxu0 0.0
    %2200 = vmatpush.msra.mxu0 0.0
    %2201 = vmatpush.msra.mxu0 0.0
    %2202 = vmatpush.msra.mxu0 0.0
    %2203 = vmatpush.msra.mxu0 0.0
    %2204 = vmatpush.msra.mxu0 0.0
    %2205 = vmatpush.msra.mxu0 0.0
    %2206 = vmatpush.msra.mxu0 0.0
    %2207 = vmatpush.msra.mxu0 %v126
    %2208 = vmatpush.msra.mxu0 %v125
    %2209 = vmatpush.msra.mxu0 %v124
    %2210 = vmatpush.msra.mxu0 %v123
    %2211 = vmatmul.f32.gmra.mxu0 %v1785
    %v2212 = vpop.f32.mrf.mxu0
    %v2213 = vadd.f32 %v550, %v2212
    %2214 = vdwg.mxu0
    %v2216 = vrot.slane %v2213, 1
    %v2217 = vrot.slane %v2213, 2
    %v2218 = vrot.slane %v2213, 3
    %v2219 = vrot.slane %v2213, 4
    %v2220 = vrot.slane %v2213, 5
    %v2221 = vrot.slane %v2213, 6
    %v2222 = vrot.slane %v2213, 7
    %v2231 = vmul.f32 %v1877, %v2213
    %v2232 = vmul.f32 %v1892, %v2216
    %v2233 = vmul.f32 %v1907, %v2217
    %v2234 = vmul.f32 %v1922, %v2218
    %v2235 = vmul.f32 %v1937, %v2219
    %v2236 = vmul.f32 %v1952, %v2220
    %v2237 = vmul.f32 %v1967, %v2221
    %v2238 = vmul.f32 %v1982, %v2222
    %v2239 = vadd.f32 %v2187, %v2231
    %v2240 = vadd.f32 %v2188, %v2232
    %v2241 = vadd.f32 %v2189, %v2233
    %v2242 = vadd.f32 %v2190, %v2234
    %v2243 = vadd.f32 %v2191, %v2235
    %v2244 = vadd.f32 %v2192, %v2236
    %v2245 = vadd.f32 %v2193, %v2237
    %v2246 = vadd.f32 %v2194, %v2238
    %v2247 = vtanh.pop %v2239
    %v2248 = vtanh.pop %v2240
    %v2249 = vtanh.pop %v2241
    %v2250 = vtanh.pop %v2242
    %v2251 = vtanh.pop %v2243
    %v2252 = vtanh.pop %v2244
    %v2253 = vtanh.pop %v2245
    %v2254 = vtanh.pop %v2246
    %v2255 = vsub.f32 1.0, %v2081
    %v2256 = vsub.f32 1.0, %v2096
    %v2257 = vsub.f32 1.0, %v2111
    %v2258 = vsub.f32 1.0, %v2126
    %v2259 = vsub.f32 1.0, %v2141
    %v2260 = vsub.f32 1.0, %v2156
    %v2261 = vsub.f32 1.0, %v2171
    %v2262 = vsub.f32 1.0, %v2186
    %v2263 = vmul.f32 %v2255, %v2247
    %v2264 = vmul.f32 %v2256, %v2248
    %v2265 = vmul.f32 %v2257, %v2249
    %v2266 = vmul.f32 %v2258, %v2250
    %v2267 = vmul.f32 %v2259, %v2251
    %v2268 = vmul.f32 %v2260, %v2252
    %v2269 = vmul.f32 %v2261, %v2253
    %v2270 = vmul.f32 %v2262, %v2254
    %v2271 = vmul.f32 %v2081, %v1739
    %v2272 = vmul.f32 %v2096, %v1740
    %v2273 = vmul.f32 %v2111, %v1741
    %v2274 = vmul.f32 %v2126, %v1742
    %v2275 = vmul.f32 %v2141, %v1743
    %v2276 = vmul.f32 %v2156, %v1744
    %v2277 = vmul.f32 %v2171, %v1745
    %v2278 = vmul.f32 %v2186, %v1746
    %v2279 = vadd.f32 %v2263, %v2271
    %v2280 = vadd.f32 %v2264, %v2272
    %v2281 = vadd.f32 %v2265, %v2273
    %v2282 = vadd.f32 %v2266, %v2274
    %v2283 = vadd.f32 %v2267, %v2275
    %v2284 = vadd.f32 %v2268, %v2276
    %v2285 = vadd.f32 %v2269, %v2277
    %v2286 = vadd.f32 %v2270, %v2278
    %2287 = vst.msk [vmem:[#allocation3 + $0x3] sm:$0x1] %vm659, %v2279
    %2288 = vst.msk [vmem:[#allocation3 + $0xb] sm:$0x1] %vm659, %v2280
    %2289 = vst.msk [vmem:[#allocation3 + $0x13] sm:$0x1] %vm659, %v2281
    %2290 = vst.msk [vmem:[#allocation3 + $0x1b] sm:$0x1] %vm659, %v2282
    %2291 = vst.msk [vmem:[#allocation3 + $0x23] sm:$0x1] %vm659, %v2283
    %2292 = vst.msk [vmem:[#allocation3 + $0x2b] sm:$0x1] %vm659, %v2284
    %2293 = vst.msk [vmem:[#allocation3 + $0x33] sm:$0x1] %vm659, %v2285
    %2294 = vst.msk [vmem:[#allocation3 + $0x3b] sm:$0x1] %vm659, %v2286
    %v2295 = vld [vmem:[%s0 + $0x4] sm:$0x1]
    %v2296 = vld [vmem:[%s0 + $0xc] sm:$0x1]
    %v2297 = vld [vmem:[%s0 + $0x14] sm:$0x1]
    %v2298 = vld [vmem:[%s0 + $0x1c] sm:$0x1]
    %v2299 = vld [vmem:[%s0 + $0x24] sm:$0x1]
    %v2300 = vld [vmem:[%s0 + $0x2c] sm:$0x1]
    %v2301 = vld [vmem:[%s0 + $0x34] sm:$0x1]
    %v2302 = vld [vmem:[%s0 + $0x3c] sm:$0x1]
    %v2311 = vrot.slane %v2280, 7
    %v2312 = vsel %vm685, %v2311, %v2279
    %v2313 = vrot.slane %v2281, 6
    %v2314 = vsel %vm688, %v2313, %v2312
    %v2315 = vrot.slane %v2282, 5
    %v2316 = vsel %vm691, %v2315, %v2314
    %v2317 = vrot.slane %v2283, 4
    %v2318 = vsel %vm694, %v2317, %v2316
    %v2319 = vrot.slane %v2284, 3
    %v2320 = vsel %vm697, %v2319, %v2318
    %v2321 = vrot.slane %v2285, 2
    %v2322 = vsel %vm700, %v2321, %v2320
    %v2323 = vrot.slane %v2286, 1
    %v2324 = vsel %vm703, %v2323, %v2322
    %v2325 = vsel %vm137, %v2324, 0
    %2327 = vmatpush.msra.mxu0 0.0
    %2328 = vmatpush.msra.mxu0 0.0
    %2329 = vmatpush.msra.mxu0 0.0
    %2330 = vmatpush.msra.mxu0 0.0
    %2331 = vmatpush.msra.mxu0 0.0
    %2332 = vmatpush.msra.mxu0 0.0
    %2333 = vmatpush.msra.mxu0 0.0
    %2334 = vmatpush.msra.mxu0 0.0
    %2335 = vmatpush.msra.mxu0 0.0
    %2336 = vmatpush.msra.mxu0 0.0
    %2337 = vmatpush.msra.mxu0 0.0
    %2338 = vmatpush.msra.mxu0 0.0
    %2339 = vmatpush.msra.mxu0 %v118
    %2340 = vmatpush.msra.mxu0 %v117
    %2341 = vmatpush.msra.mxu0 %v116
    %2342 = vmatpush.msra.mxu0 %v115
    %2343 = vmatmul.f32.gmra.mxu0 %v2325
    %v2344 = vpop.f32.mrf.mxu0
    %v2345 = vadd.f32 0.0, %v2344
    %2346 = vdwg.mxu0
    %v2348 = vrot.slane %v2345, 1
    %v2349 = vrot.slane %v2345, 2
    %v2350 = vrot.slane %v2345, 3
    %v2351 = vrot.slane %v2345, 4
    %v2352 = vrot.slane %v2345, 5
    %v2353 = vrot.slane %v2345, 6
    %v2354 = vrot.slane %v2345, 7
    %v2363 = vadd.f32 %v2295, %v2345
    %v2364 = vadd.f32 %v2296, %v2348
    %v2365 = vadd.f32 %v2297, %v2349
    %v2366 = vadd.f32 %v2298, %v2350
    %v2367 = vadd.f32 %v2299, %v2351
    %v2368 = vadd.f32 %v2300, %v2352
    %v2369 = vadd.f32 %v2301, %v2353
    %v2370 = vadd.f32 %v2302, %v2354
    %v2371 = vxor.u32 %v2363, 2147483648
    %v2372 = vxor.u32 %v2364, 2147483648
    %v2373 = vxor.u32 %v2365, 2147483648
    %v2374 = vxor.u32 %v2366, 2147483648
    %v2375 = vxor.u32 %v2367, 2147483648
    %v2376 = vxor.u32 %v2368, 2147483648
    %v2377 = vxor.u32 %v2369, 2147483648
    %v2378 = vxor.u32 %v2370, 2147483648
    %v2379 = vmul.f32 %v2371, 1.442695
    %v2380 = vpow.pop %v2379
    %v2381 = vmul.f32 %v2372, 1.442695
    %v2382 = vpow.pop %v2381
    %v2383 = vmul.f32 %v2373, 1.442695
    %v2384 = vpow.pop %v2383
    %v2385 = vmul.f32 %v2374, 1.442695
    %v2386 = vpow.pop %v2385
    %v2387 = vmul.f32 %v2375, 1.442695
    %v2388 = vpow.pop %v2387
    %v2389 = vmul.f32 %v2376, 1.442695
    %v2390 = vpow.pop %v2389
    %v2391 = vmul.f32 %v2377, 1.442695
    %v2392 = vpow.pop %v2391
    %v2393 = vmul.f32 %v2378, 1.442695
    %v2394 = vpow.pop %v2393
    %v2395 = vadd.f32 %v2380, 1.0
    %v2396 = vadd.f32 %v2382, 1.0
    %v2397 = vadd.f32 %v2384, 1.0
    %v2398 = vadd.f32 %v2386, 1.0
    %v2399 = vadd.f32 %v2388, 1.0
    %v2400 = vadd.f32 %v2390, 1.0
    %v2401 = vadd.f32 %v2392, 1.0
    %v2402 = vadd.f32 %v2394, 1.0
    %v2403 = vrcp.pop %v2395
    %v2404 = vmul.f32 %v2395, %v2403
    %v2405 = vsub.f32 1.0, %v2404
    %v2406 = vmul.f32 %v2403, %v2405
    %v2407 = vadd.f32 %v2403, %v2406
    %vm2408 = vweird.f32 %v2395
    %vm2409 = vweird.f32 %v2403
    %vm2410 = vmor %vm2408, %vm2409
    %v2411 = vsel %vm2410, %v2403, %v2407
    %v2412 = vand.u32 2147483647, %v2395
    %vm2413 = vcmp.eq.f32.partialorder %v2412, 8.507059e+37
    %v2414 = vand.u32 %v2395, 2147483648
    %v2415 = vor.u32 1.1754944e-38, %v2414
    %v2416 = vsel %vm2413, %v2415, %v2411
    %v2417 = vmul.f32 1.0, %v2416
    %v2418 = vrcp.pop %v2396
    %v2419 = vmul.f32 %v2396, %v2418
    %v2420 = vsub.f32 1.0, %v2419
    %v2421 = vmul.f32 %v2418, %v2420
    %v2422 = vadd.f32 %v2418, %v2421
    %vm2423 = vweird.f32 %v2396
    %vm2424 = vweird.f32 %v2418
    %vm2425 = vmor %vm2423, %vm2424
    %v2426 = vsel %vm2425, %v2418, %v2422
    %v2427 = vand.u32 2147483647, %v2396
    %vm2428 = vcmp.eq.f32.partialorder %v2427, 8.507059e+37
    %v2429 = vand.u32 %v2396, 2147483648
    %v2430 = vor.u32 1.1754944e-38, %v2429
    %v2431 = vsel %vm2428, %v2430, %v2426
    %v2432 = vmul.f32 1.0, %v2431
    %v2433 = vrcp.pop %v2397
    %v2434 = vmul.f32 %v2397, %v2433
    %v2435 = vsub.f32 1.0, %v2434
    %v2436 = vmul.f32 %v2433, %v2435
    %v2437 = vadd.f32 %v2433, %v2436
    %vm2438 = vweird.f32 %v2397
    %vm2439 = vweird.f32 %v2433
    %vm2440 = vmor %vm2438, %vm2439
    %v2441 = vsel %vm2440, %v2433, %v2437
    %v2442 = vand.u32 2147483647, %v2397
    %vm2443 = vcmp.eq.f32.partialorder %v2442, 8.507059e+37
    %v2444 = vand.u32 %v2397, 2147483648
    %v2445 = vor.u32 1.1754944e-38, %v2444
    %v2446 = vsel %vm2443, %v2445, %v2441
    %v2447 = vmul.f32 1.0, %v2446
    %v2448 = vrcp.pop %v2398
    %v2449 = vmul.f32 %v2398, %v2448
    %v2450 = vsub.f32 1.0, %v2449
    %v2451 = vmul.f32 %v2448, %v2450
    %v2452 = vadd.f32 %v2448, %v2451
    %vm2453 = vweird.f32 %v2398
    %vm2454 = vweird.f32 %v2448
    %vm2455 = vmor %vm2453, %vm2454
    %v2456 = vsel %vm2455, %v2448, %v2452
    %v2457 = vand.u32 2147483647, %v2398
    %vm2458 = vcmp.eq.f32.partialorder %v2457, 8.507059e+37
    %v2459 = vand.u32 %v2398, 2147483648
    %v2460 = vor.u32 1.1754944e-38, %v2459
    %v2461 = vsel %vm2458, %v2460, %v2456
    %v2462 = vmul.f32 1.0, %v2461
    %v2463 = vrcp.pop %v2399
    %v2464 = vmul.f32 %v2399, %v2463
    %v2465 = vsub.f32 1.0, %v2464
    %v2466 = vmul.f32 %v2463, %v2465
    %v2467 = vadd.f32 %v2463, %v2466
    %vm2468 = vweird.f32 %v2399
    %vm2469 = vweird.f32 %v2463
    %vm2470 = vmor %vm2468, %vm2469
    %v2471 = vsel %vm2470, %v2463, %v2467
    %v2472 = vand.u32 2147483647, %v2399
    %vm2473 = vcmp.eq.f32.partialorder %v2472, 8.507059e+37
    %v2474 = vand.u32 %v2399, 2147483648
    %v2475 = vor.u32 1.1754944e-38, %v2474
    %v2476 = vsel %vm2473, %v2475, %v2471
    %v2477 = vmul.f32 1.0, %v2476
    %v2478 = vrcp.pop %v2400
    %v2479 = vmul.f32 %v2400, %v2478
    %v2480 = vsub.f32 1.0, %v2479
    %v2481 = vmul.f32 %v2478, %v2480
    %v2482 = vadd.f32 %v2478, %v2481
    %vm2483 = vweird.f32 %v2400
    %vm2484 = vweird.f32 %v2478
    %vm2485 = vmor %vm2483, %vm2484
    %v2486 = vsel %vm2485, %v2478, %v2482
    %v2487 = vand.u32 2147483647, %v2400
    %vm2488 = vcmp.eq.f32.partialorder %v2487, 8.507059e+37
    %v2489 = vand.u32 %v2400, 2147483648
    %v2490 = vor.u32 1.1754944e-38, %v2489
    %v2491 = vsel %vm2488, %v2490, %v2486
    %v2492 = vmul.f32 1.0, %v2491
    %v2493 = vrcp.pop %v2401
    %v2494 = vmul.f32 %v2401, %v2493
    %v2495 = vsub.f32 1.0, %v2494
    %v2496 = vmul.f32 %v2493, %v2495
    %v2497 = vadd.f32 %v2493, %v2496
    %vm2498 = vweird.f32 %v2401
    %vm2499 = vweird.f32 %v2493
    %vm2500 = vmor %vm2498, %vm2499
    %v2501 = vsel %vm2500, %v2493, %v2497
    %v2502 = vand.u32 2147483647, %v2401
    %vm2503 = vcmp.eq.f32.partialorder %v2502, 8.507059e+37
    %v2504 = vand.u32 %v2401, 2147483648
    %v2505 = vor.u32 1.1754944e-38, %v2504
    %v2506 = vsel %vm2503, %v2505, %v2501
    %v2507 = vmul.f32 1.0, %v2506
    %v2508 = vrcp.pop %v2402
    %v2509 = vmul.f32 %v2402, %v2508
    %v2510 = vsub.f32 1.0, %v2509
    %v2511 = vmul.f32 %v2508, %v2510
    %v2512 = vadd.f32 %v2508, %v2511
    %vm2513 = vweird.f32 %v2402
    %vm2514 = vweird.f32 %v2508
    %vm2515 = vmor %vm2513, %vm2514
    %v2516 = vsel %vm2515, %v2508, %v2512
    %v2517 = vand.u32 2147483647, %v2402
    %vm2518 = vcmp.eq.f32.partialorder %v2517, 8.507059e+37
    %v2519 = vand.u32 %v2402, 2147483648
    %v2520 = vor.u32 1.1754944e-38, %v2519
    %v2521 = vsel %vm2518, %v2520, %v2516
    %v2522 = vmul.f32 1.0, %v2521
    %v2523 = vld [vmem:[%s1 + $0x4] sm:$0x1]
    %v2524 = vld [vmem:[%s1 + $0xc] sm:$0x1]
    %v2525 = vld [vmem:[%s1 + $0x14] sm:$0x1]
    %v2526 = vld [vmem:[%s1 + $0x1c] sm:$0x1]
    %v2527 = vld [vmem:[%s1 + $0x24] sm:$0x1]
    %v2528 = vld [vmem:[%s1 + $0x2c] sm:$0x1]
    %v2529 = vld [vmem:[%s1 + $0x34] sm:$0x1]
    %v2530 = vld [vmem:[%s1 + $0x3c] sm:$0x1]
    %2531 = vmatpush.msra.mxu0 0.0
    %2532 = vmatpush.msra.mxu0 0.0
    %2533 = vmatpush.msra.mxu0 0.0
    %2534 = vmatpush.msra.mxu0 0.0
    %2535 = vmatpush.msra.mxu0 0.0
    %2536 = vmatpush.msra.mxu0 0.0
    %2537 = vmatpush.msra.mxu0 0.0
    %2538 = vmatpush.msra.mxu0 0.0
    %2539 = vmatpush.msra.mxu0 0.0
    %2540 = vmatpush.msra.mxu0 0.0
    %2541 = vmatpush.msra.mxu0 0.0
    %2542 = vmatpush.msra.mxu0 0.0
    %2543 = vmatpush.msra.mxu0 %v122
    %2544 = vmatpush.msra.mxu0 %v121
    %2545 = vmatpush.msra.mxu0 %v120
    %2546 = vmatpush.msra.mxu0 %v119
    %2547 = vmatmul.f32.gmra.mxu0 %v2325
    %v2548 = vpop.f32.mrf.mxu0
    %v2549 = vadd.f32 0.0, %v2548
    %2550 = vdwg.mxu0
    %v2552 = vrot.slane %v2549, 1
    %v2553 = vrot.slane %v2549, 2
    %v2554 = vrot.slane %v2549, 3
    %v2555 = vrot.slane %v2549, 4
    %v2556 = vrot.slane %v2549, 5
    %v2557 = vrot.slane %v2549, 6
    %v2558 = vrot.slane %v2549, 7
    %v2567 = vadd.f32 %v2523, %v2549
    %v2568 = vadd.f32 %v2524, %v2552
    %v2569 = vadd.f32 %v2525, %v2553
    %v2570 = vadd.f32 %v2526, %v2554
    %v2571 = vadd.f32 %v2527, %v2555
    %v2572 = vadd.f32 %v2528, %v2556
    %v2573 = vadd.f32 %v2529, %v2557
    %v2574 = vadd.f32 %v2530, %v2558
    %v2575 = vxor.u32 %v2567, 2147483648
    %v2576 = vxor.u32 %v2568, 2147483648
    %v2577 = vxor.u32 %v2569, 2147483648
    %v2578 = vxor.u32 %v2570, 2147483648
    %v2579 = vxor.u32 %v2571, 2147483648
    %v2580 = vxor.u32 %v2572, 2147483648
    %v2581 = vxor.u32 %v2573, 2147483648
    %v2582 = vxor.u32 %v2574, 2147483648
    %v2583 = vmul.f32 %v2575, 1.442695
    %v2584 = vpow.pop %v2583
    %v2585 = vmul.f32 %v2576, 1.442695
    %v2586 = vpow.pop %v2585
    %v2587 = vmul.f32 %v2577, 1.442695
    %v2588 = vpow.pop %v2587
    %v2589 = vmul.f32 %v2578, 1.442695
    %v2590 = vpow.pop %v2589
    %v2591 = vmul.f32 %v2579, 1.442695
    %v2592 = vpow.pop %v2591
    %v2593 = vmul.f32 %v2580, 1.442695
    %v2594 = vpow.pop %v2593
    %v2595 = vmul.f32 %v2581, 1.442695
    %v2596 = vpow.pop %v2595
    %v2597 = vmul.f32 %v2582, 1.442695
    %v2598 = vpow.pop %v2597
    %v2599 = vadd.f32 %v2584, 1.0
    %v2600 = vadd.f32 %v2586, 1.0
    %v2601 = vadd.f32 %v2588, 1.0
    %v2602 = vadd.f32 %v2590, 1.0
    %v2603 = vadd.f32 %v2592, 1.0
    %v2604 = vadd.f32 %v2594, 1.0
    %v2605 = vadd.f32 %v2596, 1.0
    %v2606 = vadd.f32 %v2598, 1.0
    %v2607 = vrcp.pop %v2599
    %v2608 = vmul.f32 %v2599, %v2607
    %v2609 = vsub.f32 1.0, %v2608
    %v2610 = vmul.f32 %v2607, %v2609
    %v2611 = vadd.f32 %v2607, %v2610
    %vm2612 = vweird.f32 %v2599
    %vm2613 = vweird.f32 %v2607
    %vm2614 = vmor %vm2612, %vm2613
    %v2615 = vsel %vm2614, %v2607, %v2611
    %v2616 = vand.u32 2147483647, %v2599
    %vm2617 = vcmp.eq.f32.partialorder %v2616, 8.507059e+37
    %v2618 = vand.u32 %v2599, 2147483648
    %v2619 = vor.u32 1.1754944e-38, %v2618
    %v2620 = vsel %vm2617, %v2619, %v2615
    %v2621 = vmul.f32 1.0, %v2620
    %v2622 = vrcp.pop %v2600
    %v2623 = vmul.f32 %v2600, %v2622
    %v2624 = vsub.f32 1.0, %v2623
    %v2625 = vmul.f32 %v2622, %v2624
    %v2626 = vadd.f32 %v2622, %v2625
    %vm2627 = vweird.f32 %v2600
    %vm2628 = vweird.f32 %v2622
    %vm2629 = vmor %vm2627, %vm2628
    %v2630 = vsel %vm2629, %v2622, %v2626
    %v2631 = vand.u32 2147483647, %v2600
    %vm2632 = vcmp.eq.f32.partialorder %v2631, 8.507059e+37
    %v2633 = vand.u32 %v2600, 2147483648
    %v2634 = vor.u32 1.1754944e-38, %v2633
    %v2635 = vsel %vm2632, %v2634, %v2630
    %v2636 = vmul.f32 1.0, %v2635
    %v2637 = vrcp.pop %v2601
    %v2638 = vmul.f32 %v2601, %v2637
    %v2639 = vsub.f32 1.0, %v2638
    %v2640 = vmul.f32 %v2637, %v2639
    %v2641 = vadd.f32 %v2637, %v2640
    %vm2642 = vweird.f32 %v2601
    %vm2643 = vweird.f32 %v2637
    %vm2644 = vmor %vm2642, %vm2643
    %v2645 = vsel %vm2644, %v2637, %v2641
    %v2646 = vand.u32 2147483647, %v2601
    %vm2647 = vcmp.eq.f32.partialorder %v2646, 8.507059e+37
    %v2648 = vand.u32 %v2601, 2147483648
    %v2649 = vor.u32 1.1754944e-38, %v2648
    %v2650 = vsel %vm2647, %v2649, %v2645
    %v2651 = vmul.f32 1.0, %v2650
    %v2652 = vrcp.pop %v2602
    %v2653 = vmul.f32 %v2602, %v2652
    %v2654 = vsub.f32 1.0, %v2653
    %v2655 = vmul.f32 %v2652, %v2654
    %v2656 = vadd.f32 %v2652, %v2655
    %vm2657 = vweird.f32 %v2602
    %vm2658 = vweird.f32 %v2652
    %vm2659 = vmor %vm2657, %vm2658
    %v2660 = vsel %vm2659, %v2652, %v2656
    %v2661 = vand.u32 2147483647, %v2602
    %vm2662 = vcmp.eq.f32.partialorder %v2661, 8.507059e+37
    %v2663 = vand.u32 %v2602, 2147483648
    %v2664 = vor.u32 1.1754944e-38, %v2663
    %v2665 = vsel %vm2662, %v2664, %v2660
    %v2666 = vmul.f32 1.0, %v2665
    %v2667 = vrcp.pop %v2603
    %v2668 = vmul.f32 %v2603, %v2667
    %v2669 = vsub.f32 1.0, %v2668
    %v2670 = vmul.f32 %v2667, %v2669
    %v2671 = vadd.f32 %v2667, %v2670
    %vm2672 = vweird.f32 %v2603
    %vm2673 = vweird.f32 %v2667
    %vm2674 = vmor %vm2672, %vm2673
    %v2675 = vsel %vm2674, %v2667, %v2671
    %v2676 = vand.u32 2147483647, %v2603
    %vm2677 = vcmp.eq.f32.partialorder %v2676, 8.507059e+37
    %v2678 = vand.u32 %v2603, 2147483648
    %v2679 = vor.u32 1.1754944e-38, %v2678
    %v2680 = vsel %vm2677, %v2679, %v2675
    %v2681 = vmul.f32 1.0, %v2680
    %v2682 = vrcp.pop %v2604
    %v2683 = vmul.f32 %v2604, %v2682
    %v2684 = vsub.f32 1.0, %v2683
    %v2685 = vmul.f32 %v2682, %v2684
    %v2686 = vadd.f32 %v2682, %v2685
    %vm2687 = vweird.f32 %v2604
    %vm2688 = vweird.f32 %v2682
    %vm2689 = vmor %vm2687, %vm2688
    %v2690 = vsel %vm2689, %v2682, %v2686
    %v2691 = vand.u32 2147483647, %v2604
    %vm2692 = vcmp.eq.f32.partialorder %v2691, 8.507059e+37
    %v2693 = vand.u32 %v2604, 2147483648
    %v2694 = vor.u32 1.1754944e-38, %v2693
    %v2695 = vsel %vm2692, %v2694, %v2690
    %v2696 = vmul.f32 1.0, %v2695
    %v2697 = vrcp.pop %v2605
    %v2698 = vmul.f32 %v2605, %v2697
    %v2699 = vsub.f32 1.0, %v2698
    %v2700 = vmul.f32 %v2697, %v2699
    %v2701 = vadd.f32 %v2697, %v2700
    %vm2702 = vweird.f32 %v2605
    %vm2703 = vweird.f32 %v2697
    %vm2704 = vmor %vm2702, %vm2703
    %v2705 = vsel %vm2704, %v2697, %v2701
    %v2706 = vand.u32 2147483647, %v2605
    %vm2707 = vcmp.eq.f32.partialorder %v2706, 8.507059e+37
    %v2708 = vand.u32 %v2605, 2147483648
    %v2709 = vor.u32 1.1754944e-38, %v2708
    %v2710 = vsel %vm2707, %v2709, %v2705
    %v2711 = vmul.f32 1.0, %v2710
    %v2712 = vrcp.pop %v2606
    %v2713 = vmul.f32 %v2606, %v2712
    %v2714 = vsub.f32 1.0, %v2713
    %v2715 = vmul.f32 %v2712, %v2714
    %v2716 = vadd.f32 %v2712, %v2715
    %vm2717 = vweird.f32 %v2606
    %vm2718 = vweird.f32 %v2712
    %vm2719 = vmor %vm2717, %vm2718
    %v2720 = vsel %vm2719, %v2712, %v2716
    %v2721 = vand.u32 2147483647, %v2606
    %vm2722 = vcmp.eq.f32.partialorder %v2721, 8.507059e+37
    %v2723 = vand.u32 %v2606, 2147483648
    %v2724 = vor.u32 1.1754944e-38, %v2723
    %v2725 = vsel %vm2722, %v2724, %v2720
    %v2726 = vmul.f32 1.0, %v2725
    %v2727 = vld [vmem:[%s2 + $0x4] sm:$0x1]
    %v2728 = vld [vmem:[%s2 + $0xc] sm:$0x1]
    %v2729 = vld [vmem:[%s2 + $0x14] sm:$0x1]
    %v2730 = vld [vmem:[%s2 + $0x1c] sm:$0x1]
    %v2731 = vld [vmem:[%s2 + $0x24] sm:$0x1]
    %v2732 = vld [vmem:[%s2 + $0x2c] sm:$0x1]
    %v2733 = vld [vmem:[%s2 + $0x34] sm:$0x1]
    %v2734 = vld [vmem:[%s2 + $0x3c] sm:$0x1]
    %2735 = vmatpush.msra.mxu0 0.0
    %2736 = vmatpush.msra.mxu0 0.0
    %2737 = vmatpush.msra.mxu0 0.0
    %2738 = vmatpush.msra.mxu0 0.0
    %2739 = vmatpush.msra.mxu0 0.0
    %2740 = vmatpush.msra.mxu0 0.0
    %2741 = vmatpush.msra.mxu0 0.0
    %2742 = vmatpush.msra.mxu0 0.0
    %2743 = vmatpush.msra.mxu0 0.0
    %2744 = vmatpush.msra.mxu0 0.0
    %2745 = vmatpush.msra.mxu0 0.0
    %2746 = vmatpush.msra.mxu0 0.0
    %2747 = vmatpush.msra.mxu0 %v126
    %2748 = vmatpush.msra.mxu0 %v125
    %2749 = vmatpush.msra.mxu0 %v124
    %2750 = vmatpush.msra.mxu0 %v123
    %2751 = vmatmul.f32.gmra.mxu0 %v2325
    %v2752 = vpop.f32.mrf.mxu0
    %v2753 = vadd.f32 %v550, %v2752
    %2754 = vdwg.mxu0
    %v2756 = vrot.slane %v2753, 1
    %v2757 = vrot.slane %v2753, 2
    %v2758 = vrot.slane %v2753, 3
    %v2759 = vrot.slane %v2753, 4
    %v2760 = vrot.slane %v2753, 5
    %v2761 = vrot.slane %v2753, 6
    %v2762 = vrot.slane %v2753, 7
    %v2771 = vmul.f32 %v2417, %v2753
    %v2772 = vmul.f32 %v2432, %v2756
    %v2773 = vmul.f32 %v2447, %v2757
    %v2774 = vmul.f32 %v2462, %v2758
    %v2775 = vmul.f32 %v2477, %v2759
    %v2776 = vmul.f32 %v2492, %v2760
    %v2777 = vmul.f32 %v2507, %v2761
    %v2778 = vmul.f32 %v2522, %v2762
    %v2779 = vadd.f32 %v2727, %v2771
    %v2780 = vadd.f32 %v2728, %v2772
    %v2781 = vadd.f32 %v2729, %v2773
    %v2782 = vadd.f32 %v2730, %v2774
    %v2783 = vadd.f32 %v2731, %v2775
    %v2784 = vadd.f32 %v2732, %v2776
    %v2785 = vadd.f32 %v2733, %v2777
    %v2786 = vadd.f32 %v2734, %v2778
    %v2787 = vtanh.pop %v2779
    %v2788 = vtanh.pop %v2780
    %v2789 = vtanh.pop %v2781
    %v2790 = vtanh.pop %v2782
    %v2791 = vtanh.pop %v2783
    %v2792 = vtanh.pop %v2784
    %v2793 = vtanh.pop %v2785
    %v2794 = vtanh.pop %v2786
    %v2795 = vsub.f32 1.0, %v2621
    %v2796 = vsub.f32 1.0, %v2636
    %v2797 = vsub.f32 1.0, %v2651
    %v2798 = vsub.f32 1.0, %v2666
    %v2799 = vsub.f32 1.0, %v2681
    %v2800 = vsub.f32 1.0, %v2696
    %v2801 = vsub.f32 1.0, %v2711
    %v2802 = vsub.f32 1.0, %v2726
    %v2803 = vmul.f32 %v2795, %v2787
    %v2804 = vmul.f32 %v2796, %v2788
    %v2805 = vmul.f32 %v2797, %v2789
    %v2806 = vmul.f32 %v2798, %v2790
    %v2807 = vmul.f32 %v2799, %v2791
    %v2808 = vmul.f32 %v2800, %v2792
    %v2809 = vmul.f32 %v2801, %v2793
    %v2810 = vmul.f32 %v2802, %v2794
    %v2811 = vmul.f32 %v2621, %v2279
    %v2812 = vmul.f32 %v2636, %v2280
    %v2813 = vmul.f32 %v2651, %v2281
    %v2814 = vmul.f32 %v2666, %v2282
    %v2815 = vmul.f32 %v2681, %v2283
    %v2816 = vmul.f32 %v2696, %v2284
    %v2817 = vmul.f32 %v2711, %v2285
    %v2818 = vmul.f32 %v2726, %v2286
    %v2819 = vadd.f32 %v2803, %v2811
    %v2820 = vadd.f32 %v2804, %v2812
    %v2821 = vadd.f32 %v2805, %v2813
    %v2822 = vadd.f32 %v2806, %v2814
    %v2823 = vadd.f32 %v2807, %v2815
    %v2824 = vadd.f32 %v2808, %v2816
    %v2825 = vadd.f32 %v2809, %v2817
    %v2826 = vadd.f32 %v2810, %v2818
    %2827 = vst.msk [vmem:[#allocation3 + $0x4] sm:$0x1] %vm659, %v2819
    %2828 = vst.msk [vmem:[#allocation3 + $0xc] sm:$0x1] %vm659, %v2820
    %2829 = vst.msk [vmem:[#allocation3 + $0x14] sm:$0x1] %vm659, %v2821
    %2830 = vst.msk [vmem:[#allocation3 + $0x1c] sm:$0x1] %vm659, %v2822
    %2831 = vst.msk [vmem:[#allocation3 + $0x24] sm:$0x1] %vm659, %v2823
    %2832 = vst.msk [vmem:[#allocation3 + $0x2c] sm:$0x1] %vm659, %v2824
    %2833 = vst.msk [vmem:[#allocation3 + $0x34] sm:$0x1] %vm659, %v2825
    %2834 = vst.msk [vmem:[#allocation3 + $0x3c] sm:$0x1] %vm659, %v2826
    %v2835 = vld [vmem:[%s0 + $0x5] sm:$0x1]
    %v2836 = vld [vmem:[%s0 + $0xd] sm:$0x1]
    %v2837 = vld [vmem:[%s0 + $0x15] sm:$0x1]
    %v2838 = vld [vmem:[%s0 + $0x1d] sm:$0x1]
    %v2839 = vld [vmem:[%s0 + $0x25] sm:$0x1]
    %v2840 = vld [vmem:[%s0 + $0x2d] sm:$0x1]
    %v2841 = vld [vmem:[%s0 + $0x35] sm:$0x1]
    %v2842 = vld [vmem:[%s0 + $0x3d] sm:$0x1]
    %v2851 = vrot.slane %v2820, 7
    %v2852 = vsel %vm685, %v2851, %v2819
    %v2853 = vrot.slane %v2821, 6
    %v2854 = vsel %vm688, %v2853, %v2852
    %v2855 = vrot.slane %v2822, 5
    %v2856 = vsel %vm691, %v2855, %v2854
    %v2857 = vrot.slane %v2823, 4
    %v2858 = vsel %vm694, %v2857, %v2856
    %v2859 = vrot.slane %v2824, 3
    %v2860 = vsel %vm697, %v2859, %v2858
    %v2861 = vrot.slane %v2825, 2
    %v2862 = vsel %vm700, %v2861, %v2860
    %v2863 = vrot.slane %v2826, 1
    %v2864 = vsel %vm703, %v2863, %v2862
    %v2865 = vsel %vm137, %v2864, 0
    %2867 = vmatpush.msra.mxu0 0.0
    %2868 = vmatpush.msra.mxu0 0.0
    %2869 = vmatpush.msra.mxu0 0.0
    %2870 = vmatpush.msra.mxu0 0.0
    %2871 = vmatpush.msra.mxu0 0.0
    %2872 = vmatpush.msra.mxu0 0.0
    %2873 = vmatpush.msra.mxu0 0.0
    %2874 = vmatpush.msra.mxu0 0.0
    %2875 = vmatpush.msra.mxu0 0.0
    %2876 = vmatpush.msra.mxu0 0.0
    %2877 = vmatpush.msra.mxu0 0.0
    %2878 = vmatpush.msra.mxu0 0.0
    %2879 = vmatpush.msra.mxu0 %v118
    %2880 = vmatpush.msra.mxu0 %v117
    %2881 = vmatpush.msra.mxu0 %v116
    %2882 = vmatpush.msra.mxu0 %v115
    %2883 = vmatmul.f32.gmra.mxu0 %v2865
    %v2884 = vpop.f32.mrf.mxu0
    %v2885 = vadd.f32 0.0, %v2884
    %2886 = vdwg.mxu0
    %v2888 = vrot.slane %v2885, 1
    %v2889 = vrot.slane %v2885, 2
    %v2890 = vrot.slane %v2885, 3
    %v2891 = vrot.slane %v2885, 4
    %v2892 = vrot.slane %v2885, 5
    %v2893 = vrot.slane %v2885, 6
    %v2894 = vrot.slane %v2885, 7
    %v2903 = vadd.f32 %v2835, %v2885
    %v2904 = vadd.f32 %v2836, %v2888
    %v2905 = vadd.f32 %v2837, %v2889
    %v2906 = vadd.f32 %v2838, %v2890
    %v2907 = vadd.f32 %v2839, %v2891
    %v2908 = vadd.f32 %v2840, %v2892
    %v2909 = vadd.f32 %v2841, %v2893
    %v2910 = vadd.f32 %v2842, %v2894
    %v2911 = vxor.u32 %v2903, 2147483648
    %v2912 = vxor.u32 %v2904, 2147483648
    %v2913 = vxor.u32 %v2905, 2147483648
    %v2914 = vxor.u32 %v2906, 2147483648
    %v2915 = vxor.u32 %v2907, 2147483648
    %v2916 = vxor.u32 %v2908, 2147483648
    %v2917 = vxor.u32 %v2909, 2147483648
    %v2918 = vxor.u32 %v2910, 2147483648
    %v2919 = vmul.f32 %v2911, 1.442695
    %v2920 = vpow.pop %v2919
    %v2921 = vmul.f32 %v2912, 1.442695
    %v2922 = vpow.pop %v2921
    %v2923 = vmul.f32 %v2913, 1.442695
    %v2924 = vpow.pop %v2923
    %v2925 = vmul.f32 %v2914, 1.442695
    %v2926 = vpow.pop %v2925
    %v2927 = vmul.f32 %v2915, 1.442695
    %v2928 = vpow.pop %v2927
    %v2929 = vmul.f32 %v2916, 1.442695
    %v2930 = vpow.pop %v2929
    %v2931 = vmul.f32 %v2917, 1.442695
    %v2932 = vpow.pop %v2931
    %v2933 = vmul.f32 %v2918, 1.442695
    %v2934 = vpow.pop %v2933
    %v2935 = vadd.f32 %v2920, 1.0
    %v2936 = vadd.f32 %v2922, 1.0
    %v2937 = vadd.f32 %v2924, 1.0
    %v2938 = vadd.f32 %v2926, 1.0
    %v2939 = vadd.f32 %v2928, 1.0
    %v2940 = vadd.f32 %v2930, 1.0
    %v2941 = vadd.f32 %v2932, 1.0
    %v2942 = vadd.f32 %v2934, 1.0
    %v2943 = vrcp.pop %v2935
    %v2944 = vmul.f32 %v2935, %v2943
    %v2945 = vsub.f32 1.0, %v2944
    %v2946 = vmul.f32 %v2943, %v2945
    %v2947 = vadd.f32 %v2943, %v2946
    %vm2948 = vweird.f32 %v2935
    %vm2949 = vweird.f32 %v2943
    %vm2950 = vmor %vm2948, %vm2949
    %v2951 = vsel %vm2950, %v2943, %v2947
    %v2952 = vand.u32 2147483647, %v2935
    %vm2953 = vcmp.eq.f32.partialorder %v2952, 8.507059e+37
    %v2954 = vand.u32 %v2935, 2147483648
    %v2955 = vor.u32 1.1754944e-38, %v2954
    %v2956 = vsel %vm2953, %v2955, %v2951
    %v2957 = vmul.f32 1.0, %v2956
    %v2958 = vrcp.pop %v2936
    %v2959 = vmul.f32 %v2936, %v2958
    %v2960 = vsub.f32 1.0, %v2959
    %v2961 = vmul.f32 %v2958, %v2960
    %v2962 = vadd.f32 %v2958, %v2961
    %vm2963 = vweird.f32 %v2936
    %vm2964 = vweird.f32 %v2958
    %vm2965 = vmor %vm2963, %vm2964
    %v2966 = vsel %vm2965, %v2958, %v2962
    %v2967 = vand.u32 2147483647, %v2936
    %vm2968 = vcmp.eq.f32.partialorder %v2967, 8.507059e+37
    %v2969 = vand.u32 %v2936, 2147483648
    %v2970 = vor.u32 1.1754944e-38, %v2969
    %v2971 = vsel %vm2968, %v2970, %v2966
    %v2972 = vmul.f32 1.0, %v2971
    %v2973 = vrcp.pop %v2937
    %v2974 = vmul.f32 %v2937, %v2973
    %v2975 = vsub.f32 1.0, %v2974
    %v2976 = vmul.f32 %v2973, %v2975
    %v2977 = vadd.f32 %v2973, %v2976
    %vm2978 = vweird.f32 %v2937
    %vm2979 = vweird.f32 %v2973
    %vm2980 = vmor %vm2978, %vm2979
    %v2981 = vsel %vm2980, %v2973, %v2977
    %v2982 = vand.u32 2147483647, %v2937
    %vm2983 = vcmp.eq.f32.partialorder %v2982, 8.507059e+37
    %v2984 = vand.u32 %v2937, 2147483648
    %v2985 = vor.u32 1.1754944e-38, %v2984
    %v2986 = vsel %vm2983, %v2985, %v2981
    %v2987 = vmul.f32 1.0, %v2986
    %v2988 = vrcp.pop %v2938
    %v2989 = vmul.f32 %v2938, %v2988
    %v2990 = vsub.f32 1.0, %v2989
    %v2991 = vmul.f32 %v2988, %v2990
    %v2992 = vadd.f32 %v2988, %v2991
    %vm2993 = vweird.f32 %v2938
    %vm2994 = vweird.f32 %v2988
    %vm2995 = vmor %vm2993, %vm2994
    %v2996 = vsel %vm2995, %v2988, %v2992
    %v2997 = vand.u32 2147483647, %v2938
    %vm2998 = vcmp.eq.f32.partialorder %v2997, 8.507059e+37
    %v2999 = vand.u32 %v2938, 2147483648
    %v3000 = vor.u32 1.1754944e-38, %v2999
    %v3001 = vsel %vm2998, %v3000, %v2996
    %v3002 = vmul.f32 1.0, %v3001
    %v3003 = vrcp.pop %v2939
    %v3004 = vmul.f32 %v2939, %v3003
    %v3005 = vsub.f32 1.0, %v3004
    %v3006 = vmul.f32 %v3003, %v3005
    %v3007 = vadd.f32 %v3003, %v3006
    %vm3008 = vweird.f32 %v2939
    %vm3009 = vweird.f32 %v3003
    %vm3010 = vmor %vm3008, %vm3009
    %v3011 = vsel %vm3010, %v3003, %v3007
    %v3012 = vand.u32 2147483647, %v2939
    %vm3013 = vcmp.eq.f32.partialorder %v3012, 8.507059e+37
    %v3014 = vand.u32 %v2939, 2147483648
    %v3015 = vor.u32 1.1754944e-38, %v3014
    %v3016 = vsel %vm3013, %v3015, %v3011
    %v3017 = vmul.f32 1.0, %v3016
    %v3018 = vrcp.pop %v2940
    %v3019 = vmul.f32 %v2940, %v3018
    %v3020 = vsub.f32 1.0, %v3019
    %v3021 = vmul.f32 %v3018, %v3020
    %v3022 = vadd.f32 %v3018, %v3021
    %vm3023 = vweird.f32 %v2940
    %vm3024 = vweird.f32 %v3018
    %vm3025 = vmor %vm3023, %vm3024
    %v3026 = vsel %vm3025, %v3018, %v3022
    %v3027 = vand.u32 2147483647, %v2940
    %vm3028 = vcmp.eq.f32.partialorder %v3027, 8.507059e+37
    %v3029 = vand.u32 %v2940, 2147483648
    %v3030 = vor.u32 1.1754944e-38, %v3029
    %v3031 = vsel %vm3028, %v3030, %v3026
    %v3032 = vmul.f32 1.0, %v3031
    %v3033 = vrcp.pop %v2941
    %v3034 = vmul.f32 %v2941, %v3033
    %v3035 = vsub.f32 1.0, %v3034
    %v3036 = vmul.f32 %v3033, %v3035
    %v3037 = vadd.f32 %v3033, %v3036
    %vm3038 = vweird.f32 %v2941
    %vm3039 = vweird.f32 %v3033
    %vm3040 = vmor %vm3038, %vm3039
    %v3041 = vsel %vm3040, %v3033, %v3037
    %v3042 = vand.u32 2147483647, %v2941
    %vm3043 = vcmp.eq.f32.partialorder %v3042, 8.507059e+37
    %v3044 = vand.u32 %v2941, 2147483648
    %v3045 = vor.u32 1.1754944e-38, %v3044
    %v3046 = vsel %vm3043, %v3045, %v3041
    %v3047 = vmul.f32 1.0, %v3046
    %v3048 = vrcp.pop %v2942
    %v3049 = vmul.f32 %v2942, %v3048
    %v3050 = vsub.f32 1.0, %v3049
    %v3051 = vmul.f32 %v3048, %v3050
    %v3052 = vadd.f32 %v3048, %v3051
    %vm3053 = vweird.f32 %v2942
    %vm3054 = vweird.f32 %v3048
    %vm3055 = vmor %vm3053, %vm3054
    %v3056 = vsel %vm3055, %v3048, %v3052
    %v3057 = vand.u32 2147483647, %v2942
    %vm3058 = vcmp.eq.f32.partialorder %v3057, 8.507059e+37
    %v3059 = vand.u32 %v2942, 2147483648
    %v3060 = vor.u32 1.1754944e-38, %v3059
    %v3061 = vsel %vm3058, %v3060, %v3056
    %v3062 = vmul.f32 1.0, %v3061
    %v3063 = vld [vmem:[%s1 + $0x5] sm:$0x1]
    %v3064 = vld [vmem:[%s1 + $0xd] sm:$0x1]
    %v3065 = vld [vmem:[%s1 + $0x15] sm:$0x1]
    %v3066 = vld [vmem:[%s1 + $0x1d] sm:$0x1]
    %v3067 = vld [vmem:[%s1 + $0x25] sm:$0x1]
    %v3068 = vld [vmem:[%s1 + $0x2d] sm:$0x1]
    %v3069 = vld [vmem:[%s1 + $0x35] sm:$0x1]
    %v3070 = vld [vmem:[%s1 + $0x3d] sm:$0x1]
    %3071 = vmatpush.msra.mxu0 0.0
    %3072 = vmatpush.msra.mxu0 0.0
    %3073 = vmatpush.msra.mxu0 0.0
    %3074 = vmatpush.msra.mxu0 0.0
    %3075 = vmatpush.msra.mxu0 0.0
    %3076 = vmatpush.msra.mxu0 0.0
    %3077 = vmatpush.msra.mxu0 0.0
    %3078 = vmatpush.msra.mxu0 0.0
    %3079 = vmatpush.msra.mxu0 0.0
    %3080 = vmatpush.msra.mxu0 0.0
    %3081 = vmatpush.msra.mxu0 0.0
    %3082 = vmatpush.msra.mxu0 0.0
    %3083 = vmatpush.msra.mxu0 %v122
    %3084 = vmatpush.msra.mxu0 %v121
    %3085 = vmatpush.msra.mxu0 %v120
    %3086 = vmatpush.msra.mxu0 %v119
    %3087 = vmatmul.f32.gmra.mxu0 %v2865
    %v3088 = vpop.f32.mrf.mxu0
    %v3089 = vadd.f32 0.0, %v3088
    %3090 = vdwg.mxu0
    %v3092 = vrot.slane %v3089, 1
    %v3093 = vrot.slane %v3089, 2
    %v3094 = vrot.slane %v3089, 3
    %v3095 = vrot.slane %v3089, 4
    %v3096 = vrot.slane %v3089, 5
    %v3097 = vrot.slane %v3089, 6
    %v3098 = vrot.slane %v3089, 7
    %v3107 = vadd.f32 %v3063, %v3089
    %v3108 = vadd.f32 %v3064, %v3092
    %v3109 = vadd.f32 %v3065, %v3093
    %v3110 = vadd.f32 %v3066, %v3094
    %v3111 = vadd.f32 %v3067, %v3095
    %v3112 = vadd.f32 %v3068, %v3096
    %v3113 = vadd.f32 %v3069, %v3097
    %v3114 = vadd.f32 %v3070, %v3098
    %v3115 = vxor.u32 %v3107, 2147483648
    %v3116 = vxor.u32 %v3108, 2147483648
    %v3117 = vxor.u32 %v3109, 2147483648
    %v3118 = vxor.u32 %v3110, 2147483648
    %v3119 = vxor.u32 %v3111, 2147483648
    %v3120 = vxor.u32 %v3112, 2147483648
    %v3121 = vxor.u32 %v3113, 2147483648
    %v3122 = vxor.u32 %v3114, 2147483648
    %v3123 = vmul.f32 %v3115, 1.442695
    %v3124 = vpow.pop %v3123
    %v3125 = vmul.f32 %v3116, 1.442695
    %v3126 = vpow.pop %v3125
    %v3127 = vmul.f32 %v3117, 1.442695
    %v3128 = vpow.pop %v3127
    %v3129 = vmul.f32 %v3118, 1.442695
    %v3130 = vpow.pop %v3129
    %v3131 = vmul.f32 %v3119, 1.442695
    %v3132 = vpow.pop %v3131
    %v3133 = vmul.f32 %v3120, 1.442695
    %v3134 = vpow.pop %v3133
    %v3135 = vmul.f32 %v3121, 1.442695
    %v3136 = vpow.pop %v3135
    %v3137 = vmul.f32 %v3122, 1.442695
    %v3138 = vpow.pop %v3137
    %v3139 = vadd.f32 %v3124, 1.0
    %v3140 = vadd.f32 %v3126, 1.0
    %v3141 = vadd.f32 %v3128, 1.0
    %v3142 = vadd.f32 %v3130, 1.0
    %v3143 = vadd.f32 %v3132, 1.0
    %v3144 = vadd.f32 %v3134, 1.0
    %v3145 = vadd.f32 %v3136, 1.0
    %v3146 = vadd.f32 %v3138, 1.0
    %v3147 = vrcp.pop %v3139
    %v3148 = vmul.f32 %v3139, %v3147
    %v3149 = vsub.f32 1.0, %v3148
    %v3150 = vmul.f32 %v3147, %v3149
    %v3151 = vadd.f32 %v3147, %v3150
    %vm3152 = vweird.f32 %v3139
    %vm3153 = vweird.f32 %v3147
    %vm3154 = vmor %vm3152, %vm3153
    %v3155 = vsel %vm3154, %v3147, %v3151
    %v3156 = vand.u32 2147483647, %v3139
    %vm3157 = vcmp.eq.f32.partialorder %v3156, 8.507059e+37
    %v3158 = vand.u32 %v3139, 2147483648
    %v3159 = vor.u32 1.1754944e-38, %v3158
    %v3160 = vsel %vm3157, %v3159, %v3155
    %v3161 = vmul.f32 1.0, %v3160
    %v3162 = vrcp.pop %v3140
    %v3163 = vmul.f32 %v3140, %v3162
    %v3164 = vsub.f32 1.0, %v3163
    %v3165 = vmul.f32 %v3162, %v3164
    %v3166 = vadd.f32 %v3162, %v3165
    %vm3167 = vweird.f32 %v3140
    %vm3168 = vweird.f32 %v3162
    %vm3169 = vmor %vm3167, %vm3168
    %v3170 = vsel %vm3169, %v3162, %v3166
    %v3171 = vand.u32 2147483647, %v3140
    %vm3172 = vcmp.eq.f32.partialorder %v3171, 8.507059e+37
    %v3173 = vand.u32 %v3140, 2147483648
    %v3174 = vor.u32 1.1754944e-38, %v3173
    %v3175 = vsel %vm3172, %v3174, %v3170
    %v3176 = vmul.f32 1.0, %v3175
    %v3177 = vrcp.pop %v3141
    %v3178 = vmul.f32 %v3141, %v3177
    %v3179 = vsub.f32 1.0, %v3178
    %v3180 = vmul.f32 %v3177, %v3179
    %v3181 = vadd.f32 %v3177, %v3180
    %vm3182 = vweird.f32 %v3141
    %vm3183 = vweird.f32 %v3177
    %vm3184 = vmor %vm3182, %vm3183
    %v3185 = vsel %vm3184, %v3177, %v3181
    %v3186 = vand.u32 2147483647, %v3141
    %vm3187 = vcmp.eq.f32.partialorder %v3186, 8.507059e+37
    %v3188 = vand.u32 %v3141, 2147483648
    %v3189 = vor.u32 1.1754944e-38, %v3188
    %v3190 = vsel %vm3187, %v3189, %v3185
    %v3191 = vmul.f32 1.0, %v3190
    %v3192 = vrcp.pop %v3142
    %v3193 = vmul.f32 %v3142, %v3192
    %v3194 = vsub.f32 1.0, %v3193
    %v3195 = vmul.f32 %v3192, %v3194
    %v3196 = vadd.f32 %v3192, %v3195
    %vm3197 = vweird.f32 %v3142
    %vm3198 = vweird.f32 %v3192
    %vm3199 = vmor %vm3197, %vm3198
    %v3200 = vsel %vm3199, %v3192, %v3196
    %v3201 = vand.u32 2147483647, %v3142
    %vm3202 = vcmp.eq.f32.partialorder %v3201, 8.507059e+37
    %v3203 = vand.u32 %v3142, 2147483648
    %v3204 = vor.u32 1.1754944e-38, %v3203
    %v3205 = vsel %vm3202, %v3204, %v3200
    %v3206 = vmul.f32 1.0, %v3205
    %v3207 = vrcp.pop %v3143
    %v3208 = vmul.f32 %v3143, %v3207
    %v3209 = vsub.f32 1.0, %v3208
    %v3210 = vmul.f32 %v3207, %v3209
    %v3211 = vadd.f32 %v3207, %v3210
    %vm3212 = vweird.f32 %v3143
    %vm3213 = vweird.f32 %v3207
    %vm3214 = vmor %vm3212, %vm3213
    %v3215 = vsel %vm3214, %v3207, %v3211
    %v3216 = vand.u32 2147483647, %v3143
    %vm3217 = vcmp.eq.f32.partialorder %v3216, 8.507059e+37
    %v3218 = vand.u32 %v3143, 2147483648
    %v3219 = vor.u32 1.1754944e-38, %v3218
    %v3220 = vsel %vm3217, %v3219, %v3215
    %v3221 = vmul.f32 1.0, %v3220
    %v3222 = vrcp.pop %v3144
    %v3223 = vmul.f32 %v3144, %v3222
    %v3224 = vsub.f32 1.0, %v3223
    %v3225 = vmul.f32 %v3222, %v3224
    %v3226 = vadd.f32 %v3222, %v3225
    %vm3227 = vweird.f32 %v3144
    %vm3228 = vweird.f32 %v3222
    %vm3229 = vmor %vm3227, %vm3228
    %v3230 = vsel %vm3229, %v3222, %v3226
    %v3231 = vand.u32 2147483647, %v3144
    %vm3232 = vcmp.eq.f32.partialorder %v3231, 8.507059e+37
    %v3233 = vand.u32 %v3144, 2147483648
    %v3234 = vor.u32 1.1754944e-38, %v3233
    %v3235 = vsel %vm3232, %v3234, %v3230
    %v3236 = vmul.f32 1.0, %v3235
    %v3237 = vrcp.pop %v3145
    %v3238 = vmul.f32 %v3145, %v3237
    %v3239 = vsub.f32 1.0, %v3238
    %v3240 = vmul.f32 %v3237, %v3239
    %v3241 = vadd.f32 %v3237, %v3240
    %vm3242 = vweird.f32 %v3145
    %vm3243 = vweird.f32 %v3237
    %vm3244 = vmor %vm3242, %vm3243
    %v3245 = vsel %vm3244, %v3237, %v3241
    %v3246 = vand.u32 2147483647, %v3145
    %vm3247 = vcmp.eq.f32.partialorder %v3246, 8.507059e+37
    %v3248 = vand.u32 %v3145, 2147483648
    %v3249 = vor.u32 1.1754944e-38, %v3248
    %v3250 = vsel %vm3247, %v3249, %v3245
    %v3251 = vmul.f32 1.0, %v3250
    %v3252 = vrcp.pop %v3146
    %v3253 = vmul.f32 %v3146, %v3252
    %v3254 = vsub.f32 1.0, %v3253
    %v3255 = vmul.f32 %v3252, %v3254
    %v3256 = vadd.f32 %v3252, %v3255
    %vm3257 = vweird.f32 %v3146
    %vm3258 = vweird.f32 %v3252
    %vm3259 = vmor %vm3257, %vm3258
    %v3260 = vsel %vm3259, %v3252, %v3256
    %v3261 = vand.u32 2147483647, %v3146
    %vm3262 = vcmp.eq.f32.partialorder %v3261, 8.507059e+37
    %v3263 = vand.u32 %v3146, 2147483648
    %v3264 = vor.u32 1.1754944e-38, %v3263
    %v3265 = vsel %vm3262, %v3264, %v3260
    %v3266 = vmul.f32 1.0, %v3265
    %v3267 = vld [vmem:[%s2 + $0x5] sm:$0x1]
    %v3268 = vld [vmem:[%s2 + $0xd] sm:$0x1]
    %v3269 = vld [vmem:[%s2 + $0x15] sm:$0x1]
    %v3270 = vld [vmem:[%s2 + $0x1d] sm:$0x1]
    %v3271 = vld [vmem:[%s2 + $0x25] sm:$0x1]
    %v3272 = vld [vmem:[%s2 + $0x2d] sm:$0x1]
    %v3273 = vld [vmem:[%s2 + $0x35] sm:$0x1]
    %v3274 = vld [vmem:[%s2 + $0x3d] sm:$0x1]
    %3275 = vmatpush.msra.mxu0 0.0
    %3276 = vmatpush.msra.mxu0 0.0
    %3277 = vmatpush.msra.mxu0 0.0
    %3278 = vmatpush.msra.mxu0 0.0
    %3279 = vmatpush.msra.mxu0 0.0
    %3280 = vmatpush.msra.mxu0 0.0
    %3281 = vmatpush.msra.mxu0 0.0
    %3282 = vmatpush.msra.mxu0 0.0
    %3283 = vmatpush.msra.mxu0 0.0
    %3284 = vmatpush.msra.mxu0 0.0
    %3285 = vmatpush.msra.mxu0 0.0
    %3286 = vmatpush.msra.mxu0 0.0
    %3287 = vmatpush.msra.mxu0 %v126
    %3288 = vmatpush.msra.mxu0 %v125
    %3289 = vmatpush.msra.mxu0 %v124
    %3290 = vmatpush.msra.mxu0 %v123
    %3291 = vmatmul.f32.gmra.mxu0 %v2865
    %v3292 = vpop.f32.mrf.mxu0
    %v3293 = vadd.f32 %v550, %v3292
    %3294 = vdwg.mxu0
    %v3296 = vrot.slane %v3293, 1
    %v3297 = vrot.slane %v3293, 2
    %v3298 = vrot.slane %v3293, 3
    %v3299 = vrot.slane %v3293, 4
    %v3300 = vrot.slane %v3293, 5
    %v3301 = vrot.slane %v3293, 6
    %v3302 = vrot.slane %v3293, 7
    %v3311 = vmul.f32 %v2957, %v3293
    %v3312 = vmul.f32 %v2972, %v3296
    %v3313 = vmul.f32 %v2987, %v3297
    %v3314 = vmul.f32 %v3002, %v3298
    %v3315 = vmul.f32 %v3017, %v3299
    %v3316 = vmul.f32 %v3032, %v3300
    %v3317 = vmul.f32 %v3047, %v3301
    %v3318 = vmul.f32 %v3062, %v3302
    %v3319 = vadd.f32 %v3267, %v3311
    %v3320 = vadd.f32 %v3268, %v3312
    %v3321 = vadd.f32 %v3269, %v3313
    %v3322 = vadd.f32 %v3270, %v3314
    %v3323 = vadd.f32 %v3271, %v3315
    %v3324 = vadd.f32 %v3272, %v3316
    %v3325 = vadd.f32 %v3273, %v3317
    %v3326 = vadd.f32 %v3274, %v3318
    %v3327 = vtanh.pop %v3319
    %v3328 = vtanh.pop %v3320
    %v3329 = vtanh.pop %v3321
    %v3330 = vtanh.pop %v3322
    %v3331 = vtanh.pop %v3323
    %v3332 = vtanh.pop %v3324
    %v3333 = vtanh.pop %v3325
    %v3334 = vtanh.pop %v3326
    %v3335 = vsub.f32 1.0, %v3161
    %v3336 = vsub.f32 1.0, %v3176
    %v3337 = vsub.f32 1.0, %v3191
    %v3338 = vsub.f32 1.0, %v3206
    %v3339 = vsub.f32 1.0, %v3221
    %v3340 = vsub.f32 1.0, %v3236
    %v3341 = vsub.f32 1.0, %v3251
    %v3342 = vsub.f32 1.0, %v3266
    %v3343 = vmul.f32 %v3335, %v3327
    %v3344 = vmul.f32 %v3336, %v3328
    %v3345 = vmul.f32 %v3337, %v3329
    %v3346 = vmul.f32 %v3338, %v3330
    %v3347 = vmul.f32 %v3339, %v3331
    %v3348 = vmul.f32 %v3340, %v3332
    %v3349 = vmul.f32 %v3341, %v3333
    %v3350 = vmul.f32 %v3342, %v3334
    %v3351 = vmul.f32 %v3161, %v2819
    %v3352 = vmul.f32 %v3176, %v2820
    %v3353 = vmul.f32 %v3191, %v2821
    %v3354 = vmul.f32 %v3206, %v2822
    %v3355 = vmul.f32 %v3221, %v2823
    %v3356 = vmul.f32 %v3236, %v2824
    %v3357 = vmul.f32 %v3251, %v2825
    %v3358 = vmul.f32 %v3266, %v2826
    %v3359 = vadd.f32 %v3343, %v3351
    %v3360 = vadd.f32 %v3344, %v3352
    %v3361 = vadd.f32 %v3345, %v3353
    %v3362 = vadd.f32 %v3346, %v3354
    %v3363 = vadd.f32 %v3347, %v3355
    %v3364 = vadd.f32 %v3348, %v3356
    %v3365 = vadd.f32 %v3349, %v3357
    %v3366 = vadd.f32 %v3350, %v3358
    %3367 = vst.msk [vmem:[#allocation3 + $0x5] sm:$0x1] %vm659, %v3359
    %3368 = vst.msk [vmem:[#allocation3 + $0xd] sm:$0x1] %vm659, %v3360
    %3369 = vst.msk [vmem:[#allocation3 + $0x15] sm:$0x1] %vm659, %v3361
    %3370 = vst.msk [vmem:[#allocation3 + $0x1d] sm:$0x1] %vm659, %v3362
    %3371 = vst.msk [vmem:[#allocation3 + $0x25] sm:$0x1] %vm659, %v3363
    %3372 = vst.msk [vmem:[#allocation3 + $0x2d] sm:$0x1] %vm659, %v3364
    %3373 = vst.msk [vmem:[#allocation3 + $0x35] sm:$0x1] %vm659, %v3365
    %3374 = vst.msk [vmem:[#allocation3 + $0x3d] sm:$0x1] %vm659, %v3366
    %v3375 = vld [vmem:[%s0 + $0x6] sm:$0x1]
    %v3376 = vld [vmem:[%s0 + $0xe] sm:$0x1]
    %v3377 = vld [vmem:[%s0 + $0x16] sm:$0x1]
    %v3378 = vld [vmem:[%s0 + $0x1e] sm:$0x1]
    %v3379 = vld [vmem:[%s0 + $0x26] sm:$0x1]
    %v3380 = vld [vmem:[%s0 + $0x2e] sm:$0x1]
    %v3381 = vld [vmem:[%s0 + $0x36] sm:$0x1]
    %v3382 = vld [vmem:[%s0 + $0x3e] sm:$0x1]
    %v3391 = vrot.slane %v3360, 7
    %v3392 = vsel %vm685, %v3391, %v3359
    %v3393 = vrot.slane %v3361, 6
    %v3394 = vsel %vm688, %v3393, %v3392
    %v3395 = vrot.slane %v3362, 5
    %v3396 = vsel %vm691, %v3395, %v3394
    %v3397 = vrot.slane %v3363, 4
    %v3398 = vsel %vm694, %v3397, %v3396
    %v3399 = vrot.slane %v3364, 3
    %v3400 = vsel %vm697, %v3399, %v3398
    %v3401 = vrot.slane %v3365, 2
    %v3402 = vsel %vm700, %v3401, %v3400
    %v3403 = vrot.slane %v3366, 1
    %v3404 = vsel %vm703, %v3403, %v3402
    %v3405 = vsel %vm137, %v3404, 0
    %3407 = vmatpush.msra.mxu0 0.0
    %3408 = vmatpush.msra.mxu0 0.0
    %3409 = vmatpush.msra.mxu0 0.0
    %3410 = vmatpush.msra.mxu0 0.0
    %3411 = vmatpush.msra.mxu0 0.0
    %3412 = vmatpush.msra.mxu0 0.0
    %3413 = vmatpush.msra.mxu0 0.0
    %3414 = vmatpush.msra.mxu0 0.0
    %3415 = vmatpush.msra.mxu0 0.0
    %3416 = vmatpush.msra.mxu0 0.0
    %3417 = vmatpush.msra.mxu0 0.0
    %3418 = vmatpush.msra.mxu0 0.0
    %3419 = vmatpush.msra.mxu0 %v118
    %3420 = vmatpush.msra.mxu0 %v117
    %3421 = vmatpush.msra.mxu0 %v116
    %3422 = vmatpush.msra.mxu0 %v115
    %3423 = vmatmul.f32.gmra.mxu0 %v3405
    %v3424 = vpop.f32.mrf.mxu0
    %v3425 = vadd.f32 0.0, %v3424
    %3426 = vdwg.mxu0
    %v3428 = vrot.slane %v3425, 1
    %v3429 = vrot.slane %v3425, 2
    %v3430 = vrot.slane %v3425, 3
    %v3431 = vrot.slane %v3425, 4
    %v3432 = vrot.slane %v3425, 5
    %v3433 = vrot.slane %v3425, 6
    %v3434 = vrot.slane %v3425, 7
    %v3443 = vadd.f32 %v3375, %v3425
    %v3444 = vadd.f32 %v3376, %v3428
    %v3445 = vadd.f32 %v3377, %v3429
    %v3446 = vadd.f32 %v3378, %v3430
    %v3447 = vadd.f32 %v3379, %v3431
    %v3448 = vadd.f32 %v3380, %v3432
    %v3449 = vadd.f32 %v3381, %v3433
    %v3450 = vadd.f32 %v3382, %v3434
    %v3451 = vxor.u32 %v3443, 2147483648
    %v3452 = vxor.u32 %v3444, 2147483648
    %v3453 = vxor.u32 %v3445, 2147483648
    %v3454 = vxor.u32 %v3446, 2147483648
    %v3455 = vxor.u32 %v3447, 2147483648
    %v3456 = vxor.u32 %v3448, 2147483648
    %v3457 = vxor.u32 %v3449, 2147483648
    %v3458 = vxor.u32 %v3450, 2147483648
    %v3459 = vmul.f32 %v3451, 1.442695
    %v3460 = vpow.pop %v3459
    %v3461 = vmul.f32 %v3452, 1.442695
    %v3462 = vpow.pop %v3461
    %v3463 = vmul.f32 %v3453, 1.442695
    %v3464 = vpow.pop %v3463
    %v3465 = vmul.f32 %v3454, 1.442695
    %v3466 = vpow.pop %v3465
    %v3467 = vmul.f32 %v3455, 1.442695
    %v3468 = vpow.pop %v3467
    %v3469 = vmul.f32 %v3456, 1.442695
    %v3470 = vpow.pop %v3469
    %v3471 = vmul.f32 %v3457, 1.442695
    %v3472 = vpow.pop %v3471
    %v3473 = vmul.f32 %v3458, 1.442695
    %v3474 = vpow.pop %v3473
    %v3475 = vadd.f32 %v3460, 1.0
    %v3476 = vadd.f32 %v3462, 1.0
    %v3477 = vadd.f32 %v3464, 1.0
    %v3478 = vadd.f32 %v3466, 1.0
    %v3479 = vadd.f32 %v3468, 1.0
    %v3480 = vadd.f32 %v3470, 1.0
    %v3481 = vadd.f32 %v3472, 1.0
    %v3482 = vadd.f32 %v3474, 1.0
    %v3483 = vrcp.pop %v3475
    %v3484 = vmul.f32 %v3475, %v3483
    %v3485 = vsub.f32 1.0, %v3484
    %v3486 = vmul.f32 %v3483, %v3485
    %v3487 = vadd.f32 %v3483, %v3486
    %vm3488 = vweird.f32 %v3475
    %vm3489 = vweird.f32 %v3483
    %vm3490 = vmor %vm3488, %vm3489
    %v3491 = vsel %vm3490, %v3483, %v3487
    %v3492 = vand.u32 2147483647, %v3475
    %vm3493 = vcmp.eq.f32.partialorder %v3492, 8.507059e+37
    %v3494 = vand.u32 %v3475, 2147483648
    %v3495 = vor.u32 1.1754944e-38, %v3494
    %v3496 = vsel %vm3493, %v3495, %v3491
    %v3497 = vmul.f32 1.0, %v3496
    %v3498 = vrcp.pop %v3476
    %v3499 = vmul.f32 %v3476, %v3498
    %v3500 = vsub.f32 1.0, %v3499
    %v3501 = vmul.f32 %v3498, %v3500
    %v3502 = vadd.f32 %v3498, %v3501
    %vm3503 = vweird.f32 %v3476
    %vm3504 = vweird.f32 %v3498
    %vm3505 = vmor %vm3503, %vm3504
    %v3506 = vsel %vm3505, %v3498, %v3502
    %v3507 = vand.u32 2147483647, %v3476
    %vm3508 = vcmp.eq.f32.partialorder %v3507, 8.507059e+37
    %v3509 = vand.u32 %v3476, 2147483648
    %v3510 = vor.u32 1.1754944e-38, %v3509
    %v3511 = vsel %vm3508, %v3510, %v3506
    %v3512 = vmul.f32 1.0, %v3511
    %v3513 = vrcp.pop %v3477
    %v3514 = vmul.f32 %v3477, %v3513
    %v3515 = vsub.f32 1.0, %v3514
    %v3516 = vmul.f32 %v3513, %v3515
    %v3517 = vadd.f32 %v3513, %v3516
    %vm3518 = vweird.f32 %v3477
    %vm3519 = vweird.f32 %v3513
    %vm3520 = vmor %vm3518, %vm3519
    %v3521 = vsel %vm3520, %v3513, %v3517
    %v3522 = vand.u32 2147483647, %v3477
    %vm3523 = vcmp.eq.f32.partialorder %v3522, 8.507059e+37
    %v3524 = vand.u32 %v3477, 2147483648
    %v3525 = vor.u32 1.1754944e-38, %v3524
    %v3526 = vsel %vm3523, %v3525, %v3521
    %v3527 = vmul.f32 1.0, %v3526
    %v3528 = vrcp.pop %v3478
    %v3529 = vmul.f32 %v3478, %v3528
    %v3530 = vsub.f32 1.0, %v3529
    %v3531 = vmul.f32 %v3528, %v3530
    %v3532 = vadd.f32 %v3528, %v3531
    %vm3533 = vweird.f32 %v3478
    %vm3534 = vweird.f32 %v3528
    %vm3535 = vmor %vm3533, %vm3534
    %v3536 = vsel %vm3535, %v3528, %v3532
    %v3537 = vand.u32 2147483647, %v3478
    %vm3538 = vcmp.eq.f32.partialorder %v3537, 8.507059e+37
    %v3539 = vand.u32 %v3478, 2147483648
    %v3540 = vor.u32 1.1754944e-38, %v3539
    %v3541 = vsel %vm3538, %v3540, %v3536
    %v3542 = vmul.f32 1.0, %v3541
    %v3543 = vrcp.pop %v3479
    %v3544 = vmul.f32 %v3479, %v3543
    %v3545 = vsub.f32 1.0, %v3544
    %v3546 = vmul.f32 %v3543, %v3545
    %v3547 = vadd.f32 %v3543, %v3546
    %vm3548 = vweird.f32 %v3479
    %vm3549 = vweird.f32 %v3543
    %vm3550 = vmor %vm3548, %vm3549
    %v3551 = vsel %vm3550, %v3543, %v3547
    %v3552 = vand.u32 2147483647, %v3479
    %vm3553 = vcmp.eq.f32.partialorder %v3552, 8.507059e+37
    %v3554 = vand.u32 %v3479, 2147483648
    %v3555 = vor.u32 1.1754944e-38, %v3554
    %v3556 = vsel %vm3553, %v3555, %v3551
    %v3557 = vmul.f32 1.0, %v3556
    %v3558 = vrcp.pop %v3480
    %v3559 = vmul.f32 %v3480, %v3558
    %v3560 = vsub.f32 1.0, %v3559
    %v3561 = vmul.f32 %v3558, %v3560
    %v3562 = vadd.f32 %v3558, %v3561
    %vm3563 = vweird.f32 %v3480
    %vm3564 = vweird.f32 %v3558
    %vm3565 = vmor %vm3563, %vm3564
    %v3566 = vsel %vm3565, %v3558, %v3562
    %v3567 = vand.u32 2147483647, %v3480
    %vm3568 = vcmp.eq.f32.partialorder %v3567, 8.507059e+37
    %v3569 = vand.u32 %v3480, 2147483648
    %v3570 = vor.u32 1.1754944e-38, %v3569
    %v3571 = vsel %vm3568, %v3570, %v3566
    %v3572 = vmul.f32 1.0, %v3571
    %v3573 = vrcp.pop %v3481
    %v3574 = vmul.f32 %v3481, %v3573
    %v3575 = vsub.f32 1.0, %v3574
    %v3576 = vmul.f32 %v3573, %v3575
    %v3577 = vadd.f32 %v3573, %v3576
    %vm3578 = vweird.f32 %v3481
    %vm3579 = vweird.f32 %v3573
    %vm3580 = vmor %vm3578, %vm3579
    %v3581 = vsel %vm3580, %v3573, %v3577
    %v3582 = vand.u32 2147483647, %v3481
    %vm3583 = vcmp.eq.f32.partialorder %v3582, 8.507059e+37
    %v3584 = vand.u32 %v3481, 2147483648
    %v3585 = vor.u32 1.1754944e-38, %v3584
    %v3586 = vsel %vm3583, %v3585, %v3581
    %v3587 = vmul.f32 1.0, %v3586
    %v3588 = vrcp.pop %v3482
    %v3589 = vmul.f32 %v3482, %v3588
    %v3590 = vsub.f32 1.0, %v3589
    %v3591 = vmul.f32 %v3588, %v3590
    %v3592 = vadd.f32 %v3588, %v3591
    %vm3593 = vweird.f32 %v3482
    %vm3594 = vweird.f32 %v3588
    %vm3595 = vmor %vm3593, %vm3594
    %v3596 = vsel %vm3595, %v3588, %v3592
    %v3597 = vand.u32 2147483647, %v3482
    %vm3598 = vcmp.eq.f32.partialorder %v3597, 8.507059e+37
    %v3599 = vand.u32 %v3482, 2147483648
    %v3600 = vor.u32 1.1754944e-38, %v3599
    %v3601 = vsel %vm3598, %v3600, %v3596
    %v3602 = vmul.f32 1.0, %v3601
    %v3603 = vld [vmem:[%s1 + $0x6] sm:$0x1]
    %v3604 = vld [vmem:[%s1 + $0xe] sm:$0x1]
    %v3605 = vld [vmem:[%s1 + $0x16] sm:$0x1]
    %v3606 = vld [vmem:[%s1 + $0x1e] sm:$0x1]
    %v3607 = vld [vmem:[%s1 + $0x26] sm:$0x1]
    %v3608 = vld [vmem:[%s1 + $0x2e] sm:$0x1]
    %v3609 = vld [vmem:[%s1 + $0x36] sm:$0x1]
    %v3610 = vld [vmem:[%s1 + $0x3e] sm:$0x1]
    %3611 = vmatpush.msra.mxu0 0.0
    %3612 = vmatpush.msra.mxu0 0.0
    %3613 = vmatpush.msra.mxu0 0.0
    %3614 = vmatpush.msra.mxu0 0.0
    %3615 = vmatpush.msra.mxu0 0.0
    %3616 = vmatpush.msra.mxu0 0.0
    %3617 = vmatpush.msra.mxu0 0.0
    %3618 = vmatpush.msra.mxu0 0.0
    %3619 = vmatpush.msra.mxu0 0.0
    %3620 = vmatpush.msra.mxu0 0.0
    %3621 = vmatpush.msra.mxu0 0.0
    %3622 = vmatpush.msra.mxu0 0.0
    %3623 = vmatpush.msra.mxu0 %v122
    %3624 = vmatpush.msra.mxu0 %v121
    %3625 = vmatpush.msra.mxu0 %v120
    %3626 = vmatpush.msra.mxu0 %v119
    %3627 = vmatmul.f32.gmra.mxu0 %v3405
    %v3628 = vpop.f32.mrf.mxu0
    %v3629 = vadd.f32 0.0, %v3628
    %3630 = vdwg.mxu0
    %v3632 = vrot.slane %v3629, 1
    %v3633 = vrot.slane %v3629, 2
    %v3634 = vrot.slane %v3629, 3
    %v3635 = vrot.slane %v3629, 4
    %v3636 = vrot.slane %v3629, 5
    %v3637 = vrot.slane %v3629, 6
    %v3638 = vrot.slane %v3629, 7
    %v3647 = vadd.f32 %v3603, %v3629
    %v3648 = vadd.f32 %v3604, %v3632
    %v3649 = vadd.f32 %v3605, %v3633
    %v3650 = vadd.f32 %v3606, %v3634
    %v3651 = vadd.f32 %v3607, %v3635
    %v3652 = vadd.f32 %v3608, %v3636
    %v3653 = vadd.f32 %v3609, %v3637
    %v3654 = vadd.f32 %v3610, %v3638
    %v3655 = vxor.u32 %v3647, 2147483648
    %v3656 = vxor.u32 %v3648, 2147483648
    %v3657 = vxor.u32 %v3649, 2147483648
    %v3658 = vxor.u32 %v3650, 2147483648
    %v3659 = vxor.u32 %v3651, 2147483648
    %v3660 = vxor.u32 %v3652, 2147483648
    %v3661 = vxor.u32 %v3653, 2147483648
    %v3662 = vxor.u32 %v3654, 2147483648
    %v3663 = vmul.f32 %v3655, 1.442695
    %v3664 = vpow.pop %v3663
    %v3665 = vmul.f32 %v3656, 1.442695
    %v3666 = vpow.pop %v3665
    %v3667 = vmul.f32 %v3657, 1.442695
    %v3668 = vpow.pop %v3667
    %v3669 = vmul.f32 %v3658, 1.442695
    %v3670 = vpow.pop %v3669
    %v3671 = vmul.f32 %v3659, 1.442695
    %v3672 = vpow.pop %v3671
    %v3673 = vmul.f32 %v3660, 1.442695
    %v3674 = vpow.pop %v3673
    %v3675 = vmul.f32 %v3661, 1.442695
    %v3676 = vpow.pop %v3675
    %v3677 = vmul.f32 %v3662, 1.442695
    %v3678 = vpow.pop %v3677
    %v3679 = vadd.f32 %v3664, 1.0
    %v3680 = vadd.f32 %v3666, 1.0
    %v3681 = vadd.f32 %v3668, 1.0
    %v3682 = vadd.f32 %v3670, 1.0
    %v3683 = vadd.f32 %v3672, 1.0
    %v3684 = vadd.f32 %v3674, 1.0
    %v3685 = vadd.f32 %v3676, 1.0
    %v3686 = vadd.f32 %v3678, 1.0
    %v3687 = vrcp.pop %v3679
    %v3688 = vmul.f32 %v3679, %v3687
    %v3689 = vsub.f32 1.0, %v3688
    %v3690 = vmul.f32 %v3687, %v3689
    %v3691 = vadd.f32 %v3687, %v3690
    %vm3692 = vweird.f32 %v3679
    %vm3693 = vweird.f32 %v3687
    %vm3694 = vmor %vm3692, %vm3693
    %v3695 = vsel %vm3694, %v3687, %v3691
    %v3696 = vand.u32 2147483647, %v3679
    %vm3697 = vcmp.eq.f32.partialorder %v3696, 8.507059e+37
    %v3698 = vand.u32 %v3679, 2147483648
    %v3699 = vor.u32 1.1754944e-38, %v3698
    %v3700 = vsel %vm3697, %v3699, %v3695
    %v3701 = vmul.f32 1.0, %v3700
    %v3702 = vrcp.pop %v3680
    %v3703 = vmul.f32 %v3680, %v3702
    %v3704 = vsub.f32 1.0, %v3703
    %v3705 = vmul.f32 %v3702, %v3704
    %v3706 = vadd.f32 %v3702, %v3705
    %vm3707 = vweird.f32 %v3680
    %vm3708 = vweird.f32 %v3702
    %vm3709 = vmor %vm3707, %vm3708
    %v3710 = vsel %vm3709, %v3702, %v3706
    %v3711 = vand.u32 2147483647, %v3680
    %vm3712 = vcmp.eq.f32.partialorder %v3711, 8.507059e+37
    %v3713 = vand.u32 %v3680, 2147483648
    %v3714 = vor.u32 1.1754944e-38, %v3713
    %v3715 = vsel %vm3712, %v3714, %v3710
    %v3716 = vmul.f32 1.0, %v3715
    %v3717 = vrcp.pop %v3681
    %v3718 = vmul.f32 %v3681, %v3717
    %v3719 = vsub.f32 1.0, %v3718
    %v3720 = vmul.f32 %v3717, %v3719
    %v3721 = vadd.f32 %v3717, %v3720
    %vm3722 = vweird.f32 %v3681
    %vm3723 = vweird.f32 %v3717
    %vm3724 = vmor %vm3722, %vm3723
    %v3725 = vsel %vm3724, %v3717, %v3721
    %v3726 = vand.u32 2147483647, %v3681
    %vm3727 = vcmp.eq.f32.partialorder %v3726, 8.507059e+37
    %v3728 = vand.u32 %v3681, 2147483648
    %v3729 = vor.u32 1.1754944e-38, %v3728
    %v3730 = vsel %vm3727, %v3729, %v3725
    %v3731 = vmul.f32 1.0, %v3730
    %v3732 = vrcp.pop %v3682
    %v3733 = vmul.f32 %v3682, %v3732
    %v3734 = vsub.f32 1.0, %v3733
    %v3735 = vmul.f32 %v3732, %v3734
    %v3736 = vadd.f32 %v3732, %v3735
    %vm3737 = vweird.f32 %v3682
    %vm3738 = vweird.f32 %v3732
    %vm3739 = vmor %vm3737, %vm3738
    %v3740 = vsel %vm3739, %v3732, %v3736
    %v3741 = vand.u32 2147483647, %v3682
    %vm3742 = vcmp.eq.f32.partialorder %v3741, 8.507059e+37
    %v3743 = vand.u32 %v3682, 2147483648
    %v3744 = vor.u32 1.1754944e-38, %v3743
    %v3745 = vsel %vm3742, %v3744, %v3740
    %v3746 = vmul.f32 1.0, %v3745
    %v3747 = vrcp.pop %v3683
    %v3748 = vmul.f32 %v3683, %v3747
    %v3749 = vsub.f32 1.0, %v3748
    %v3750 = vmul.f32 %v3747, %v3749
    %v3751 = vadd.f32 %v3747, %v3750
    %vm3752 = vweird.f32 %v3683
    %vm3753 = vweird.f32 %v3747
    %vm3754 = vmor %vm3752, %vm3753
    %v3755 = vsel %vm3754, %v3747, %v3751
    %v3756 = vand.u32 2147483647, %v3683
    %vm3757 = vcmp.eq.f32.partialorder %v3756, 8.507059e+37
    %v3758 = vand.u32 %v3683, 2147483648
    %v3759 = vor.u32 1.1754944e-38, %v3758
    %v3760 = vsel %vm3757, %v3759, %v3755
    %v3761 = vmul.f32 1.0, %v3760
    %v3762 = vrcp.pop %v3684
    %v3763 = vmul.f32 %v3684, %v3762
    %v3764 = vsub.f32 1.0, %v3763
    %v3765 = vmul.f32 %v3762, %v3764
    %v3766 = vadd.f32 %v3762, %v3765
    %vm3767 = vweird.f32 %v3684
    %vm3768 = vweird.f32 %v3762
    %vm3769 = vmor %vm3767, %vm3768
    %v3770 = vsel %vm3769, %v3762, %v3766
    %v3771 = vand.u32 2147483647, %v3684
    %vm3772 = vcmp.eq.f32.partialorder %v3771, 8.507059e+37
    %v3773 = vand.u32 %v3684, 2147483648
    %v3774 = vor.u32 1.1754944e-38, %v3773
    %v3775 = vsel %vm3772, %v3774, %v3770
    %v3776 = vmul.f32 1.0, %v3775
    %v3777 = vrcp.pop %v3685
    %v3778 = vmul.f32 %v3685, %v3777
    %v3779 = vsub.f32 1.0, %v3778
    %v3780 = vmul.f32 %v3777, %v3779
    %v3781 = vadd.f32 %v3777, %v3780
    %vm3782 = vweird.f32 %v3685
    %vm3783 = vweird.f32 %v3777
    %vm3784 = vmor %vm3782, %vm3783
    %v3785 = vsel %vm3784, %v3777, %v3781
    %v3786 = vand.u32 2147483647, %v3685
    %vm3787 = vcmp.eq.f32.partialorder %v3786, 8.507059e+37
    %v3788 = vand.u32 %v3685, 2147483648
    %v3789 = vor.u32 1.1754944e-38, %v3788
    %v3790 = vsel %vm3787, %v3789, %v3785
    %v3791 = vmul.f32 1.0, %v3790
    %v3792 = vrcp.pop %v3686
    %v3793 = vmul.f32 %v3686, %v3792
    %v3794 = vsub.f32 1.0, %v3793
    %v3795 = vmul.f32 %v3792, %v3794
    %v3796 = vadd.f32 %v3792, %v3795
    %vm3797 = vweird.f32 %v3686
    %vm3798 = vweird.f32 %v3792
    %vm3799 = vmor %vm3797, %vm3798
    %v3800 = vsel %vm3799, %v3792, %v3796
    %v3801 = vand.u32 2147483647, %v3686
    %vm3802 = vcmp.eq.f32.partialorder %v3801, 8.507059e+37
    %v3803 = vand.u32 %v3686, 2147483648
    %v3804 = vor.u32 1.1754944e-38, %v3803
    %v3805 = vsel %vm3802, %v3804, %v3800
    %v3806 = vmul.f32 1.0, %v3805
    %v3807 = vld [vmem:[%s2 + $0x6] sm:$0x1]
    %v3808 = vld [vmem:[%s2 + $0xe] sm:$0x1]
    %v3809 = vld [vmem:[%s2 + $0x16] sm:$0x1]
    %v3810 = vld [vmem:[%s2 + $0x1e] sm:$0x1]
    %v3811 = vld [vmem:[%s2 + $0x26] sm:$0x1]
    %v3812 = vld [vmem:[%s2 + $0x2e] sm:$0x1]
    %v3813 = vld [vmem:[%s2 + $0x36] sm:$0x1]
    %v3814 = vld [vmem:[%s2 + $0x3e] sm:$0x1]
    %3815 = vmatpush.msra.mxu0 0.0
    %3816 = vmatpush.msra.mxu0 0.0
    %3817 = vmatpush.msra.mxu0 0.0
    %3818 = vmatpush.msra.mxu0 0.0
    %3819 = vmatpush.msra.mxu0 0.0
    %3820 = vmatpush.msra.mxu0 0.0
    %3821 = vmatpush.msra.mxu0 0.0
    %3822 = vmatpush.msra.mxu0 0.0
    %3823 = vmatpush.msra.mxu0 0.0
    %3824 = vmatpush.msra.mxu0 0.0
    %3825 = vmatpush.msra.mxu0 0.0
    %3826 = vmatpush.msra.mxu0 0.0
    %3827 = vmatpush.msra.mxu0 %v126
    %3828 = vmatpush.msra.mxu0 %v125
    %3829 = vmatpush.msra.mxu0 %v124
    %3830 = vmatpush.msra.mxu0 %v123
    %3831 = vmatmul.f32.gmra.mxu0 %v3405
    %v3832 = vpop.f32.mrf.mxu0
    %v3833 = vadd.f32 %v550, %v3832
    %3834 = vdwg.mxu0
    %v3836 = vrot.slane %v3833, 1
    %v3837 = vrot.slane %v3833, 2
    %v3838 = vrot.slane %v3833, 3
    %v3839 = vrot.slane %v3833, 4
    %v3840 = vrot.slane %v3833, 5
    %v3841 = vrot.slane %v3833, 6
    %v3842 = vrot.slane %v3833, 7
    %v3851 = vmul.f32 %v3497, %v3833
    %v3852 = vmul.f32 %v3512, %v3836
    %v3853 = vmul.f32 %v3527, %v3837
    %v3854 = vmul.f32 %v3542, %v3838
    %v3855 = vmul.f32 %v3557, %v3839
    %v3856 = vmul.f32 %v3572, %v3840
    %v3857 = vmul.f32 %v3587, %v3841
    %v3858 = vmul.f32 %v3602, %v3842
    %v3859 = vadd.f32 %v3807, %v3851
    %v3860 = vadd.f32 %v3808, %v3852
    %v3861 = vadd.f32 %v3809, %v3853
    %v3862 = vadd.f32 %v3810, %v3854
    %v3863 = vadd.f32 %v3811, %v3855
    %v3864 = vadd.f32 %v3812, %v3856
    %v3865 = vadd.f32 %v3813, %v3857
    %v3866 = vadd.f32 %v3814, %v3858
    %v3867 = vtanh.pop %v3859
    %v3868 = vtanh.pop %v3860
    %v3869 = vtanh.pop %v3861
    %v3870 = vtanh.pop %v3862
    %v3871 = vtanh.pop %v3863
    %v3872 = vtanh.pop %v3864
    %v3873 = vtanh.pop %v3865
    %v3874 = vtanh.pop %v3866
    %v3875 = vsub.f32 1.0, %v3701
    %v3876 = vsub.f32 1.0, %v3716
    %v3877 = vsub.f32 1.0, %v3731
    %v3878 = vsub.f32 1.0, %v3746
    %v3879 = vsub.f32 1.0, %v3761
    %v3880 = vsub.f32 1.0, %v3776
    %v3881 = vsub.f32 1.0, %v3791
    %v3882 = vsub.f32 1.0, %v3806
    %v3883 = vmul.f32 %v3875, %v3867
    %v3884 = vmul.f32 %v3876, %v3868
    %v3885 = vmul.f32 %v3877, %v3869
    %v3886 = vmul.f32 %v3878, %v3870
    %v3887 = vmul.f32 %v3879, %v3871
    %v3888 = vmul.f32 %v3880, %v3872
    %v3889 = vmul.f32 %v3881, %v3873
    %v3890 = vmul.f32 %v3882, %v3874
    %v3891 = vmul.f32 %v3701, %v3359
    %v3892 = vmul.f32 %v3716, %v3360
    %v3893 = vmul.f32 %v3731, %v3361
    %v3894 = vmul.f32 %v3746, %v3362
    %v3895 = vmul.f32 %v3761, %v3363
    %v3896 = vmul.f32 %v3776, %v3364
    %v3897 = vmul.f32 %v3791, %v3365
    %v3898 = vmul.f32 %v3806, %v3366
    %v3899 = vadd.f32 %v3883, %v3891
    %v3900 = vadd.f32 %v3884, %v3892
    %v3901 = vadd.f32 %v3885, %v3893
    %v3902 = vadd.f32 %v3886, %v3894
    %v3903 = vadd.f32 %v3887, %v3895
    %v3904 = vadd.f32 %v3888, %v3896
    %v3905 = vadd.f32 %v3889, %v3897
    %v3906 = vadd.f32 %v3890, %v3898
    %3907 = vst.msk [vmem:[#allocation3 + $0x6] sm:$0x1] %vm659, %v3899
    %3908 = vst.msk [vmem:[#allocation3 + $0xe] sm:$0x1] %vm659, %v3900
    %3909 = vst.msk [vmem:[#allocation3 + $0x16] sm:$0x1] %vm659, %v3901
    %3910 = vst.msk [vmem:[#allocation3 + $0x1e] sm:$0x1] %vm659, %v3902
    %3911 = vst.msk [vmem:[#allocation3 + $0x26] sm:$0x1] %vm659, %v3903
    %3912 = vst.msk [vmem:[#allocation3 + $0x2e] sm:$0x1] %vm659, %v3904
    %3913 = vst.msk [vmem:[#allocation3 + $0x36] sm:$0x1] %vm659, %v3905
    %3914 = vst.msk [vmem:[#allocation3 + $0x3e] sm:$0x1] %vm659, %v3906
    %v3915 = vld [vmem:[%s0 + $0x7] sm:$0x1]
    %v3916 = vld [vmem:[%s0 + $0xf] sm:$0x1]
    %v3917 = vld [vmem:[%s0 + $0x17] sm:$0x1]
    %v3918 = vld [vmem:[%s0 + $0x1f] sm:$0x1]
    %v3919 = vld [vmem:[%s0 + $0x27] sm:$0x1]
    %v3920 = vld [vmem:[%s0 + $0x2f] sm:$0x1]
    %v3921 = vld [vmem:[%s0 + $0x37] sm:$0x1]
    %v3922 = vld [vmem:[%s0 + $0x3f] sm:$0x1]
    %v3931 = vrot.slane %v3900, 7
    %v3932 = vsel %vm685, %v3931, %v3899
    %v3933 = vrot.slane %v3901, 6
    %v3934 = vsel %vm688, %v3933, %v3932
    %v3935 = vrot.slane %v3902, 5
    %v3936 = vsel %vm691, %v3935, %v3934
    %v3937 = vrot.slane %v3903, 4
    %v3938 = vsel %vm694, %v3937, %v3936
    %v3939 = vrot.slane %v3904, 3
    %v3940 = vsel %vm697, %v3939, %v3938
    %v3941 = vrot.slane %v3905, 2
    %v3942 = vsel %vm700, %v3941, %v3940
    %v3943 = vrot.slane %v3906, 1
    %v3944 = vsel %vm703, %v3943, %v3942
    %v3945 = vsel %vm137, %v3944, 0
    %3947 = vmatpush.msra.mxu0 0.0
    %3948 = vmatpush.msra.mxu0 0.0
    %3949 = vmatpush.msra.mxu0 0.0
    %3950 = vmatpush.msra.mxu0 0.0
    %3951 = vmatpush.msra.mxu0 0.0
    %3952 = vmatpush.msra.mxu0 0.0
    %3953 = vmatpush.msra.mxu0 0.0
    %3954 = vmatpush.msra.mxu0 0.0
    %3955 = vmatpush.msra.mxu0 0.0
    %3956 = vmatpush.msra.mxu0 0.0
    %3957 = vmatpush.msra.mxu0 0.0
    %3958 = vmatpush.msra.mxu0 0.0
    %3959 = vmatpush.msra.mxu0 %v118
    %3960 = vmatpush.msra.mxu0 %v117
    %3961 = vmatpush.msra.mxu0 %v116
    %3962 = vmatpush.msra.mxu0 %v115
    %3963 = vmatmul.f32.gmra.mxu0 %v3945
    %v3964 = vpop.f32.mrf.mxu0
    %v3965 = vadd.f32 0.0, %v3964
    %3966 = vdwg.mxu0
    %v3968 = vrot.slane %v3965, 1
    %v3969 = vrot.slane %v3965, 2
    %v3970 = vrot.slane %v3965, 3
    %v3971 = vrot.slane %v3965, 4
    %v3972 = vrot.slane %v3965, 5
    %v3973 = vrot.slane %v3965, 6
    %v3974 = vrot.slane %v3965, 7
    %v3983 = vadd.f32 %v3915, %v3965
    %v3984 = vadd.f32 %v3916, %v3968
    %v3985 = vadd.f32 %v3917, %v3969
    %v3986 = vadd.f32 %v3918, %v3970
    %v3987 = vadd.f32 %v3919, %v3971
    %v3988 = vadd.f32 %v3920, %v3972
    %v3989 = vadd.f32 %v3921, %v3973
    %v3990 = vadd.f32 %v3922, %v3974
    %v3991 = vxor.u32 %v3983, 2147483648
    %v3992 = vxor.u32 %v3984, 2147483648
    %v3993 = vxor.u32 %v3985, 2147483648
    %v3994 = vxor.u32 %v3986, 2147483648
    %v3995 = vxor.u32 %v3987, 2147483648
    %v3996 = vxor.u32 %v3988, 2147483648
    %v3997 = vxor.u32 %v3989, 2147483648
    %v3998 = vxor.u32 %v3990, 2147483648
    %v3999 = vmul.f32 %v3991, 1.442695
    %v4000 = vpow.pop %v3999
    %v4001 = vmul.f32 %v3992, 1.442695
    %v4002 = vpow.pop %v4001
    %v4003 = vmul.f32 %v3993, 1.442695
    %v4004 = vpow.pop %v4003
    %v4005 = vmul.f32 %v3994, 1.442695
    %v4006 = vpow.pop %v4005
    %v4007 = vmul.f32 %v3995, 1.442695
    %v4008 = vpow.pop %v4007
    %v4009 = vmul.f32 %v3996, 1.442695
    %v4010 = vpow.pop %v4009
    %v4011 = vmul.f32 %v3997, 1.442695
    %v4012 = vpow.pop %v4011
    %v4013 = vmul.f32 %v3998, 1.442695
    %v4014 = vpow.pop %v4013
    %v4015 = vadd.f32 %v4000, 1.0
    %v4016 = vadd.f32 %v4002, 1.0
    %v4017 = vadd.f32 %v4004, 1.0
    %v4018 = vadd.f32 %v4006, 1.0
    %v4019 = vadd.f32 %v4008, 1.0
    %v4020 = vadd.f32 %v4010, 1.0
    %v4021 = vadd.f32 %v4012, 1.0
    %v4022 = vadd.f32 %v4014, 1.0
    %v4023 = vrcp.pop %v4015
    %v4024 = vmul.f32 %v4015, %v4023
    %v4025 = vsub.f32 1.0, %v4024
    %v4026 = vmul.f32 %v4023, %v4025
    %v4027 = vadd.f32 %v4023, %v4026
    %vm4028 = vweird.f32 %v4015
    %vm4029 = vweird.f32 %v4023
    %vm4030 = vmor %vm4028, %vm4029
    %v4031 = vsel %vm4030, %v4023, %v4027
    %v4032 = vand.u32 2147483647, %v4015
    %vm4033 = vcmp.eq.f32.partialorder %v4032, 8.507059e+37
    %v4034 = vand.u32 %v4015, 2147483648
    %v4035 = vor.u32 1.1754944e-38, %v4034
    %v4036 = vsel %vm4033, %v4035, %v4031
    %v4037 = vmul.f32 1.0, %v4036
    %v4038 = vrcp.pop %v4016
    %v4039 = vmul.f32 %v4016, %v4038
    %v4040 = vsub.f32 1.0, %v4039
    %v4041 = vmul.f32 %v4038, %v4040
    %v4042 = vadd.f32 %v4038, %v4041
    %vm4043 = vweird.f32 %v4016
    %vm4044 = vweird.f32 %v4038
    %vm4045 = vmor %vm4043, %vm4044
    %v4046 = vsel %vm4045, %v4038, %v4042
    %v4047 = vand.u32 2147483647, %v4016
    %vm4048 = vcmp.eq.f32.partialorder %v4047, 8.507059e+37
    %v4049 = vand.u32 %v4016, 2147483648
    %v4050 = vor.u32 1.1754944e-38, %v4049
    %v4051 = vsel %vm4048, %v4050, %v4046
    %v4052 = vmul.f32 1.0, %v4051
    %v4053 = vrcp.pop %v4017
    %v4054 = vmul.f32 %v4017, %v4053
    %v4055 = vsub.f32 1.0, %v4054
    %v4056 = vmul.f32 %v4053, %v4055
    %v4057 = vadd.f32 %v4053, %v4056
    %vm4058 = vweird.f32 %v4017
    %vm4059 = vweird.f32 %v4053
    %vm4060 = vmor %vm4058, %vm4059
    %v4061 = vsel %vm4060, %v4053, %v4057
    %v4062 = vand.u32 2147483647, %v4017
    %vm4063 = vcmp.eq.f32.partialorder %v4062, 8.507059e+37
    %v4064 = vand.u32 %v4017, 2147483648
    %v4065 = vor.u32 1.1754944e-38, %v4064
    %v4066 = vsel %vm4063, %v4065, %v4061
    %v4067 = vmul.f32 1.0, %v4066
    %v4068 = vrcp.pop %v4018
    %v4069 = vmul.f32 %v4018, %v4068
    %v4070 = vsub.f32 1.0, %v4069
    %v4071 = vmul.f32 %v4068, %v4070
    %v4072 = vadd.f32 %v4068, %v4071
    %vm4073 = vweird.f32 %v4018
    %vm4074 = vweird.f32 %v4068
    %vm4075 = vmor %vm4073, %vm4074
    %v4076 = vsel %vm4075, %v4068, %v4072
    %v4077 = vand.u32 2147483647, %v4018
    %vm4078 = vcmp.eq.f32.partialorder %v4077, 8.507059e+37
    %v4079 = vand.u32 %v4018, 2147483648
    %v4080 = vor.u32 1.1754944e-38, %v4079
    %v4081 = vsel %vm4078, %v4080, %v4076
    %v4082 = vmul.f32 1.0, %v4081
    %v4083 = vrcp.pop %v4019
    %v4084 = vmul.f32 %v4019, %v4083
    %v4085 = vsub.f32 1.0, %v4084
    %v4086 = vmul.f32 %v4083, %v4085
    %v4087 = vadd.f32 %v4083, %v4086
    %vm4088 = vweird.f32 %v4019
    %vm4089 = vweird.f32 %v4083
    %vm4090 = vmor %vm4088, %vm4089
    %v4091 = vsel %vm4090, %v4083, %v4087
    %v4092 = vand.u32 2147483647, %v4019
    %vm4093 = vcmp.eq.f32.partialorder %v4092, 8.507059e+37
    %v4094 = vand.u32 %v4019, 2147483648
    %v4095 = vor.u32 1.1754944e-38, %v4094
    %v4096 = vsel %vm4093, %v4095, %v4091
    %v4097 = vmul.f32 1.0, %v4096
    %v4098 = vrcp.pop %v4020
    %v4099 = vmul.f32 %v4020, %v4098
    %v4100 = vsub.f32 1.0, %v4099
    %v4101 = vmul.f32 %v4098, %v4100
    %v4102 = vadd.f32 %v4098, %v4101
    %vm4103 = vweird.f32 %v4020
    %vm4104 = vweird.f32 %v4098
    %vm4105 = vmor %vm4103, %vm4104
    %v4106 = vsel %vm4105, %v4098, %v4102
    %v4107 = vand.u32 2147483647, %v4020
    %vm4108 = vcmp.eq.f32.partialorder %v4107, 8.507059e+37
    %v4109 = vand.u32 %v4020, 2147483648
    %v4110 = vor.u32 1.1754944e-38, %v4109
    %v4111 = vsel %vm4108, %v4110, %v4106
    %v4112 = vmul.f32 1.0, %v4111
    %v4113 = vrcp.pop %v4021
    %v4114 = vmul.f32 %v4021, %v4113
    %v4115 = vsub.f32 1.0, %v4114
    %v4116 = vmul.f32 %v4113, %v4115
    %v4117 = vadd.f32 %v4113, %v4116
    %vm4118 = vweird.f32 %v4021
    %vm4119 = vweird.f32 %v4113
    %vm4120 = vmor %vm4118, %vm4119
    %v4121 = vsel %vm4120, %v4113, %v4117
    %v4122 = vand.u32 2147483647, %v4021
    %vm4123 = vcmp.eq.f32.partialorder %v4122, 8.507059e+37
    %v4124 = vand.u32 %v4021, 2147483648
    %v4125 = vor.u32 1.1754944e-38, %v4124
    %v4126 = vsel %vm4123, %v4125, %v4121
    %v4127 = vmul.f32 1.0, %v4126
    %v4128 = vrcp.pop %v4022
    %v4129 = vmul.f32 %v4022, %v4128
    %v4130 = vsub.f32 1.0, %v4129
    %v4131 = vmul.f32 %v4128, %v4130
    %v4132 = vadd.f32 %v4128, %v4131
    %vm4133 = vweird.f32 %v4022
    %vm4134 = vweird.f32 %v4128
    %vm4135 = vmor %vm4133, %vm4134
    %v4136 = vsel %vm4135, %v4128, %v4132
    %v4137 = vand.u32 2147483647, %v4022
    %vm4138 = vcmp.eq.f32.partialorder %v4137, 8.507059e+37
    %v4139 = vand.u32 %v4022, 2147483648
    %v4140 = vor.u32 1.1754944e-38, %v4139
    %v4141 = vsel %vm4138, %v4140, %v4136
    %v4142 = vmul.f32 1.0, %v4141
    %v4143 = vld [vmem:[%s1 + $0x7] sm:$0x1]
    %v4144 = vld [vmem:[%s1 + $0xf] sm:$0x1]
    %v4145 = vld [vmem:[%s1 + $0x17] sm:$0x1]
    %v4146 = vld [vmem:[%s1 + $0x1f] sm:$0x1]
    %v4147 = vld [vmem:[%s1 + $0x27] sm:$0x1]
    %v4148 = vld [vmem:[%s1 + $0x2f] sm:$0x1]
    %v4149 = vld [vmem:[%s1 + $0x37] sm:$0x1]
    %v4150 = vld [vmem:[%s1 + $0x3f] sm:$0x1]
    %4151 = vmatpush.msra.mxu0 0.0
    %4152 = vmatpush.msra.mxu0 0.0
    %4153 = vmatpush.msra.mxu0 0.0
    %4154 = vmatpush.msra.mxu0 0.0
    %4155 = vmatpush.msra.mxu0 0.0
    %4156 = vmatpush.msra.mxu0 0.0
    %4157 = vmatpush.msra.mxu0 0.0
    %4158 = vmatpush.msra.mxu0 0.0
    %4159 = vmatpush.msra.mxu0 0.0
    %4160 = vmatpush.msra.mxu0 0.0
    %4161 = vmatpush.msra.mxu0 0.0
    %4162 = vmatpush.msra.mxu0 0.0
    %4163 = vmatpush.msra.mxu0 %v122
    %4164 = vmatpush.msra.mxu0 %v121
    %4165 = vmatpush.msra.mxu0 %v120
    %4166 = vmatpush.msra.mxu0 %v119
    %4167 = vmatmul.f32.gmra.mxu0 %v3945
    %v4168 = vpop.f32.mrf.mxu0
    %v4169 = vadd.f32 0.0, %v4168
    %4170 = vdwg.mxu0
    %v4172 = vrot.slane %v4169, 1
    %v4173 = vrot.slane %v4169, 2
    %v4174 = vrot.slane %v4169, 3
    %v4175 = vrot.slane %v4169, 4
    %v4176 = vrot.slane %v4169, 5
    %v4177 = vrot.slane %v4169, 6
    %v4178 = vrot.slane %v4169, 7
    %v4187 = vadd.f32 %v4143, %v4169
    %v4188 = vadd.f32 %v4144, %v4172
    %v4189 = vadd.f32 %v4145, %v4173
    %v4190 = vadd.f32 %v4146, %v4174
    %v4191 = vadd.f32 %v4147, %v4175
    %v4192 = vadd.f32 %v4148, %v4176
    %v4193 = vadd.f32 %v4149, %v4177
    %v4194 = vadd.f32 %v4150, %v4178
    %v4195 = vxor.u32 %v4187, 2147483648
    %v4196 = vxor.u32 %v4188, 2147483648
    %v4197 = vxor.u32 %v4189, 2147483648
    %v4198 = vxor.u32 %v4190, 2147483648
    %v4199 = vxor.u32 %v4191, 2147483648
    %v4200 = vxor.u32 %v4192, 2147483648
    %v4201 = vxor.u32 %v4193, 2147483648
    %v4202 = vxor.u32 %v4194, 2147483648
    %v4203 = vmul.f32 %v4195, 1.442695
    %v4204 = vpow.pop %v4203
    %v4205 = vmul.f32 %v4196, 1.442695
    %v4206 = vpow.pop %v4205
    %v4207 = vmul.f32 %v4197, 1.442695
    %v4208 = vpow.pop %v4207
    %v4209 = vmul.f32 %v4198, 1.442695
    %v4210 = vpow.pop %v4209
    %v4211 = vmul.f32 %v4199, 1.442695
    %v4212 = vpow.pop %v4211
    %v4213 = vmul.f32 %v4200, 1.442695
    %v4214 = vpow.pop %v4213
    %v4215 = vmul.f32 %v4201, 1.442695
    %v4216 = vpow.pop %v4215
    %v4217 = vmul.f32 %v4202, 1.442695
    %v4218 = vpow.pop %v4217
    %v4219 = vadd.f32 %v4204, 1.0
    %v4220 = vadd.f32 %v4206, 1.0
    %v4221 = vadd.f32 %v4208, 1.0
    %v4222 = vadd.f32 %v4210, 1.0
    %v4223 = vadd.f32 %v4212, 1.0
    %v4224 = vadd.f32 %v4214, 1.0
    %v4225 = vadd.f32 %v4216, 1.0
    %v4226 = vadd.f32 %v4218, 1.0
    %v4227 = vrcp.pop %v4219
    %v4228 = vmul.f32 %v4219, %v4227
    %v4229 = vsub.f32 1.0, %v4228
    %v4230 = vmul.f32 %v4227, %v4229
    %v4231 = vadd.f32 %v4227, %v4230
    %vm4232 = vweird.f32 %v4219
    %vm4233 = vweird.f32 %v4227
    %vm4234 = vmor %vm4232, %vm4233
    %v4235 = vsel %vm4234, %v4227, %v4231
    %v4236 = vand.u32 2147483647, %v4219
    %vm4237 = vcmp.eq.f32.partialorder %v4236, 8.507059e+37
    %v4238 = vand.u32 %v4219, 2147483648
    %v4239 = vor.u32 1.1754944e-38, %v4238
    %v4240 = vsel %vm4237, %v4239, %v4235
    %v4241 = vmul.f32 1.0, %v4240
    %v4242 = vrcp.pop %v4220
    %v4243 = vmul.f32 %v4220, %v4242
    %v4244 = vsub.f32 1.0, %v4243
    %v4245 = vmul.f32 %v4242, %v4244
    %v4246 = vadd.f32 %v4242, %v4245
    %vm4247 = vweird.f32 %v4220
    %vm4248 = vweird.f32 %v4242
    %vm4249 = vmor %vm4247, %vm4248
    %v4250 = vsel %vm4249, %v4242, %v4246
    %v4251 = vand.u32 2147483647, %v4220
    %vm4252 = vcmp.eq.f32.partialorder %v4251, 8.507059e+37
    %v4253 = vand.u32 %v4220, 2147483648
    %v4254 = vor.u32 1.1754944e-38, %v4253
    %v4255 = vsel %vm4252, %v4254, %v4250
    %v4256 = vmul.f32 1.0, %v4255
    %v4257 = vrcp.pop %v4221
    %v4258 = vmul.f32 %v4221, %v4257
    %v4259 = vsub.f32 1.0, %v4258
    %v4260 = vmul.f32 %v4257, %v4259
    %v4261 = vadd.f32 %v4257, %v4260
    %vm4262 = vweird.f32 %v4221
    %vm4263 = vweird.f32 %v4257
    %vm4264 = vmor %vm4262, %vm4263
    %v4265 = vsel %vm4264, %v4257, %v4261
    %v4266 = vand.u32 2147483647, %v4221
    %vm4267 = vcmp.eq.f32.partialorder %v4266, 8.507059e+37
    %v4268 = vand.u32 %v4221, 2147483648
    %v4269 = vor.u32 1.1754944e-38, %v4268
    %v4270 = vsel %vm4267, %v4269, %v4265
    %v4271 = vmul.f32 1.0, %v4270
    %v4272 = vrcp.pop %v4222
    %v4273 = vmul.f32 %v4222, %v4272
    %v4274 = vsub.f32 1.0, %v4273
    %v4275 = vmul.f32 %v4272, %v4274
    %v4276 = vadd.f32 %v4272, %v4275
    %vm4277 = vweird.f32 %v4222
    %vm4278 = vweird.f32 %v4272
    %vm4279 = vmor %vm4277, %vm4278
    %v4280 = vsel %vm4279, %v4272, %v4276
    %v4281 = vand.u32 2147483647, %v4222
    %vm4282 = vcmp.eq.f32.partialorder %v4281, 8.507059e+37
    %v4283 = vand.u32 %v4222, 2147483648
    %v4284 = vor.u32 1.1754944e-38, %v4283
    %v4285 = vsel %vm4282, %v4284, %v4280
    %v4286 = vmul.f32 1.0, %v4285
    %v4287 = vrcp.pop %v4223
    %v4288 = vmul.f32 %v4223, %v4287
    %v4289 = vsub.f32 1.0, %v4288
    %v4290 = vmul.f32 %v4287, %v4289
    %v4291 = vadd.f32 %v4287, %v4290
    %vm4292 = vweird.f32 %v4223
    %vm4293 = vweird.f32 %v4287
    %vm4294 = vmor %vm4292, %vm4293
    %v4295 = vsel %vm4294, %v4287, %v4291
    %v4296 = vand.u32 2147483647, %v4223
    %vm4297 = vcmp.eq.f32.partialorder %v4296, 8.507059e+37
    %v4298 = vand.u32 %v4223, 2147483648
    %v4299 = vor.u32 1.1754944e-38, %v4298
    %v4300 = vsel %vm4297, %v4299, %v4295
    %v4301 = vmul.f32 1.0, %v4300
    %v4302 = vrcp.pop %v4224
    %v4303 = vmul.f32 %v4224, %v4302
    %v4304 = vsub.f32 1.0, %v4303
    %v4305 = vmul.f32 %v4302, %v4304
    %v4306 = vadd.f32 %v4302, %v4305
    %vm4307 = vweird.f32 %v4224
    %vm4308 = vweird.f32 %v4302
    %vm4309 = vmor %vm4307, %vm4308
    %v4310 = vsel %vm4309, %v4302, %v4306
    %v4311 = vand.u32 2147483647, %v4224
    %vm4312 = vcmp.eq.f32.partialorder %v4311, 8.507059e+37
    %v4313 = vand.u32 %v4224, 2147483648
    %v4314 = vor.u32 1.1754944e-38, %v4313
    %v4315 = vsel %vm4312, %v4314, %v4310
    %v4316 = vmul.f32 1.0, %v4315
    %v4317 = vrcp.pop %v4225
    %v4318 = vmul.f32 %v4225, %v4317
    %v4319 = vsub.f32 1.0, %v4318
    %v4320 = vmul.f32 %v4317, %v4319
    %v4321 = vadd.f32 %v4317, %v4320
    %vm4322 = vweird.f32 %v4225
    %vm4323 = vweird.f32 %v4317
    %vm4324 = vmor %vm4322, %vm4323
    %v4325 = vsel %vm4324, %v4317, %v4321
    %v4326 = vand.u32 2147483647, %v4225
    %vm4327 = vcmp.eq.f32.partialorder %v4326, 8.507059e+37
    %v4328 = vand.u32 %v4225, 2147483648
    %v4329 = vor.u32 1.1754944e-38, %v4328
    %v4330 = vsel %vm4327, %v4329, %v4325
    %v4331 = vmul.f32 1.0, %v4330
    %v4332 = vrcp.pop %v4226
    %v4333 = vmul.f32 %v4226, %v4332
    %v4334 = vsub.f32 1.0, %v4333
    %v4335 = vmul.f32 %v4332, %v4334
    %v4336 = vadd.f32 %v4332, %v4335
    %vm4337 = vweird.f32 %v4226
    %vm4338 = vweird.f32 %v4332
    %vm4339 = vmor %vm4337, %vm4338
    %v4340 = vsel %vm4339, %v4332, %v4336
    %v4341 = vand.u32 2147483647, %v4226
    %vm4342 = vcmp.eq.f32.partialorder %v4341, 8.507059e+37
    %v4343 = vand.u32 %v4226, 2147483648
    %v4344 = vor.u32 1.1754944e-38, %v4343
    %v4345 = vsel %vm4342, %v4344, %v4340
    %v4346 = vmul.f32 1.0, %v4345
    %v4347 = vld [vmem:[%s2 + $0x7] sm:$0x1]
    %v4348 = vld [vmem:[%s2 + $0xf] sm:$0x1]
    %v4349 = vld [vmem:[%s2 + $0x17] sm:$0x1]
    %v4350 = vld [vmem:[%s2 + $0x1f] sm:$0x1]
    %v4351 = vld [vmem:[%s2 + $0x27] sm:$0x1]
    %v4352 = vld [vmem:[%s2 + $0x2f] sm:$0x1]
    %v4353 = vld [vmem:[%s2 + $0x37] sm:$0x1]
    %v4354 = vld [vmem:[%s2 + $0x3f] sm:$0x1]
    %4355 = vmatpush.msra.mxu0 0.0
    %4356 = vmatpush.msra.mxu0 0.0
    %4357 = vmatpush.msra.mxu0 0.0
    %4358 = vmatpush.msra.mxu0 0.0
    %4359 = vmatpush.msra.mxu0 0.0
    %4360 = vmatpush.msra.mxu0 0.0
    %4361 = vmatpush.msra.mxu0 0.0
    %4362 = vmatpush.msra.mxu0 0.0
    %4363 = vmatpush.msra.mxu0 0.0
    %4364 = vmatpush.msra.mxu0 0.0
    %4365 = vmatpush.msra.mxu0 0.0
    %4366 = vmatpush.msra.mxu0 0.0
    %4367 = vmatpush.msra.mxu0 %v126
    %4368 = vmatpush.msra.mxu0 %v125
    %4369 = vmatpush.msra.mxu0 %v124
    %4370 = vmatpush.msra.mxu0 %v123
    %4371 = vmatmul.f32.gmra.mxu0 %v3945
    %v4372 = vpop.f32.mrf.mxu0
    %v4373 = vadd.f32 %v550, %v4372
    %4374 = vdwg.mxu0
    %v4376 = vrot.slane %v4373, 1
    %v4377 = vrot.slane %v4373, 2
    %v4378 = vrot.slane %v4373, 3
    %v4379 = vrot.slane %v4373, 4
    %v4380 = vrot.slane %v4373, 5
    %v4381 = vrot.slane %v4373, 6
    %v4382 = vrot.slane %v4373, 7
    %v4391 = vmul.f32 %v4037, %v4373
    %v4392 = vmul.f32 %v4052, %v4376
    %v4393 = vmul.f32 %v4067, %v4377
    %v4394 = vmul.f32 %v4082, %v4378
    %v4395 = vmul.f32 %v4097, %v4379
    %v4396 = vmul.f32 %v4112, %v4380
    %v4397 = vmul.f32 %v4127, %v4381
    %v4398 = vmul.f32 %v4142, %v4382
    %v4399 = vadd.f32 %v4347, %v4391
    %v4400 = vadd.f32 %v4348, %v4392
    %v4401 = vadd.f32 %v4349, %v4393
    %v4402 = vadd.f32 %v4350, %v4394
    %v4403 = vadd.f32 %v4351, %v4395
    %v4404 = vadd.f32 %v4352, %v4396
    %v4405 = vadd.f32 %v4353, %v4397
    %v4406 = vadd.f32 %v4354, %v4398
    %v4407 = vtanh.pop %v4399
    %v4408 = vtanh.pop %v4400
    %v4409 = vtanh.pop %v4401
    %v4410 = vtanh.pop %v4402
    %v4411 = vtanh.pop %v4403
    %v4412 = vtanh.pop %v4404
    %v4413 = vtanh.pop %v4405
    %v4414 = vtanh.pop %v4406
    %v4415 = vsub.f32 1.0, %v4241
    %v4416 = vsub.f32 1.0, %v4256
    %v4417 = vsub.f32 1.0, %v4271
    %v4418 = vsub.f32 1.0, %v4286
    %v4419 = vsub.f32 1.0, %v4301
    %v4420 = vsub.f32 1.0, %v4316
    %v4421 = vsub.f32 1.0, %v4331
    %v4422 = vsub.f32 1.0, %v4346
    %v4423 = vmul.f32 %v4415, %v4407
    %v4424 = vmul.f32 %v4416, %v4408
    %v4425 = vmul.f32 %v4417, %v4409
    %v4426 = vmul.f32 %v4418, %v4410
    %v4427 = vmul.f32 %v4419, %v4411
    %v4428 = vmul.f32 %v4420, %v4412
    %v4429 = vmul.f32 %v4421, %v4413
    %v4430 = vmul.f32 %v4422, %v4414
    %v4431 = vmul.f32 %v4241, %v3899
    %v4432 = vmul.f32 %v4256, %v3900
    %v4433 = vmul.f32 %v4271, %v3901
    %v4434 = vmul.f32 %v4286, %v3902
    %v4435 = vmul.f32 %v4301, %v3903
    %v4436 = vmul.f32 %v4316, %v3904
    %v4437 = vmul.f32 %v4331, %v3905
    %v4438 = vmul.f32 %v4346, %v3906
    %v4439 = vadd.f32 %v4423, %v4431
    %v4440 = vadd.f32 %v4424, %v4432
    %v4441 = vadd.f32 %v4425, %v4433
    %v4442 = vadd.f32 %v4426, %v4434
    %v4443 = vadd.f32 %v4427, %v4435
    %v4444 = vadd.f32 %v4428, %v4436
    %v4445 = vadd.f32 %v4429, %v4437
    %v4446 = vadd.f32 %v4430, %v4438
    %4447 = vst.msk [vmem:[#allocation3 + $0x7] sm:$0x1] %vm659, %v4439
    %4448 = vst.msk [vmem:[#allocation3 + $0xf] sm:$0x1] %vm659, %v4440
    %4449 = vst.msk [vmem:[#allocation3 + $0x17] sm:$0x1] %vm659, %v4441
    %4450 = vst.msk [vmem:[#allocation3 + $0x1f] sm:$0x1] %vm659, %v4442
    %4451 = vst.msk [vmem:[#allocation3 + $0x27] sm:$0x1] %vm659, %v4443
    %4452 = vst.msk [vmem:[#allocation3 + $0x2f] sm:$0x1] %vm659, %v4444
    %4453 = vst.msk [vmem:[#allocation3 + $0x37] sm:$0x1] %vm659, %v4445
    %4454 = vst.msk [vmem:[#allocation3 + $0x3f] sm:$0x1] %vm659, %v4446
    %v4463 = vrot.slane %v4440, 7
    %v4464 = vsel %vm685, %v4463, %v4439
    %v4465 = vrot.slane %v4441, 6
    %v4466 = vsel %vm688, %v4465, %v4464
    %v4467 = vrot.slane %v4442, 5
    %v4468 = vsel %vm691, %v4467, %v4466
    %v4469 = vrot.slane %v4443, 4
    %v4470 = vsel %vm694, %v4469, %v4468
    %v4471 = vrot.slane %v4444, 3
    %v4472 = vsel %vm697, %v4471, %v4470
    %v4473 = vrot.slane %v4445, 2
    %v4474 = vsel %vm700, %v4473, %v4472
    %v4475 = vrot.slane %v4446, 1
    %v4476 = vsel %vm703, %v4475, %v4474
    %4478 = vst.msk [vmem:[#allocation2] sm:$0xff] %vm137, %v4476
    %4479 = vst.msk [vmem:[%s13] sm:$0xff] %vm137, %v4476
    %v4480 = vld [vmem:[#allocation3] sm:$0xff]
    %v4481 = vld [vmem:[#allocation3 + $0x8] sm:$0xff]
    %v4482 = vld [vmem:[#allocation3 + $0x10] sm:$0xff]
    %v4483 = vld [vmem:[#allocation3 + $0x18] sm:$0xff]
    %v4484 = vld [vmem:[#allocation3 + $0x20] sm:$0xff]
    %v4485 = vld [vmem:[#allocation3 + $0x28] sm:$0xff]
    %v4486 = vld [vmem:[#allocation3 + $0x30] sm:$0xff]
    %v4487 = vld [vmem:[#allocation3 + $0x38] sm:$0xff]
    %v4488 = vld [vmem:[#allocation10] sm:$0xff]
    %v4489 = vld [vmem:[#allocation10 + $0x8] sm:$0xff]
    %v4490 = vld [vmem:[#allocation10 + $0x10] sm:$0xff]
    %v4491 = vld [vmem:[#allocation10 + $0x18] sm:$0xff]
    %v4492 = vld [vmem:[%s9] sm:$0x1]
    %v4494 = vperm.slane %v4492, 0
    %v4497 = vsel %vm137, %v4480, 0
    %v4500 = vsel %vm137, %v4481, 0
    %v4503 = vsel %vm137, %v4482, 0
    %v4506 = vsel %vm137, %v4483, 0
    %v4509 = vsel %vm137, %v4484, 0
    %v4512 = vsel %vm137, %v4485, 0
    %v4515 = vsel %vm137, %v4486, 0
    %v4518 = vsel %vm137, %v4487, 0
    %4520 = vmatpush.msra.mxu0 0.0
    %4521 = vmatpush.msra.mxu0 0.0
    %4522 = vmatpush.msra.mxu0 0.0
    %4523 = vmatpush.msra.mxu0 0.0
    %4524 = vmatpush.msra.mxu0 0.0
    %4525 = vmatpush.msra.mxu0 0.0
    %4526 = vmatpush.msra.mxu0 0.0
    %4527 = vmatpush.msra.mxu0 0.0
    %4528 = vmatpush.msra.mxu0 0.0
    %4529 = vmatpush.msra.mxu0 0.0
    %4530 = vmatpush.msra.mxu0 0.0
    %4531 = vmatpush.msra.mxu0 0.0
    %4532 = vmatpush.msra.mxu0 %v4491
    %4533 = vmatpush.msra.mxu0 %v4490
    %4534 = vmatpush.msra.mxu0 %v4489
    %4535 = vmatpush.msra.mxu0 %v4488
    %4536 = vmatmul.f32.gmra.mxu0 %v4497
    %v4537 = vpop.f32.mrf.mxu0
    %v4538 = vadd.f32 %v4494, %v4537
    %4539 = vmatmul.f32.gmra.mxu0 %v4500
    %v4540 = vpop.f32.mrf.mxu0
    %v4541 = vadd.f32 %v4494, %v4540
    %4542 = vmatmul.f32.gmra.mxu0 %v4503
    %v4543 = vpop.f32.mrf.mxu0
    %v4544 = vadd.f32 %v4494, %v4543
    %4545 = vmatmul.f32.gmra.mxu0 %v4506
    %v4546 = vpop.f32.mrf.mxu0
    %v4547 = vadd.f32 %v4494, %v4546
    %4548 = vmatmul.f32.gmra.mxu0 %v4509
    %v4549 = vpop.f32.mrf.mxu0
    %v4550 = vadd.f32 %v4494, %v4549
    %4551 = vmatmul.f32.gmra.mxu0 %v4512
    %v4552 = vpop.f32.mrf.mxu0
    %v4553 = vadd.f32 %v4494, %v4552
    %4554 = vmatmul.f32.gmra.mxu0 %v4515
    %v4555 = vpop.f32.mrf.mxu0
    %v4556 = vadd.f32 %v4494, %v4555
    %4557 = vmatmul.f32.gmra.mxu0 %v4518
    %v4558 = vpop.f32.mrf.mxu0
    %v4559 = vadd.f32 %v4494, %v4558
    %4560 = vdwg.mxu0
    %vm4561 = vcmp.ge.f32.partialorder %v4538, 0.0
    %vm4562 = vcmp.ge.f32.partialorder %v4541, 0.0
    %vm4563 = vcmp.ge.f32.partialorder %v4544, 0.0
    %vm4564 = vcmp.ge.f32.partialorder %v4547, 0.0
    %vm4565 = vcmp.ge.f32.partialorder %v4550, 0.0
    %vm4566 = vcmp.ge.f32.partialorder %v4553, 0.0
    %vm4567 = vcmp.ge.f32.partialorder %v4556, 0.0
    %vm4568 = vcmp.ge.f32.partialorder %v4559, 0.0
    %v4569 = vmul.f32 %v4538, 0.01
    %v4570 = vmul.f32 %v4541, 0.01
    %v4571 = vmul.f32 %v4544, 0.01
    %v4572 = vmul.f32 %v4547, 0.01
    %v4573 = vmul.f32 %v4550, 0.01
    %v4574 = vmul.f32 %v4553, 0.01
    %v4575 = vmul.f32 %v4556, 0.01
    %v4576 = vmul.f32 %v4559, 0.01
    %v4577 = vsel %vm4561, %v4538, %v4569
    %v4578 = vsel %vm4562, %v4541, %v4570
    %v4579 = vsel %vm4563, %v4544, %v4571
    %v4580 = vsel %vm4564, %v4547, %v4572
    %v4581 = vsel %vm4565, %v4550, %v4573
    %v4582 = vsel %vm4566, %v4553, %v4574
    %v4583 = vsel %vm4567, %v4556, %v4575
    %v4584 = vsel %vm4568, %v4559, %v4576
    %v4585 = vld [vmem:[%s10] sm:$0xff]
    %v4586 = vld [vmem:[%s10 + $0x8] sm:$0xff]
    %v4587 = vld [vmem:[%s10 + $0x10] sm:$0xff]
    %v4588 = vld [vmem:[%s10 + $0x18] sm:$0xff]
    %v4589 = vld [vmem:[#allocation4] sm:$0x1]
    %v4591 = vperm.slane %v4589, 0
    %v4594 = vsel %vm137, %v4577, 0
    %v4597 = vsel %vm137, %v4578, 0
    %v4600 = vsel %vm137, %v4579, 0
    %v4603 = vsel %vm137, %v4580, 0
    %v4606 = vsel %vm137, %v4581, 0
    %v4609 = vsel %vm137, %v4582, 0
    %v4612 = vsel %vm137, %v4583, 0
    %v4615 = vsel %vm137, %v4584, 0
    %4617 = vmatpush.msra.mxu0 0.0
    %4618 = vmatpush.msra.mxu0 0.0
    %4619 = vmatpush.msra.mxu0 0.0
    %4620 = vmatpush.msra.mxu0 0.0
    %4621 = vmatpush.msra.mxu0 0.0
    %4622 = vmatpush.msra.mxu0 0.0
    %4623 = vmatpush.msra.mxu0 0.0
    %4624 = vmatpush.msra.mxu0 0.0
    %4625 = vmatpush.msra.mxu0 0.0
    %4626 = vmatpush.msra.mxu0 0.0
    %4627 = vmatpush.msra.mxu0 0.0
    %4628 = vmatpush.msra.mxu0 0.0
    %4629 = vmatpush.msra.mxu0 %v4588
    %4630 = vmatpush.msra.mxu0 %v4587
    %4631 = vmatpush.msra.mxu0 %v4586
    %4632 = vmatpush.msra.mxu0 %v4585
    %4633 = vmatmul.f32.gmra.mxu0 %v4594
    %v4634 = vpop.f32.mrf.mxu0
    %v4635 = vadd.f32 %v4591, %v4634
    %4636 = vmatmul.f32.gmra.mxu0 %v4597
    %v4637 = vpop.f32.mrf.mxu0
    %v4638 = vadd.f32 %v4591, %v4637
    %4639 = vmatmul.f32.gmra.mxu0 %v4600
    %v4640 = vpop.f32.mrf.mxu0
    %v4641 = vadd.f32 %v4591, %v4640
    %4642 = vmatmul.f32.gmra.mxu0 %v4603
    %v4643 = vpop.f32.mrf.mxu0
    %v4644 = vadd.f32 %v4591, %v4643
    %4645 = vmatmul.f32.gmra.mxu0 %v4606
    %v4646 = vpop.f32.mrf.mxu0
    %v4647 = vadd.f32 %v4591, %v4646
    %4648 = vmatmul.f32.gmra.mxu0 %v4609
    %v4649 = vpop.f32.mrf.mxu0
    %v4650 = vadd.f32 %v4591, %v4649
    %4651 = vmatmul.f32.gmra.mxu0 %v4612
    %v4652 = vpop.f32.mrf.mxu0
    %v4653 = vadd.f32 %v4591, %v4652
    %4654 = vmatmul.f32.gmra.mxu0 %v4615
    %v4655 = vpop.f32.mrf.mxu0
    %v4656 = vadd.f32 %v4591, %v4655
    %4657 = vdwg.mxu0
    %vm4658 = vcmask 7168
    %4659 = vst.msk [vmem:[%s12] sm:$0xff] %vm4658, %v4635
    %4660 = vst.msk [vmem:[%s12 + $0x8] sm:$0xff] %vm4658, %v4638
    %4661 = vst.msk [vmem:[%s12 + $0x10] sm:$0xff] %vm4658, %v4641
    %4662 = vst.msk [vmem:[%s12 + $0x18] sm:$0xff] %vm4658, %v4644
    %4663 = vst.msk [vmem:[%s12 + $0x20] sm:$0xff] %vm4658, %v4647
    %4664 = vst.msk [vmem:[%s12 + $0x28] sm:$0xff] %vm4658, %v4650
    %4665 = vst.msk [vmem:[%s12 + $0x30] sm:$0xff] %vm4658, %v4653
    %4666 = vst.msk [vmem:[%s12 + $0x38] sm:$0xff] %vm4658, %v4656
    // Predicated region
    $region70: #{rec_critic_forward.3} parent=1 // pred_check
      _
    $region71: #{rec_critic_forward.3} parent=1 // pred_check_branch
      %4668 = sbr.rel (0) target = $region73
    $region72: #{rec_critic_forward.3} parent=1 // pred_region
      _
    $region73: #{rec_critic_forward.3} parent=1 // pred_fallthru
      _
    // Predicated region
    $region74: #{rec_critic_forward.3} parent=1 // pred_check
      _
    $region75: #{rec_critic_forward.3} parent=1 // pred_check_branch
      %4670 = sbr.rel (0) target = $region77
    $region76: #{rec_critic_forward.3} parent=1 // pred_region
      _
    $region77: #{rec_critic_forward.3} parent=1 // pred_fallthru
      _
    // Predicated region
    $region78: #{rec_critic_forward.3} parent=1 // pred_check
      _
    $region79: #{rec_critic_forward.3} parent=1 // pred_check_branch
      %4672 = sbr.rel (0) target = $region81
    $region80: #{rec_critic_forward.3} parent=1 // pred_region
      _
    $region81: #{rec_critic_forward.3} parent=1 // pred_fallthru
      _
    // Predicated region
    $region82: #{rec_critic_forward.3} parent=1 // pred_check
      _
    $region83: #{rec_critic_forward.3} parent=1 // pred_check_branch
      %4674 = sbr.rel (0) target = $region85
    $region84: #{rec_critic_forward.3} parent=1 // pred_region
      _
    $region85: #{rec_critic_forward.3} parent=1 // pred_fallthru
      _
    %4675 = vsyncpa [#allocation6], 1
    %4676 = vsyncpa [#allocation8], 1
    %4677 = vsyncpa [#allocation11], 1

</llo_original>
